<compile_context>
chip_gen: v6e
topology: v6e:2x2x1
jax: 0.10.0
libtpu: 0.0.40
codegen_flags: <defaults>
</compile_context>

<pallas_src>
import functools

import jax
import jax.numpy as jnp
from jax.experimental import pallas as pl
from jax.experimental.pallas import tpu as pltpu

# ---- synthetic "params" (shapes implied by the module __init__) -------------
B, CIN, H, W = 2, 4, 16, 16          # images
L = 8                                # label sequence length
V = 32                               # params['words_num']  (out_channel)
CNN = 32                             # DenseNet output channels (proxy)
DE = 16                              # decoder label-embedding dim (proxy)
D1 = 32                              # params['fusion']['sizein1'] (decoder hidden)
D2 = 32                              # params['fusion']['sizein2'] (language embed)
S = 32                               # params['fusion']['sizeout']
USE_LABEL_MASK = True                # params['use_label_mask']


# ============================ fused Pallas kernel ============================

def _rlfn_fused_kernel(
    # per-batch-element inputs
    pflat_ref,    # (1, Npad, Cin)   zero-padded image, spatial dims flattened
    pmask_ref,    # (1, H*(W+2), 1)  image mask (0 on the 2 fake pad columns)
    labels_ref,   # (1, L, 1)  int32
    lmask_ref,    # (1, L, 1)  f32
    # shared weights (matmul operands bf16, biases f32)
    convw_ref,    # (9*Cin, CNN) bf16
    convb_ref,    # (1, CNN)     f32
    lblemb_ref,   # (V, DE)      bf16
    we_ref,       # (DE, D1)     bf16
    wc_ref,       # (CNN, D1)    bf16
    bs_ref,       # (1, D1)      f32
    wo_ref,       # (D1, V)      bf16
    bo_ref,       # (1, V)       f32
    langemb_ref,  # (V, D2)      bf16
    w1z1_ref,     # (D1, 2S)     bf16   [w1 | wz1]
    w2z2_ref,     # (D2, 2S)     bf16   [w2 | wz2]
    gwo_ref,      # (S, V)       bf16
    gbo_ref,      # (1, V)       f32
    # outputs
    fprob_ref,    # (1, L, V) f32  fusion logits
    floss_ref,    # (1, L, 1) f32  per-token fusion CE (reduction='none')
    wstats_ref,   # (1, 1, 8) f32  [sum(loss*mask), sum(mask), sum(loss), 0...]
    # scratch
    xcol_ref,     # (H*(W+2), 9*Cin) f32  VMEM im2col buffer
    *, h, w):
  bf16 = jnp.bfloat16
  cin = pflat_ref.shape[2]
  nr = xcol_ref.shape[0]            # h * (w + 2) conv rows (incl. 2 dummy cols)
  l = labels_ref.shape[1]
  v = wo_ref.shape[1]
  s_half = gwo_ref.shape[0]
  wpad = w + 2

  # ---- encoder: 3x3 conv as a single K=9*Cin matmul -------------------------
  # im2col is built in a VMEM scratch from shifted slices of the flattened
  # padded image (single copy in HBM); rows with x' in {w, w+1} are garbage
  # but carry a zero mask so they never contribute to the pooled context.
  # TODO(synk): full DenseNet encoder config not given; one conv block stands in.
  p = pflat_ref[0]                                        # (Npad, Cin) f32
  t = 0
  for dy in range(3):
    for dx in range(3):
      start = dy * wpad + dx
      xcol_ref[:, t * cin:(t + 1) * cin] = p[start:start + nr, :]
      t += 1
  acc = jnp.dot(xcol_ref[...].astype(bf16), convw_ref[...],
                preferred_element_type=jnp.float32) + convb_ref[...]
  feat = jnp.maximum(acc, 0.0)                            # (nr, CNN) f32

  # masked global pooling fused into the epilogue -> decoder context
  msk = pmask_ref[0]                                      # (nr, 1)
  msum = jnp.sum(msk, axis=0, keepdims=True)              # (1, 1)
  ctx = jnp.sum(feat * msk, axis=0, keepdims=True) / (msum + 1e-10)   # (1, CNN)

  # ---- decoder proxy (teacher forcing) --------------------------------------
  # TODO(synk): the attention decoder (params['decoder']['net']) is not given;
  # a fused label-embedding + context head stands in with matching shapes.
  labels = labels_ref[0]                                  # (L, 1) int32
  classes = jax.lax.broadcasted_iota(jnp.int32, (l, v), 1)
  lbl_onehot = classes == labels                          # (L, V) bool
  emb = jnp.dot(lbl_onehot.astype(bf16), lblemb_ref[...],
                preferred_element_type=jnp.float32)       # (L, DE)
  ctx_proj = jnp.dot(ctx.astype(bf16), wc_ref[...],
                     preferred_element_type=jnp.float32)  # (1, D1), once per b
  st = jnp.tanh(jnp.dot(emb.astype(bf16), we_ref[...],
                        preferred_element_type=jnp.float32)
                + ctx_proj + bs_ref[...])                 # (L, D1) f32
  logits = jnp.dot(st.astype(bf16), wo_ref[...],
                   preferred_element_type=jnp.float32) + bo_ref[...]   # (L, V)

  # ---- word loss: per-token CE + masked partial sums (in-kernel) ------------
  mrow = jnp.max(logits, axis=-1, keepdims=True)
  lse = mrow + jnp.log(jnp.sum(jnp.exp(logits - mrow), axis=-1, keepdims=True))
  onehot_f = lbl_onehot.astype(jnp.float32)
  picked = jnp.sum(logits * onehot_f, axis=-1, keepdims=True)
  wloss = lse - picked                                    # (L, 1)
  lmask = lmask_ref[0]                                    # (L, 1)
  sum_lm = jnp.sum(wloss * lmask, axis=0, keepdims=True)  # (1, 1)
  sum_m = jnp.sum(lmask, axis=0, keepdims=True)
  sum_l = jnp.sum(wloss, axis=0, keepdims=True)
  lane = jax.lax.broadcasted_iota(jnp.int32, (1, wstats_ref.shape[2]), 1)
  wstats_ref[0] = jnp.where(lane == 0, sum_lm,
                            jnp.where(lane == 1, sum_m,
                                      jnp.where(lane == 2, sum_l, 0.0)))

  # ---- argmax -> language encoder (MathBERTa proxy) via onehot @ table ------
  # TODO(synk): MathbertaEmbeddingNet internals not given; a learned token
  # embedding lookup producing (L, sizein2) stands in.
  classes_f = classes.astype(jnp.float32)
  is_max = logits == mrow
  pred_idx = jnp.min(jnp.where(is_max, classes_f, float(v)),
                     axis=-1, keepdims=True)              # first-max tie-break
  pred_onehot = (classes_f == pred_idx).astype(bf16)      # (L, V)
  correct = jnp.dot(pred_onehot, langemb_ref[...],
                    preferred_element_type=jnp.float32)   # (L, D2)

  # ---- DetachGatedMultimodalLayer (detach = stop_gradient: forward-equal) ---
  p1 = jnp.dot(st.astype(bf16), w1z1_ref[...],
               preferred_element_type=jnp.float32)        # (L, 2S)
  p2 = jnp.dot(correct.astype(bf16), w2z2_ref[...],
               preferred_element_type=jnp.float32)        # (L, 2S)
  h1 = jnp.tanh(p1[:, :s_half])
  h2 = jnp.tanh(p2[:, :s_half])
  z = jax.nn.sigmoid(p1[:, s_half:] + p2[:, s_half:])
  hmix = z * h1 + (1.0 - z) * h2                          # (L, S) f32
  flogits = jnp.dot(hmix.astype(bf16), gwo_ref[...],
                    preferred_element_type=jnp.float32) + gbo_ref[...]  # (L, V)
  fprob_ref[0] = flogits

  # ---- fusion loss: per-token CE (reduction='none') -------------------------
  fm = jnp.max(flogits, axis=-1, keepdims=True)
  flse = fm + jnp.log(jnp.sum(jnp.exp(flogits - fm), axis=-1, keepdims=True))
  fpicked = jnp.sum(flogits * onehot_f, axis=-1, keepdims=True)
  floss_ref[0] = flse - fpicked                           # (L, 1)


# ============================ parameters =====================================

def init_params(key):
  ks = jax.random.split(key, 12)

  def w(k, shape, scale=0.1):
    return (scale * jax.random.normal(k, shape)).astype(jnp.float32)

  return dict(
      conv_w=w(ks[0], (3, 3, CIN, CNN)),
      conv_b=jnp.zeros((1, CNN), jnp.float32),
      label_emb=w(ks[1], (V, DE)),
      We=w(ks[2], (DE, D1)),
      Wc=w(ks[3], (CNN, D1)),
      bs=jnp.zeros((1, D1), jnp.float32),
      Wo=w(ks[4], (D1, V)),
      bo=jnp.zeros((1, V), jnp.float32),
      lang_emb=w(ks[5], (V, D2)),
      gmu_w1=w(ks[6], (D1, S)),
      gmu_w2=w(ks[7], (D2, S)),
      gmu_wz1=w(ks[8], (D1, S)),
      gmu_wz2=w(ks[9], (D2, S)),
      gmu_wo=w(ks[10], (S, V)),
      gmu_bo=jnp.zeros((1, V), jnp.float32),
  )


# ============================ RLFN forward ===================================

@jax.jit
def rlfn_forward(params, images, images_mask, labels, labels_mask):
  # images: NCHW (PyTorch convention) -> NHWC (channels on the lane axis).
  x = jnp.transpose(images, (0, 2, 3, 1)).astype(jnp.float32)
  b_, h, w_sp, cin = x.shape
  seq = labels.shape[1]
  wpad = w_sp + 2
  nr = h * wpad                                  # conv rows incl. 2 dummy cols
  nflat = (h + 2) * wpad
  npad = ((nflat + 2 + 7) // 8) * 8              # room for max tap offset, 8-aligned

  # single (non-duplicated) zero-padded image, spatial dims flattened
  x_pad = jnp.pad(x, ((0, 0), (1, 1), (1, 1), (0, 0)))          # (B,H+2,W+2,Cin)
  pflat = jnp.pad(x_pad.reshape(b_, nflat, cin),
                  ((0, 0), (0, npad - nflat), (0, 0)))          # (B,Npad,Cin)
  # mask laid out on the same H x (W+2) grid; the 2 extra columns are zero so
  # the wrapped "garbage" conv rows never contribute to the pooled context.
  m = jnp.transpose(images_mask, (0, 2, 3, 1)).astype(jnp.float32)[..., 0]
  mask_p = jnp.pad(m, ((0, 0), (0, 0), (0, 2))).reshape(b_, nr, 1)
  labels3 = labels.astype(jnp.int32).reshape(b_, seq, 1)
  lmask3 = labels_mask.astype(jnp.float32).reshape(b_, seq, 1)

  # weight packing (host-side, once): flatten conv taps, concat GMU gate/hidden
  # projections, cast matmul operands to bf16 (biases stay f32).
  bf16 = jnp.bfloat16
  conv_wf = params['conv_w'].reshape(9 * cin, -1).astype(bf16)  # (9*Cin, CNN)
  w1z1 = jnp.concatenate([params['gmu_w1'], params['gmu_wz1']], axis=1).astype(bf16)
  w2z2 = jnp.concatenate([params['gmu_w2'], params['gmu_wz2']], axis=1).astype(bf16)
  v = params['Wo'].shape[1]
  weights = (conv_wf, params['conv_b'],
             params['label_emb'].astype(bf16),
             params['We'].astype(bf16), params['Wc'].astype(bf16), params['bs'],
             params['Wo'].astype(bf16), params['bo'],
             params['lang_emb'].astype(bf16),
             w1z1, w2z2, params['gmu_wo'].astype(bf16), params['gmu_bo'])

  kernel = functools.partial(_rlfn_fused_kernel, h=h, w=w_sp)
  full = lambda a: pl.BlockSpec(a.shape, lambda b: (0,) * a.ndim)

  fusion_probs, floss3, wstats = pl.pallas_call(
      kernel,
      out_shape=(jax.ShapeDtypeStruct((b_, seq, v), jnp.float32),
                 jax.ShapeDtypeStruct((b_, seq, 1), jnp.float32),
                 jax.ShapeDtypeStruct((b_, 1, 8), jnp.float32)),
      grid=(b_,),
      in_specs=[
          pl.BlockSpec((1, npad, cin), lambda b: (b, 0, 0)),
          pl.BlockSpec((1, nr, 1), lambda b: (b, 0, 0)),
          pl.BlockSpec((1, seq, 1), lambda b: (b, 0, 0)),
          pl.BlockSpec((1, seq, 1), lambda b: (b, 0, 0)),
      ] + [full(wt) for wt in weights],
      out_specs=(pl.BlockSpec((1, seq, v), lambda b: (b, 0, 0)),
                 pl.BlockSpec((1, seq, 1), lambda b: (b, 0, 0)),
                 pl.BlockSpec((1, 1, 8), lambda b: (b, 0, 0))),
      scratch_shapes=[pltpu.VMEM((nr, 9 * cin), jnp.float32)],
      compiler_params=pltpu.CompilerParams(
          dimension_semantics=("parallel",)),   # batch axis -> both v7x TCs
  )(pflat, mask_p, labels3, lmask3, *weights)

  if USE_LABEL_MASK:
    word_average_loss = (jnp.sum(wstats[:, 0, 0])
                         / (jnp.sum(wstats[:, 0, 1]) + 1e-10))
  else:
    word_average_loss = jnp.sum(wstats[:, 0, 2]) / (b_ * seq)

  # fusion_loss: reduction='none' per-token vector; sum([x]) / 1 == identity
  fusion_loss = floss3.reshape(b_ * seq)
  return fusion_probs, word_average_loss, fusion_loss


# ============================ main ===========================================

if __name__ == "__main__":
  key = jax.random.PRNGKey(0)
  kp, ki, kl = jax.random.split(key, 3)
  params = init_params(kp)

  images = jax.random.normal(ki, (B, CIN, H, W), jnp.float32)     # NCHW input
  images_mask = jnp.ones((B, 1, H, W), jnp.float32)
  labels = jax.random.randint(kl, (B, L), 0, V).astype(jnp.int32)
  labels_mask = jnp.ones((B, L), jnp.float32)

  fusion_probs, word_average_loss, fusion_loss = rlfn_forward(
      params, images, images_mask, labels, labels_mask)
  jax.block_until_ready((fusion_probs, word_average_loss, fusion_loss))

  assert fusion_probs.shape == (B, L, V)
  assert word_average_loss.shape == ()
  assert fusion_loss.shape == (B * L,)
  assert bool(jnp.isfinite(word_average_loss))
  assert bool(jnp.all(jnp.isfinite(fusion_probs)))
  assert bool(jnp.all(jnp.isfinite(fusion_loss)))
  print("KERNEL_OK")
</pallas_src>

<mosaic_0001>
module attributes {stable_mosaic.version = 11 : i64} {
  func.func @_rlfn_fused_kernel(%arg0: i32, %arg1: memref<1x328x4xf32, #tpu.memory_space<vmem>>, %arg2: memref<1x288x1xf32, #tpu.memory_space<vmem>>, %arg3: memref<1x8x1xi32, #tpu.memory_space<vmem>>, %arg4: memref<1x8x1xf32, #tpu.memory_space<vmem>>, %arg5: memref<36x32xbf16, #tpu.memory_space<vmem>>, %arg6: memref<1x32xf32, #tpu.memory_space<vmem>>, %arg7: memref<32x16xbf16, #tpu.memory_space<vmem>>, %arg8: memref<16x32xbf16, #tpu.memory_space<vmem>>, %arg9: memref<32x32xbf16, #tpu.memory_space<vmem>>, %arg10: memref<1x32xf32, #tpu.memory_space<vmem>>, %arg11: memref<32x32xbf16, #tpu.memory_space<vmem>>, %arg12: memref<1x32xf32, #tpu.memory_space<vmem>>, %arg13: memref<32x32xbf16, #tpu.memory_space<vmem>>, %arg14: memref<32x64xbf16, #tpu.memory_space<vmem>>, %arg15: memref<32x64xbf16, #tpu.memory_space<vmem>>, %arg16: memref<32x32xbf16, #tpu.memory_space<vmem>>, %arg17: memref<1x32xf32, #tpu.memory_space<vmem>>, %arg18: memref<1x8x32xf32, #tpu.memory_space<vmem>>, %arg19: memref<1x8x1xf32, #tpu.memory_space<vmem>>, %arg20: memref<1x1x8xf32, #tpu.memory_space<vmem>>, %arg21: memref<288x36xf32, #tpu.memory_space<vmem>>) attributes {dimension_semantics = [#tpu.dimension_semantics<parallel>], iteration_bounds = array<i64: 2>, scalar_prefetch = 0 : i64, scratch_operands = 1 : i64, tpu.core_type = #tpu.core_type<tc>, window_params = [{transform_indices = @transform_0, window_bounds = array<i64: 1, 328, 4>}, {transform_indices = @transform_1, window_bounds = array<i64: 1, 288, 1>}, {transform_indices = @transform_2, window_bounds = array<i64: 1, 8, 1>}, {transform_indices = @transform_3, window_bounds = array<i64: 1, 8, 1>}, {pipeline_mode = #tpu.pipeline_mode<synchronous>, transform_indices = @transform_4, window_bounds = array<i64: 36, 32>}, {pipeline_mode = #tpu.pipeline_mode<synchronous>, transform_indices = @transform_5, window_bounds = array<i64: 1, 32>}, {pipeline_mode = #tpu.pipeline_mode<synchronous>, transform_indices = @transform_6, window_bounds = array<i64: 32, 16>}, {pipeline_mode = #tpu.pipeline_mode<synchronous>, transform_indices = @transform_7, window_bounds = array<i64: 16, 32>}, {pipeline_mode = #tpu.pipeline_mode<synchronous>, transform_indices = @transform_8, window_bounds = array<i64: 32, 32>}, {pipeline_mode = #tpu.pipeline_mode<synchronous>, transform_indices = @transform_9, window_bounds = array<i64: 1, 32>}, {pipeline_mode = #tpu.pipeline_mode<synchronous>, transform_indices = @transform_10, window_bounds = array<i64: 32, 32>}, {pipeline_mode = #tpu.pipeline_mode<synchronous>, transform_indices = @transform_11, window_bounds = array<i64: 1, 32>}, {pipeline_mode = #tpu.pipeline_mode<synchronous>, transform_indices = @transform_12, window_bounds = array<i64: 32, 32>}, {pipeline_mode = #tpu.pipeline_mode<synchronous>, transform_indices = @transform_13, window_bounds = array<i64: 32, 64>}, {pipeline_mode = #tpu.pipeline_mode<synchronous>, transform_indices = @transform_14, window_bounds = array<i64: 32, 64>}, {pipeline_mode = #tpu.pipeline_mode<synchronous>, transform_indices = @transform_15, window_bounds = array<i64: 32, 32>}, {pipeline_mode = #tpu.pipeline_mode<synchronous>, transform_indices = @transform_16, window_bounds = array<i64: 1, 32>}, {transform_indices = @transform_17, window_bounds = array<i64: 1, 8, 32>}, {transform_indices = @transform_18, window_bounds = array<i64: 1, 8, 1>}, {transform_indices = @transform_19, window_bounds = array<i64: 1, 1, 8>}]} {
    %c0 = arith.constant 0 : index
    %c0_0 = arith.constant 0 : index
    %c0_1 = arith.constant 0 : index
    %0 = vector.load %arg1[%c0, %c0_0, %c0_1] : memref<1x328x4xf32, #tpu.memory_space<vmem>>, vector<1x328x4xf32>
    %1 = vector.shape_cast %0 : vector<1x328x4xf32> to vector<328x4xf32>
    %2 = vector.extract_strided_slice %1 {offsets = [0, 0], sizes = [288, 4], strides = [1, 1]} : vector<328x4xf32> to vector<288x4xf32>
    %c0_2 = arith.constant 0 : index
    %c0_3 = arith.constant 0 : index
    %3 = vector.load %arg21[%c0_2, %c0_3] : memref<288x36xf32, #tpu.memory_space<vmem>>, vector<288x4xf32>
    tpu.vector_store %arg21[%c0_2, %c0_3], %2 {strides = array<i32>} : memref<288x36xf32, #tpu.memory_space<vmem>>, vector<288x4xf32>,
    %4 = vector.extract_strided_slice %1 {offsets = [1, 0], sizes = [288, 4], strides = [1, 1]} : vector<328x4xf32> to vector<288x4xf32>
    %c0_4 = arith.constant 0 : index
    %c4 = arith.constant 4 : index
    %5 = vector.load %arg21[%c0_4, %c4] : memref<288x36xf32, #tpu.memory_space<vmem>>, vector<288x4xf32>
    tpu.vector_store %arg21[%c0_4, %c4], %4 {strides = array<i32>} : memref<288x36xf32, #tpu.memory_space<vmem>>, vector<288x4xf32>,
    %6 = vector.extract_strided_slice %1 {offsets = [2, 0], sizes = [288, 4], strides = [1, 1]} : vector<328x4xf32> to vector<288x4xf32>
    %c0_5 = arith.constant 0 : index
    %c8 = arith.constant 8 : index
    %7 = vector.load %arg21[%c0_5, %c8] : memref<288x36xf32, #tpu.memory_space<vmem>>, vector<288x4xf32>
    tpu.vector_store %arg21[%c0_5, %c8], %6 {strides = array<i32>} : memref<288x36xf32, #tpu.memory_space<vmem>>, vector<288x4xf32>,
    %8 = vector.extract_strided_slice %1 {offsets = [18, 0], sizes = [288, 4], strides = [1, 1]} : vector<328x4xf32> to vector<288x4xf32>
    %c0_6 = arith.constant 0 : index
    %c12 = arith.constant 12 : index
    %9 = vector.load %arg21[%c0_6, %c12] : memref<288x36xf32, #tpu.memory_space<vmem>>, vector<288x4xf32>
    tpu.vector_store %arg21[%c0_6, %c12], %8 {strides = array<i32>} : memref<288x36xf32, #tpu.memory_space<vmem>>, vector<288x4xf32>,
    %10 = vector.extract_strided_slice %1 {offsets = [19, 0], sizes = [288, 4], strides = [1, 1]} : vector<328x4xf32> to vector<288x4xf32>
    %c0_7 = arith.constant 0 : index
    %c16 = arith.constant 16 : index
    %11 = vector.load %arg21[%c0_7, %c16] : memref<288x36xf32, #tpu.memory_space<vmem>>, vector<288x4xf32>
    tpu.vector_store %arg21[%c0_7, %c16], %10 {strides = array<i32>} : memref<288x36xf32, #tpu.memory_space<vmem>>, vector<288x4xf32>,
    %12 = vector.extract_strided_slice %1 {offsets = [20, 0], sizes = [288, 4], strides = [1, 1]} : vector<328x4xf32> to vector<288x4xf32>
    %c0_8 = arith.constant 0 : index
    %c20 = arith.constant 20 : index
    %13 = vector.load %arg21[%c0_8, %c20] : memref<288x36xf32, #tpu.memory_space<vmem>>, vector<288x4xf32>
    tpu.vector_store %arg21[%c0_8, %c20], %12 {strides = array<i32>} : memref<288x36xf32, #tpu.memory_space<vmem>>, vector<288x4xf32>,
    %14 = vector.extract_strided_slice %1 {offsets = [36, 0], sizes = [288, 4], strides = [1, 1]} : vector<328x4xf32> to vector<288x4xf32>
    %c0_9 = arith.constant 0 : index
    %c24 = arith.constant 24 : index
    %15 = vector.load %arg21[%c0_9, %c24] : memref<288x36xf32, #tpu.memory_space<vmem>>, vector<288x4xf32>
    tpu.vector_store %arg21[%c0_9, %c24], %14 {strides = array<i32>} : memref<288x36xf32, #tpu.memory_space<vmem>>, vector<288x4xf32>,
    %16 = vector.extract_strided_slice %1 {offsets = [37, 0], sizes = [288, 4], strides = [1, 1]} : vector<328x4xf32> to vector<288x4xf32>
    %c0_10 = arith.constant 0 : index
    %c28 = arith.constant 28 : index
    %17 = vector.load %arg21[%c0_10, %c28] : memref<288x36xf32, #tpu.memory_space<vmem>>, vector<288x4xf32>
    tpu.vector_store %arg21[%c0_10, %c28], %16 {strides = array<i32>} : memref<288x36xf32, #tpu.memory_space<vmem>>, vector<288x4xf32>,
    %18 = vector.extract_strided_slice %1 {offsets = [38, 0], sizes = [288, 4], strides = [1, 1]} : vector<328x4xf32> to vector<288x4xf32>
    %c0_11 = arith.constant 0 : index
    %c32 = arith.constant 32 : index
    %19 = vector.load %arg21[%c0_11, %c32] : memref<288x36xf32, #tpu.memory_space<vmem>>, vector<288x4xf32>
    tpu.vector_store %arg21[%c0_11, %c32], %18 {strides = array<i32>} : memref<288x36xf32, #tpu.memory_space<vmem>>, vector<288x4xf32>,
    %c0_12 = arith.constant 0 : index
    %c0_13 = arith.constant 0 : index
    %20 = vector.load %arg21[%c0_12, %c0_13] : memref<288x36xf32, #tpu.memory_space<vmem>>, vector<288x36xf32>
    %21 = arith.truncf %20 : vector<288x36xf32> to vector<288x36xbf16>
    %c0_14 = arith.constant 0 : index
    %c0_15 = arith.constant 0 : index
    %22 = vector.load %arg5[%c0_14, %c0_15] : memref<36x32xbf16, #tpu.memory_space<vmem>>, vector<36x32xbf16>
    %cst = arith.constant dense<0.000000e+00> : vector<288x32xf32>
    %23 = tpu.matmul %21, %22, %cst {dimension_numbers = #tpu.dot_dimension_numbers<[1], [0], [0], [1], [0, 0, 1, 1], [], []>} : vector<288x36xbf16>, vector<36x32xbf16>, vector<288x32xf32> -> vector<288x32xf32>
    %c0_16 = arith.constant 0 : index
    %c0_17 = arith.constant 0 : index
    %24 = vector.load %arg6[%c0_16, %c0_17] : memref<1x32xf32, #tpu.memory_space<vmem>>, vector<1x32xf32>
    %25 = vector.broadcast %24 : vector<1x32xf32> to vector<288x32xf32>
    %26 = arith.addf %23, %25 : vector<288x32xf32>
    %cst_18 = arith.constant 0.000000e+00 : f32
    %27 = vector.broadcast %cst_18 : f32 to vector<288x32xf32>
    %28 = arith.maximumf %26, %27 : vector<288x32xf32>
    %c0_19 = arith.constant 0 : index
    %c0_20 = arith.constant 0 : index
    %c0_21 = arith.constant 0 : index
    %29 = vector.load %arg2[%c0_19, %c0_20, %c0_21] : memref<1x288x1xf32, #tpu.memory_space<vmem>>, vector<1x288x1xf32>
    %30 = vector.shape_cast %29 : vector<1x288x1xf32> to vector<288x1xf32>
    %cst_22 = arith.constant dense<0.000000e+00> : vector<1xf32>
    %31 = vector.multi_reduction <add>, %30, %cst_22 [0] : vector<288x1xf32> to vector<1xf32>
    %32 = vector.shape_cast %31 : vector<1xf32> to vector<1x1xf32>
    %33 = vector.broadcast %30 : vector<288x1xf32> to vector<288x32xf32>
    %34 = arith.mulf %28, %33 : vector<288x32xf32>
    %cst_23 = arith.constant dense<0.000000e+00> : vector<32xf32>
    %35 = vector.multi_reduction <add>, %34, %cst_23 [0] : vector<288x32xf32> to vector<32xf32>
    %36 = vector.shape_cast %35 : vector<32xf32> to vector<1x32xf32>
    %cst_24 = arith.constant 1.000000e-10 : f32
    %37 = vector.broadcast %cst_24 : f32 to vector<1x1xf32>
    %38 = arith.addf %32, %37 : vector<1x1xf32>
    %39 = vector.broadcast %38 : vector<1x1xf32> to vector<1x32xf32>
    %40 = arith.divf %36, %39 : vector<1x32xf32>
    %c0_25 = arith.constant 0 : index
    %c0_26 = arith.constant 0 : index
    %c0_27 = arith.constant 0 : index
    %41 = vector.load %arg3[%c0_25, %c0_26, %c0_27] : memref<1x8x1xi32, #tpu.memory_space<vmem>>, vector<1x8x1xi32>
    %42 = vector.shape_cast %41 : vector<1x8x1xi32> to vector<8x1xi32>
    %43 = tpu.iota {dimensions = array<i32: 1>} : vector<8x32xi32>
    %44 = vector.broadcast %42 : vector<8x1xi32> to vector<8x32xi32>
    %45 = arith.cmpi eq, %43, %44 : vector<8x32xi32>
    %46 = arith.extui %45 : vector<8x32xi1> to vector<8x32xi32>
    %47 = arith.sitofp %46 : vector<8x32xi32> to vector<8x32xf32>
    %48 = arith.truncf %47 : vector<8x32xf32> to vector<8x32xbf16>
    %c0_28 = arith.constant 0 : index
    %c0_29 = arith.constant 0 : index
    %49 = vector.load %arg7[%c0_28, %c0_29] : memref<32x16xbf16, #tpu.memory_space<vmem>>, vector<32x16xbf16>
    %cst_30 = arith.constant dense<0.000000e+00> : vector<8x16xf32>
    %50 = tpu.matmul %48, %49, %cst_30 {dimension_numbers = #tpu.dot_dimension_numbers<[1], [0], [0], [1], [0, 0, 1, 1], [], []>} : vector<8x32xbf16>, vector<32x16xbf16>, vector<8x16xf32> -> vector<8x16xf32>
    %51 = arith.truncf %40 : vector<1x32xf32> to vector<1x32xbf16>
    %c0_31 = arith.constant 0 : index
    %c0_32 = arith.constant 0 : index
    %52 = vector.load %arg9[%c0_31, %c0_32] : memref<32x32xbf16, #tpu.memory_space<vmem>>, vector<32x32xbf16>
    %cst_33 = arith.constant dense<0.000000e+00> : vector<1x32xf32>
    %53 = tpu.matmul %51, %52, %cst_33 {dimension_numbers = #tpu.dot_dimension_numbers<[1], [0], [0], [1], [0, 0, 1, 1], [], []>} : vector<1x32xbf16>, vector<32x32xbf16>, vector<1x32xf32> -> vector<1x32xf32>
    %54 = arith.truncf %50 : vector<8x16xf32> to vector<8x16xbf16>
    %c0_34 = arith.constant 0 : index
    %c0_35 = arith.constant 0 : index
    %55 = vector.load %arg8[%c0_34, %c0_35] : memref<16x32xbf16, #tpu.memory_space<vmem>>, vector<16x32xbf16>
    %cst_36 = arith.constant dense<0.000000e+00> : vector<8x32xf32>
    %56 = tpu.matmul %54, %55, %cst_36 {dimension_numbers = #tpu.dot_dimension_numbers<[1], [0], [0], [1], [0, 0, 1, 1], [], []>} : vector<8x16xbf16>, vector<16x32xbf16>, vector<8x32xf32> -> vector<8x32xf32>
    %57 = vector.broadcast %53 : vector<1x32xf32> to vector<8x32xf32>
    %58 = arith.addf %56, %57 : vector<8x32xf32>
    %c0_37 = arith.constant 0 : index
    %c0_38 = arith.constant 0 : index
    %59 = vector.load %arg10[%c0_37, %c0_38] : memref<1x32xf32, #tpu.memory_space<vmem>>, vector<1x32xf32>
    %60 = vector.broadcast %59 : vector<1x32xf32> to vector<8x32xf32>
    %61 = arith.addf %58, %60 : vector<8x32xf32>
    %62 = math.tanh %61 : vector<8x32xf32>
    %63 = arith.truncf %62 : vector<8x32xf32> to vector<8x32xbf16>
    %c0_39 = arith.constant 0 : index
    %c0_40 = arith.constant 0 : index
    %64 = vector.load %arg11[%c0_39, %c0_40] : memref<32x32xbf16, #tpu.memory_space<vmem>>, vector<32x32xbf16>
    %cst_41 = arith.constant dense<0.000000e+00> : vector<8x32xf32>
    %65 = tpu.matmul %63, %64, %cst_41 {dimension_numbers = #tpu.dot_dimension_numbers<[1], [0], [0], [1], [0, 0, 1, 1], [], []>} : vector<8x32xbf16>, vector<32x32xbf16>, vector<8x32xf32> -> vector<8x32xf32>
    %c0_42 = arith.constant 0 : index
    %c0_43 = arith.constant 0 : index
    %66 = vector.load %arg12[%c0_42, %c0_43] : memref<1x32xf32, #tpu.memory_space<vmem>>, vector<1x32xf32>
    %67 = vector.broadcast %66 : vector<1x32xf32> to vector<8x32xf32>
    %68 = arith.addf %65, %67 : vector<8x32xf32>
    %cst_44 = arith.constant dense<0xFF800000> : vector<8xf32>
    %69 = vector.multi_reduction <maximumf>, %68, %cst_44 [1] : vector<8x32xf32> to vector<8xf32>
    %70 = vector.shape_cast %69 : vector<8xf32> to vector<8x1xf32>
    %71 = vector.broadcast %70 : vector<8x1xf32> to vector<8x32xf32>
    %72 = arith.subf %68, %71 : vector<8x32xf32>
    %73 = math.exp %72 : vector<8x32xf32>
    %cst_45 = arith.constant dense<0.000000e+00> : vector<8xf32>
    %74 = vector.multi_reduction <add>, %73, %cst_45 [1] : vector<8x32xf32> to vector<8xf32>
    %75 = vector.shape_cast %74 : vector<8xf32> to vector<8x1xf32>
    %76 = math.log %75 : vector<8x1xf32>
    %77 = arith.addf %70, %76 : vector<8x1xf32>
    %78 = arith.extui %45 : vector<8x32xi1> to vector<8x32xi32>
    %79 = arith.sitofp %78 : vector<8x32xi32> to vector<8x32xf32>
    %80 = arith.mulf %68, %79 : vector<8x32xf32>
    %cst_46 = arith.constant dense<0.000000e+00> : vector<8xf32>
    %81 = vector.multi_reduction <add>, %80, %cst_46 [1] : vector<8x32xf32> to vector<8xf32>
    %82 = vector.shape_cast %81 : vector<8xf32> to vector<8x1xf32>
    %83 = arith.subf %77, %82 : vector<8x1xf32>
    %c0_47 = arith.constant 0 : index
    %c0_48 = arith.constant 0 : index
    %c0_49 = arith.constant 0 : index
    %84 = vector.load %arg4[%c0_47, %c0_48, %c0_49] : memref<1x8x1xf32, #tpu.memory_space<vmem>>, vector<1x8x1xf32>
    %85 = vector.shape_cast %84 : vector<1x8x1xf32> to vector<8x1xf32>
    %86 = arith.mulf %83, %85 : vector<8x1xf32>
    %cst_50 = arith.constant dense<0.000000e+00> : vector<1xf32>
    %87 = vector.multi_reduction <add>, %86, %cst_50 [0] : vector<8x1xf32> to vector<1xf32>
    %88 = vector.shape_cast %87 : vector<1xf32> to vector<1x1xf32>
    %cst_51 = arith.constant dense<0.000000e+00> : vector<1xf32>
    %89 = vector.multi_reduction <add>, %85, %cst_51 [0] : vector<8x1xf32> to vector<1xf32>
    %90 = vector.shape_cast %89 : vector<1xf32> to vector<1x1xf32>
    %cst_52 = arith.constant dense<0.000000e+00> : vector<1xf32>
    %91 = vector.multi_reduction <add>, %83, %cst_52 [0] : vector<8x1xf32> to vector<1xf32>
    %92 = vector.shape_cast %91 : vector<1xf32> to vector<1x1xf32>
    %93 = tpu.iota {dimensions = array<i32: 1>} : vector<1x8xi32>
    %c0_i32 = arith.constant 0 : i32
    %94 = vector.broadcast %c0_i32 : i32 to vector<1x8xi32>
    %95 = arith.cmpi eq, %93, %94 : vector<1x8xi32>
    %c1_i32 = arith.constant 1 : i32
    %96 = vector.broadcast %c1_i32 : i32 to vector<1x8xi32>
    %97 = arith.cmpi eq, %93, %96 : vector<1x8xi32>
    %c2_i32 = arith.constant 2 : i32
    %98 = vector.broadcast %c2_i32 : i32 to vector<1x8xi32>
    %99 = arith.cmpi eq, %93, %98 : vector<1x8xi32>
    %cst_53 = arith.constant 0.000000e+00 : f32
    %100 = vector.shape_cast %92 : vector<1x1xf32> to vector<1x1xf32>
    %101 = vector.broadcast %100 : vector<1x1xf32> to vector<1x8xf32>
    %102 = vector.broadcast %cst_53 : f32 to vector<1x8xf32>
    %103 = arith.select %99, %101, %102 : vector<1x8xi1>, vector<1x8xf32>
    %104 = vector.shape_cast %90 : vector<1x1xf32> to vector<1x1xf32>
    %105 = vector.broadcast %104 : vector<1x1xf32> to vector<1x8xf32>
    %106 = arith.select %97, %105, %103 : vector<1x8xi1>, vector<1x8xf32>
    %107 = vector.shape_cast %88 : vector<1x1xf32> to vector<1x1xf32>
    %108 = vector.broadcast %107 : vector<1x1xf32> to vector<1x8xf32>
    %109 = arith.select %95, %108, %106 : vector<1x8xi1>, vector<1x8xf32>
    %c0_54 = arith.constant 0 : index
    %c0_55 = arith.constant 0 : index
    %c0_56 = arith.constant 0 : index
    %110 = vector.load %arg20[%c0_54, %c0_55, %c0_56] : memref<1x1x8xf32, #tpu.memory_space<vmem>>, vector<1x1x8xf32>
    %111 = vector.shape_cast %110 : vector<1x1x8xf32> to vector<1x8xf32>
    %112 = vector.shape_cast %109 : vector<1x8xf32> to vector<1x1x8xf32>
    tpu.vector_store %arg20[%c0_54, %c0_55, %c0_56], %112 {strides = array<i32>} : memref<1x1x8xf32, #tpu.memory_space<vmem>>, vector<1x1x8xf32>,
    %113 = arith.sitofp %43 : vector<8x32xi32> to vector<8x32xf32>
    %114 = vector.broadcast %70 : vector<8x1xf32> to vector<8x32xf32>
    %115 = arith.cmpf oeq, %68, %114 : vector<8x32xf32>
    %cst_57 = arith.constant 3.200000e+01 : f32
    %116 = vector.broadcast %cst_57 : f32 to vector<8x32xf32>
    %117 = arith.select %115, %113, %116 : vector<8x32xi1>, vector<8x32xf32>
    %cst_58 = arith.constant dense<0x7F800000> : vector<8xf32>
    %118 = vector.multi_reduction <minimumf>, %117, %cst_58 [1] : vector<8x32xf32> to vector<8xf32>
    %119 = vector.shape_cast %118 : vector<8xf32> to vector<8x1xf32>
    %120 = vector.broadcast %119 : vector<8x1xf32> to vector<8x32xf32>
    %121 = arith.cmpf oeq, %113, %120 : vector<8x32xf32>
    %122 = arith.extui %121 : vector<8x32xi1> to vector<8x32xi32>
    %123 = arith.sitofp %122 : vector<8x32xi32> to vector<8x32xf32>
    %124 = arith.truncf %123 : vector<8x32xf32> to vector<8x32xbf16>
    %c0_59 = arith.constant 0 : index
    %c0_60 = arith.constant 0 : index
    %125 = vector.load %arg13[%c0_59, %c0_60] : memref<32x32xbf16, #tpu.memory_space<vmem>>, vector<32x32xbf16>
    %cst_61 = arith.constant dense<0.000000e+00> : vector<8x32xf32>
    %126 = tpu.matmul %124, %125, %cst_61 {dimension_numbers = #tpu.dot_dimension_numbers<[1], [0], [0], [1], [0, 0, 1, 1], [], []>} : vector<8x32xbf16>, vector<32x32xbf16>, vector<8x32xf32> -> vector<8x32xf32>
    %127 = arith.truncf %62 : vector<8x32xf32> to vector<8x32xbf16>
    %c0_62 = arith.constant 0 : index
    %c0_63 = arith.constant 0 : index
    %128 = vector.load %arg14[%c0_62, %c0_63] : memref<32x64xbf16, #tpu.memory_space<vmem>>, vector<32x64xbf16>
    %cst_64 = arith.constant dense<0.000000e+00> : vector<8x64xf32>
    %129 = tpu.matmul %127, %128, %cst_64 {dimension_numbers = #tpu.dot_dimension_numbers<[1], [0], [0], [1], [0, 0, 1, 1], [], []>} : vector<8x32xbf16>, vector<32x64xbf16>, vector<8x64xf32> -> vector<8x64xf32>
    %130 = arith.truncf %126 : vector<8x32xf32> to vector<8x32xbf16>
    %c0_65 = arith.constant 0 : index
    %c0_66 = arith.constant 0 : index
    %131 = vector.load %arg15[%c0_65, %c0_66] : memref<32x64xbf16, #tpu.memory_space<vmem>>, vector<32x64xbf16>
    %cst_67 = arith.constant dense<0.000000e+00> : vector<8x64xf32>
    %132 = tpu.matmul %130, %131, %cst_67 {dimension_numbers = #tpu.dot_dimension_numbers<[1], [0], [0], [1], [0, 0, 1, 1], [], []>} : vector<8x32xbf16>, vector<32x64xbf16>, vector<8x64xf32> -> vector<8x64xf32>
    %133 = vector.extract_strided_slice %129 {offsets = [0, 0], sizes = [8, 32], strides = [1, 1]} : vector<8x64xf32> to vector<8x32xf32>
    %134 = math.tanh %133 : vector<8x32xf32>
    %135 = vector.extract_strided_slice %132 {offsets = [0, 0], sizes = [8, 32], strides = [1, 1]} : vector<8x64xf32> to vector<8x32xf32>
    %136 = math.tanh %135 : vector<8x32xf32>
    %137 = vector.extract_strided_slice %129 {offsets = [0, 32], sizes = [8, 32], strides = [1, 1]} : vector<8x64xf32> to vector<8x32xf32>
    %138 = vector.extract_strided_slice %132 {offsets = [0, 32], sizes = [8, 32], strides = [1, 1]} : vector<8x64xf32> to vector<8x32xf32>
    %139 = arith.addf %137, %138 : vector<8x32xf32>
    %140 = arith.negf %139 : vector<8x32xf32>
    %141 = math.exp %140 : vector<8x32xf32>
    %cst_68 = arith.constant 1.000000e+00 : f32
    %142 = vector.broadcast %cst_68 : f32 to vector<8x32xf32>
    %143 = arith.addf %142, %141 : vector<8x32xf32>
    %144 = arith.divf %142, %143 : vector<8x32xf32>
    %145 = arith.mulf %144, %134 : vector<8x32xf32>
    %cst_69 = arith.constant 1.000000e+00 : f32
    %146 = vector.broadcast %cst_69 : f32 to vector<8x32xf32>
    %147 = arith.subf %146, %144 : vector<8x32xf32>
    %148 = arith.mulf %147, %136 : vector<8x32xf32>
    %149 = arith.addf %145, %148 : vector<8x32xf32>
    %150 = arith.truncf %149 : vector<8x32xf32> to vector<8x32xbf16>
    %c0_70 = arith.constant 0 : index
    %c0_71 = arith.constant 0 : index
    %151 = vector.load %arg16[%c0_70, %c0_71] : memref<32x32xbf16, #tpu.memory_space<vmem>>, vector<32x32xbf16>
    %cst_72 = arith.constant dense<0.000000e+00> : vector<8x32xf32>
    %152 = tpu.matmul %150, %151, %cst_72 {dimension_numbers = #tpu.dot_dimension_numbers<[1], [0], [0], [1], [0, 0, 1, 1], [], []>} : vector<8x32xbf16>, vector<32x32xbf16>, vector<8x32xf32> -> vector<8x32xf32>
    %c0_73 = arith.constant 0 : index
    %c0_74 = arith.constant 0 : index
    %153 = vector.load %arg17[%c0_73, %c0_74] : memref<1x32xf32, #tpu.memory_space<vmem>>, vector<1x32xf32>
    %154 = vector.broadcast %153 : vector<1x32xf32> to vector<8x32xf32>
    %155 = arith.addf %152, %154 : vector<8x32xf32>
    %c0_75 = arith.constant 0 : index
    %c0_76 = arith.constant 0 : index
    %c0_77 = arith.constant 0 : index
    %156 = vector.load %arg18[%c0_75, %c0_76, %c0_77] : memref<1x8x32xf32, #tpu.memory_space<vmem>>, vector<1x8x32xf32>
    %157 = vector.shape_cast %156 : vector<1x8x32xf32> to vector<8x32xf32>
    %158 = vector.shape_cast %155 : vector<8x32xf32> to vector<1x8x32xf32>
    tpu.vector_store %arg18[%c0_75, %c0_76, %c0_77], %158 {strides = array<i32>} : memref<1x8x32xf32, #tpu.memory_space<vmem>>, vector<1x8x32xf32>,
    %cst_78 = arith.constant dense<0xFF800000> : vector<8xf32>
    %159 = vector.multi_reduction <maximumf>, %155, %cst_78 [1] : vector<8x32xf32> to vector<8xf32>
    %160 = vector.shape_cast %159 : vector<8xf32> to vector<8x1xf32>
    %161 = vector.broadcast %160 : vector<8x1xf32> to vector<8x32xf32>
    %162 = arith.subf %155, %161 : vector<8x32xf32>
    %163 = math.exp %162 : vector<8x32xf32>
    %cst_79 = arith.constant dense<0.000000e+00> : vector<8xf32>
    %164 = vector.multi_reduction <add>, %163, %cst_79 [1] : vector<8x32xf32> to vector<8xf32>
    %165 = vector.shape_cast %164 : vector<8xf32> to vector<8x1xf32>
    %166 = math.log %165 : vector<8x1xf32>
    %167 = arith.addf %160, %166 : vector<8x1xf32>
    %168 = arith.mulf %155, %79 : vector<8x32xf32>
    %cst_80 = arith.constant dense<0.000000e+00> : vector<8xf32>
    %169 = vector.multi_reduction <add>, %168, %cst_80 [1] : vector<8x32xf32> to vector<8xf32>
    %170 = vector.shape_cast %169 : vector<8xf32> to vector<8x1xf32>
    %171 = arith.subf %167, %170 : vector<8x1xf32>
    %c0_81 = arith.constant 0 : index
    %c0_82 = arith.constant 0 : index
    %c0_83 = arith.constant 0 : index
    %172 = vector.load %arg19[%c0_81, %c0_82, %c0_83] : memref<1x8x1xf32, #tpu.memory_space<vmem>>, vector<1x8x1xf32>
    %173 = vector.shape_cast %172 : vector<1x8x1xf32> to vector<8x1xf32>
    %174 = vector.shape_cast %171 : vector<8x1xf32> to vector<1x8x1xf32>
    tpu.vector_store %arg19[%c0_81, %c0_82, %c0_83], %174 {strides = array<i32>} : memref<1x8x1xf32, #tpu.memory_space<vmem>>, vector<1x8x1xf32>,
    return
  }
  func.func @transform_0(%arg0: i32) -> (i32, i32, i32) {
    %c0_i32 = arith.constant 0 : i32
    %c0_i32_0 = arith.constant 0 : i32
    %c0_i32_1 = arith.constant 0 : i32
    return %arg0, %c0_i32, %c0_i32_0 : i32, i32, i32
  }
  func.func @transform_1(%arg0: i32) -> (i32, i32, i32) {
    %c0_i32 = arith.constant 0 : i32
    %c0_i32_0 = arith.constant 0 : i32
    %c0_i32_1 = arith.constant 0 : i32
    return %arg0, %c0_i32, %c0_i32_0 : i32, i32, i32
  }
  func.func @transform_2(%arg0: i32) -> (i32, i32, i32) {
    %c0_i32 = arith.constant 0 : i32
    %c0_i32_0 = arith.constant 0 : i32
    %c0_i32_1 = arith.constant 0 : i32
    return %arg0, %c0_i32, %c0_i32_0 : i32, i32, i32
  }
  func.func @transform_3(%arg0: i32) -> (i32, i32, i32) {
    %c0_i32 = arith.constant 0 : i32
    %c0_i32_0 = arith.constant 0 : i32
    %c0_i32_1 = arith.constant 0 : i32
    return %arg0, %c0_i32, %c0_i32_0 : i32, i32, i32
  }
  func.func @transform_4(%arg0: i32) -> (i32, i32) {
    %c0_i32 = arith.constant 0 : i32
    %c0_i32_0 = arith.constant 0 : i32
    %c0_i32_1 = arith.constant 0 : i32
    return %c0_i32, %c0_i32_0 : i32, i32
  }
  func.func @transform_5(%arg0: i32) -> (i32, i32) {
    %c0_i32 = arith.constant 0 : i32
    %c0_i32_0 = arith.constant 0 : i32
    %c0_i32_1 = arith.constant 0 : i32
    return %c0_i32, %c0_i32_0 : i32, i32
  }
  func.func @transform_6(%arg0: i32) -> (i32, i32) {
    %c0_i32 = arith.constant 0 : i32
    %c0_i32_0 = arith.constant 0 : i32
    %c0_i32_1 = arith.constant 0 : i32
    return %c0_i32, %c0_i32_0 : i32, i32
  }
  func.func @transform_7(%arg0: i32) -> (i32, i32) {
    %c0_i32 = arith.constant 0 : i32
    %c0_i32_0 = arith.constant 0 : i32
    %c0_i32_1 = arith.constant 0 : i32
    return %c0_i32, %c0_i32_0 : i32, i32
  }
  func.func @transform_8(%arg0: i32) -> (i32, i32) {
    %c0_i32 = arith.constant 0 : i32
    %c0_i32_0 = arith.constant 0 : i32
    %c0_i32_1 = arith.constant 0 : i32
    return %c0_i32, %c0_i32_0 : i32, i32
  }
  func.func @transform_9(%arg0: i32) -> (i32, i32) {
    %c0_i32 = arith.constant 0 : i32
    %c0_i32_0 = arith.constant 0 : i32
    %c0_i32_1 = arith.constant 0 : i32
    return %c0_i32, %c0_i32_0 : i32, i32
  }
  func.func @transform_10(%arg0: i32) -> (i32, i32) {
    %c0_i32 = arith.constant 0 : i32
    %c0_i32_0 = arith.constant 0 : i32
    %c0_i32_1 = arith.constant 0 : i32
    return %c0_i32, %c0_i32_0 : i32, i32
  }
  func.func @transform_11(%arg0: i32) -> (i32, i32) {
    %c0_i32 = arith.constant 0 : i32
    %c0_i32_0 = arith.constant 0 : i32
    %c0_i32_1 = arith.constant 0 : i32
    return %c0_i32, %c0_i32_0 : i32, i32
  }
  func.func @transform_12(%arg0: i32) -> (i32, i32) {
    %c0_i32 = arith.constant 0 : i32
    %c0_i32_0 = arith.constant 0 : i32
    %c0_i32_1 = arith.constant 0 : i32
    return %c0_i32, %c0_i32_0 : i32, i32
  }
  func.func @transform_13(%arg0: i32) -> (i32, i32) {
    %c0_i32 = arith.constant 0 : i32
    %c0_i32_0 = arith.constant 0 : i32
    %c0_i32_1 = arith.constant 0 : i32
    return %c0_i32, %c0_i32_0 : i32, i32
  }
  func.func @transform_14(%arg0: i32) -> (i32, i32) {
    %c0_i32 = arith.constant 0 : i32
    %c0_i32_0 = arith.constant 0 : i32
    %c0_i32_1 = arith.constant 0 : i32
    return %c0_i32, %c0_i32_0 : i32, i32
  }
  func.func @transform_15(%arg0: i32) -> (i32, i32) {
    %c0_i32 = arith.constant 0 : i32
    %c0_i32_0 = arith.constant 0 : i32
    %c0_i32_1 = arith.constant 0 : i32
    return %c0_i32, %c0_i32_0 : i32, i32
  }
  func.func @transform_16(%arg0: i32) -> (i32, i32) {
    %c0_i32 = arith.constant 0 : i32
    %c0_i32_0 = arith.constant 0 : i32
    %c0_i32_1 = arith.constant 0 : i32
    return %c0_i32, %c0_i32_0 : i32, i32
  }
  func.func @transform_17(%arg0: i32) -> (i32, i32, i32) {
    %c0_i32 = arith.constant 0 : i32
    %c0_i32_0 = arith.constant 0 : i32
    %c0_i32_1 = arith.constant 0 : i32
    return %arg0, %c0_i32, %c0_i32_0 : i32, i32, i32
  }
  func.func @transform_18(%arg0: i32) -> (i32, i32, i32) {
    %c0_i32 = arith.constant 0 : i32
    %c0_i32_0 = arith.constant 0 : i32
    %c0_i32_1 = arith.constant 0 : i32
    return %arg0, %c0_i32, %c0_i32_0 : i32, i32, i32
  }
  func.func @transform_19(%arg0: i32) -> (i32, i32, i32) {
    %c0_i32 = arith.constant 0 : i32
    %c0_i32_0 = arith.constant 0 : i32
    %c0_i32_1 = arith.constant 0 : i32
    return %arg0, %c0_i32, %c0_i32_0 : i32, i32, i32
  }
}

</mosaic_0001>

<llo_original>
// kernel: rlfn_forward.1
$region0: #{rlfn_forward.1}
  #allocation0 [shape = 'u32[]', space=smem, size = 0x4, offset = 0x4, fixed_abs, tag = 'smem constant byte address 0x4 - core index']
  #allocation1 [shape = 'u32[144,128]{1,0:T(1,128)}', space=vmem, size = 0x12000, scoped, tag = 'internal scratch']
  #allocation2 [shape = 'f32[288,36]{1,0:T(8,128)}', space=vmem, size = 0x24000, scoped, tag = 'scratch operand']
  %s0 = inlined_call_operand.vmem [shape: f32[2,328,4], index: 0, kind: input, shape index: {}]
  %s1 = inlined_call_operand.vmem [shape: f32[2,288,1], index: 1, kind: input, shape index: {}]
  %s2 = inlined_call_operand.vmem [shape: s32[2,8,1], index: 2, kind: input, shape index: {}]
  %s3 = inlined_call_operand.vmem [shape: f32[2,8,1], index: 3, kind: input, shape index: {}]
  %s4 = inlined_call_operand.vmem [shape: bf16[36,32], index: 4, kind: input, shape index: {}]
  %s5 = inlined_call_operand.vmem [shape: f32[1,32], index: 5, kind: input, shape index: {}]
  %s6 = inlined_call_operand.vmem [shape: bf16[32,16], index: 6, kind: input, shape index: {}]
  %s7 = inlined_call_operand.vmem [shape: bf16[16,32], index: 7, kind: input, shape index: {}]
  %s8 = inlined_call_operand.vmem [shape: bf16[32,32], index: 8, kind: input, shape index: {}]
  %s9 = inlined_call_operand.vmem [shape: f32[1,32], index: 9, kind: input, shape index: {}]
  %s10 = inlined_call_operand.vmem [shape: bf16[32,32], index: 10, kind: input, shape index: {}]
  %s11 = inlined_call_operand.vmem [shape: f32[1,32], index: 11, kind: input, shape index: {}]
  %s12 = inlined_call_operand.vmem [shape: bf16[32,32], index: 12, kind: input, shape index: {}]
  %s13 = inlined_call_operand.vmem [shape: bf16[32,64], index: 13, kind: input, shape index: {}]
  %s14 = inlined_call_operand.vmem [shape: bf16[32,64], index: 14, kind: input, shape index: {}]
  %s15 = inlined_call_operand.vmem [shape: bf16[32,32], index: 15, kind: input, shape index: {}]
  %s16 = inlined_call_operand.vmem [shape: f32[1,32], index: 16, kind: input, shape index: {}]
  %s17 = inlined_call_operand.hbm [shape: f32[2,8,32], index: 17, kind: output, shape index: {0}]
  %s18 = inlined_call_operand.vmem [shape: f32[2,8,1], index: 18, kind: output, shape index: {1}]
  %s19 = inlined_call_operand.vmem [shape: f32[2,1,8], index: 19, kind: output, shape index: {2}]
  %20 = xla_tuple %s17, %s18, %s19
  %s21 = sld [smem:[#allocation0]]
  $region117: #{rlfn_forward.1} parent=0
    _
  %s23 = ssub.s32 1, %s21
  %s24 = scalar_select 0, %s23, %s21
  $region1: #{rlfn_forward.1} parent=0
    #allocation3 [shape = 'u8[8192]{0}', space=vmem, size = 0x2000, scoped, tag = 'output window, operand 0']
    #allocation4 [shape = 's32[2]{0}', space=sflag, size = 0x8, scoped, tag = 'scoped memory for rlfn_forward.1']
    %25 = vsyncpa [#allocation4], 0
    %s26 = scalar_lea.sflag [#allocation4], 1
    %27 = vsyncpa %s26, 0
    loop: start=0, step=1, limit=4
    $region2: #{rlfn_forward.1} parent=1 // loop_pre_header
      _
    $region3: #{rlfn_forward.1} parent=1 // loop_header
      %s29 = sphi 0, %s33
      %p30 = scmp.ge.s32.totalorder %s29, 4
      %s39 = sphi 0, %s41
      %s42 = sphi 0, %s39
      %s43 = sphi 0, %s42
      %s59 = sphi 0, %s43
      %s65 = sphi 0, %s67
      %s68 = sphi 0, %s65
      %s69 = sphi 0, %s68
      %s85 = sphi 0, %s69
      %s91 = sphi 0, %s93
      %s94 = sphi 0, %s91
      %s95 = sphi 0, %s94
      %s111 = sphi 0, %s95
      %s117 = sphi 0, %s119
      %s120 = sphi 0, %s117
      %s121 = sphi 0, %s120
      %s137 = sphi 0, %s121
      %s141 = sphi 0, %s141
      %s143 = sphi 0, %s141
      %s144 = sphi 0, %s143
      %s158 = sphi 0, %s144
      %s162 = sphi 0, %s162
      %s164 = sphi 0, %s162
      %s165 = sphi 0, %s164
      %s179 = sphi 0, %s165
      %s183 = sphi 0, %s183
      %s185 = sphi 0, %s183
      %s186 = sphi 0, %s185
      %s200 = sphi 0, %s186
      %s204 = sphi 0, %s204
      %s206 = sphi 0, %s204
      %s207 = sphi 0, %s206
      %s221 = sphi 0, %s207
      %s225 = sphi 0, %s225
      %s227 = sphi 0, %s225
      %s228 = sphi 0, %s227
      %s242 = sphi 0, %s228
      %s246 = sphi 0, %s246
      %s248 = sphi 0, %s246
      %s249 = sphi 0, %s248
      %s263 = sphi 0, %s249
      %s267 = sphi 0, %s267
      %s269 = sphi 0, %s267
      %s270 = sphi 0, %s269
      %s284 = sphi 0, %s270
      %s288 = sphi 0, %s288
      %s290 = sphi 0, %s288
      %s291 = sphi 0, %s290
      %s305 = sphi 0, %s291
      %s309 = sphi 0, %s309
      %s311 = sphi 0, %s309
      %s312 = sphi 0, %s311
      %s326 = sphi 0, %s312
      %s330 = sphi 0, %s330
      %s332 = sphi 0, %s330
      %s333 = sphi 0, %s332
      %s347 = sphi 0, %s333
      %s351 = sphi 0, %s351
      %s353 = sphi 0, %s351
      %s354 = sphi 0, %s353
      %s368 = sphi 0, %s354
      %s372 = sphi 0, %s372
      %s374 = sphi 0, %s372
      %s375 = sphi 0, %s374
      %s389 = sphi 0, %s375
      %s393 = sphi 0, %s393
      %s395 = sphi 0, %s393
      %s396 = sphi 0, %s395
      %s410 = sphi 0, %s396
      %s416 = sphi 0, %s418
      %s419 = sphi 0, %s416
      %s420 = sphi 0, %s419
      %s436 = sphi 0, %s420
      %s442 = sphi 0, %s444
      %s445 = sphi 0, %s442
      %s446 = sphi 0, %s445
      %s462 = sphi 0, %s446
      %s468 = sphi 0, %s470
      %s471 = sphi 0, %s468
      %s472 = sphi 0, %s471
      %s488 = sphi 0, %s472
    $region4: #{rlfn_forward.1} parent=1 // loop_header_branch
      %32 = sbr.rel (%p30) target = $region8
    $region5: #{rlfn_forward.1} parent=1 // loop_body
      %s34 = ssub.s32 %s29, 1
      %s35 = ssub.s32 %s29, 2
      %s36 = sadd.s32 %s29, 1
      %s37 = ssub.s32 %s29, %s36
      %p38 = scmp.eq.s32.totalorder %s37, 0
      %s40 = sadd.s32 %s39, 1
      %s41 = scalar_select %p38, %s39, %s40
      %p44 = pneg %p38
      %p45 = scmp.eq.s32.totalorder %s29, 1
      %p46 = por %p44, %p45
      %p47 = scmp.ne.s32.totalorder %s39, %s42
      %p48 = scmp.eq.s32.totalorder %s29, 0
      %p49 = por %p47, %p48
      %p50 = scmp.ne.s32.totalorder %s39, %s42
      %p51 = scmp.eq.s32.totalorder %s34, 1
      %p52 = por %p50, %p51
      %p53 = scmp.ne.s32.totalorder %s42, %s43
      %p54 = scmp.eq.s32.totalorder %s34, 0
      %p55 = por %p53, %p54
      %p56 = scmp.ne.s32.totalorder %s42, %s43
      %p57 = scmp.eq.s32.totalorder %s35, 1
      %p58 = por %p56, %p57
      %p60 = scmp.ne.s32.totalorder %s43, %s59
      %p61 = scmp.eq.s32.totalorder %s35, 0
      %p62 = por %p60, %p61
      %s63 = ssub.s32 %s29, %s36
      %p64 = scmp.eq.s32.totalorder %s63, 0
      %s66 = sadd.s32 %s65, 1
      %s67 = scalar_select %p64, %s65, %s66
      %p70 = pneg %p64
      %p71 = scmp.eq.s32.totalorder %s29, 1
      %p72 = por %p70, %p71
      %p73 = scmp.ne.s32.totalorder %s65, %s68
      %p74 = scmp.eq.s32.totalorder %s29, 0
      %p75 = por %p73, %p74
      %p76 = scmp.ne.s32.totalorder %s65, %s68
      %p77 = scmp.eq.s32.totalorder %s34, 1
      %p78 = por %p76, %p77
      %p79 = scmp.ne.s32.totalorder %s68, %s69
      %p80 = scmp.eq.s32.totalorder %s34, 0
      %p81 = por %p79, %p80
      %p82 = scmp.ne.s32.totalorder %s68, %s69
      %p83 = scmp.eq.s32.totalorder %s35, 1
      %p84 = por %p82, %p83
      %p86 = scmp.ne.s32.totalorder %s69, %s85
      %p87 = scmp.eq.s32.totalorder %s35, 0
      %p88 = por %p86, %p87
      %s89 = ssub.s32 %s29, %s36
      %p90 = scmp.eq.s32.totalorder %s89, 0
      %s92 = sadd.s32 %s91, 1
      %s93 = scalar_select %p90, %s91, %s92
      %p96 = pneg %p90
      %p97 = scmp.eq.s32.totalorder %s29, 1
      %p98 = por %p96, %p97
      %p99 = scmp.ne.s32.totalorder %s91, %s94
      %p100 = scmp.eq.s32.totalorder %s29, 0
      %p101 = por %p99, %p100
      %p102 = scmp.ne.s32.totalorder %s91, %s94
      %p103 = scmp.eq.s32.totalorder %s34, 1
      %p104 = por %p102, %p103
      %p105 = scmp.ne.s32.totalorder %s94, %s95
      %p106 = scmp.eq.s32.totalorder %s34, 0
      %p107 = por %p105, %p106
      %p108 = scmp.ne.s32.totalorder %s94, %s95
      %p109 = scmp.eq.s32.totalorder %s35, 1
      %p110 = por %p108, %p109
      %p112 = scmp.ne.s32.totalorder %s95, %s111
      %p113 = scmp.eq.s32.totalorder %s35, 0
      %p114 = por %p112, %p113
      %s115 = ssub.s32 %s29, %s36
      %p116 = scmp.eq.s32.totalorder %s115, 0
      %s118 = sadd.s32 %s117, 1
      %s119 = scalar_select %p116, %s117, %s118
      %p122 = pneg %p116
      %p123 = scmp.eq.s32.totalorder %s29, 1
      %p124 = por %p122, %p123
      %p125 = scmp.ne.s32.totalorder %s117, %s120
      %p126 = scmp.eq.s32.totalorder %s29, 0
      %p127 = por %p125, %p126
      %p128 = scmp.ne.s32.totalorder %s117, %s120
      %p129 = scmp.eq.s32.totalorder %s34, 1
      %p130 = por %p128, %p129
      %p131 = scmp.ne.s32.totalorder %s120, %s121
      %p132 = scmp.eq.s32.totalorder %s34, 0
      %p133 = por %p131, %p132
      %p134 = scmp.ne.s32.totalorder %s120, %s121
      %p135 = scmp.eq.s32.totalorder %s35, 1
      %p136 = por %p134, %p135
      %p138 = scmp.ne.s32.totalorder %s121, %s137
      %p139 = scmp.eq.s32.totalorder %s35, 0
      %p140 = por %p138, %p139
      %s142 = sadd.s32 %s141, 1
      %p145 = scmp.eq.s32.totalorder %s29, 1
      %p146 = scmp.ne.s32.totalorder %s141, %s143
      %p147 = scmp.eq.s32.totalorder %s29, 0
      %p148 = por %p146, %p147
      %p149 = scmp.ne.s32.totalorder %s141, %s143
      %p150 = scmp.eq.s32.totalorder %s34, 1
      %p151 = por %p149, %p150
      %p152 = scmp.ne.s32.totalorder %s143, %s144
      %p153 = scmp.eq.s32.totalorder %s34, 0
      %p154 = por %p152, %p153
      %p155 = scmp.ne.s32.totalorder %s143, %s144
      %p156 = scmp.eq.s32.totalorder %s35, 1
      %p157 = por %p155, %p156
      %p159 = scmp.ne.s32.totalorder %s144, %s158
      %p160 = scmp.eq.s32.totalorder %s35, 0
      %p161 = por %p159, %p160
      %s163 = sadd.s32 %s162, 1
      %p166 = scmp.eq.s32.totalorder %s29, 1
      %p167 = scmp.ne.s32.totalorder %s162, %s164
      %p168 = scmp.eq.s32.totalorder %s29, 0
      %p169 = por %p167, %p168
      %p170 = scmp.ne.s32.totalorder %s162, %s164
      %p171 = scmp.eq.s32.totalorder %s34, 1
      %p172 = por %p170, %p171
      %p173 = scmp.ne.s32.totalorder %s164, %s165
      %p174 = scmp.eq.s32.totalorder %s34, 0
      %p175 = por %p173, %p174
      %p176 = scmp.ne.s32.totalorder %s164, %s165
      %p177 = scmp.eq.s32.totalorder %s35, 1
      %p178 = por %p176, %p177
      %p180 = scmp.ne.s32.totalorder %s165, %s179
      %p181 = scmp.eq.s32.totalorder %s35, 0
      %p182 = por %p180, %p181
      %s184 = sadd.s32 %s183, 1
      %p187 = scmp.eq.s32.totalorder %s29, 1
      %p188 = scmp.ne.s32.totalorder %s183, %s185
      %p189 = scmp.eq.s32.totalorder %s29, 0
      %p190 = por %p188, %p189
      %p191 = scmp.ne.s32.totalorder %s183, %s185
      %p192 = scmp.eq.s32.totalorder %s34, 1
      %p193 = por %p191, %p192
      %p194 = scmp.ne.s32.totalorder %s185, %s186
      %p195 = scmp.eq.s32.totalorder %s34, 0
      %p196 = por %p194, %p195
      %p197 = scmp.ne.s32.totalorder %s185, %s186
      %p198 = scmp.eq.s32.totalorder %s35, 1
      %p199 = por %p197, %p198
      %p201 = scmp.ne.s32.totalorder %s186, %s200
      %p202 = scmp.eq.s32.totalorder %s35, 0
      %p203 = por %p201, %p202
      %s205 = sadd.s32 %s204, 1
      %p208 = scmp.eq.s32.totalorder %s29, 1
      %p209 = scmp.ne.s32.totalorder %s204, %s206
      %p210 = scmp.eq.s32.totalorder %s29, 0
      %p211 = por %p209, %p210
      %p212 = scmp.ne.s32.totalorder %s204, %s206
      %p213 = scmp.eq.s32.totalorder %s34, 1
      %p214 = por %p212, %p213
      %p215 = scmp.ne.s32.totalorder %s206, %s207
      %p216 = scmp.eq.s32.totalorder %s34, 0
      %p217 = por %p215, %p216
      %p218 = scmp.ne.s32.totalorder %s206, %s207
      %p219 = scmp.eq.s32.totalorder %s35, 1
      %p220 = por %p218, %p219
      %p222 = scmp.ne.s32.totalorder %s207, %s221
      %p223 = scmp.eq.s32.totalorder %s35, 0
      %p224 = por %p222, %p223
      %s226 = sadd.s32 %s225, 1
      %p229 = scmp.eq.s32.totalorder %s29, 1
      %p230 = scmp.ne.s32.totalorder %s225, %s227
      %p231 = scmp.eq.s32.totalorder %s29, 0
      %p232 = por %p230, %p231
      %p233 = scmp.ne.s32.totalorder %s225, %s227
      %p234 = scmp.eq.s32.totalorder %s34, 1
      %p235 = por %p233, %p234
      %p236 = scmp.ne.s32.totalorder %s227, %s228
      %p237 = scmp.eq.s32.totalorder %s34, 0
      %p238 = por %p236, %p237
      %p239 = scmp.ne.s32.totalorder %s227, %s228
      %p240 = scmp.eq.s32.totalorder %s35, 1
      %p241 = por %p239, %p240
      %p243 = scmp.ne.s32.totalorder %s228, %s242
      %p244 = scmp.eq.s32.totalorder %s35, 0
      %p245 = por %p243, %p244
      %s247 = sadd.s32 %s246, 1
      %p250 = scmp.eq.s32.totalorder %s29, 1
      %p251 = scmp.ne.s32.totalorder %s246, %s248
      %p252 = scmp.eq.s32.totalorder %s29, 0
      %p253 = por %p251, %p252
      %p254 = scmp.ne.s32.totalorder %s246, %s248
      %p255 = scmp.eq.s32.totalorder %s34, 1
      %p256 = por %p254, %p255
      %p257 = scmp.ne.s32.totalorder %s248, %s249
      %p258 = scmp.eq.s32.totalorder %s34, 0
      %p259 = por %p257, %p258
      %p260 = scmp.ne.s32.totalorder %s248, %s249
      %p261 = scmp.eq.s32.totalorder %s35, 1
      %p262 = por %p260, %p261
      %p264 = scmp.ne.s32.totalorder %s249, %s263
      %p265 = scmp.eq.s32.totalorder %s35, 0
      %p266 = por %p264, %p265
      %s268 = sadd.s32 %s267, 1
      %p271 = scmp.eq.s32.totalorder %s29, 1
      %p272 = scmp.ne.s32.totalorder %s267, %s269
      %p273 = scmp.eq.s32.totalorder %s29, 0
      %p274 = por %p272, %p273
      %p275 = scmp.ne.s32.totalorder %s267, %s269
      %p276 = scmp.eq.s32.totalorder %s34, 1
      %p277 = por %p275, %p276
      %p278 = scmp.ne.s32.totalorder %s269, %s270
      %p279 = scmp.eq.s32.totalorder %s34, 0
      %p280 = por %p278, %p279
      %p281 = scmp.ne.s32.totalorder %s269, %s270
      %p282 = scmp.eq.s32.totalorder %s35, 1
      %p283 = por %p281, %p282
      %p285 = scmp.ne.s32.totalorder %s270, %s284
      %p286 = scmp.eq.s32.totalorder %s35, 0
      %p287 = por %p285, %p286
      %s289 = sadd.s32 %s288, 1
      %p292 = scmp.eq.s32.totalorder %s29, 1
      %p293 = scmp.ne.s32.totalorder %s288, %s290
      %p294 = scmp.eq.s32.totalorder %s29, 0
      %p295 = por %p293, %p294
      %p296 = scmp.ne.s32.totalorder %s288, %s290
      %p297 = scmp.eq.s32.totalorder %s34, 1
      %p298 = por %p296, %p297
      %p299 = scmp.ne.s32.totalorder %s290, %s291
      %p300 = scmp.eq.s32.totalorder %s34, 0
      %p301 = por %p299, %p300
      %p302 = scmp.ne.s32.totalorder %s290, %s291
      %p303 = scmp.eq.s32.totalorder %s35, 1
      %p304 = por %p302, %p303
      %p306 = scmp.ne.s32.totalorder %s291, %s305
      %p307 = scmp.eq.s32.totalorder %s35, 0
      %p308 = por %p306, %p307
      %s310 = sadd.s32 %s309, 1
      %p313 = scmp.eq.s32.totalorder %s29, 1
      %p314 = scmp.ne.s32.totalorder %s309, %s311
      %p315 = scmp.eq.s32.totalorder %s29, 0
      %p316 = por %p314, %p315
      %p317 = scmp.ne.s32.totalorder %s309, %s311
      %p318 = scmp.eq.s32.totalorder %s34, 1
      %p319 = por %p317, %p318
      %p320 = scmp.ne.s32.totalorder %s311, %s312
      %p321 = scmp.eq.s32.totalorder %s34, 0
      %p322 = por %p320, %p321
      %p323 = scmp.ne.s32.totalorder %s311, %s312
      %p324 = scmp.eq.s32.totalorder %s35, 1
      %p325 = por %p323, %p324
      %p327 = scmp.ne.s32.totalorder %s312, %s326
      %p328 = scmp.eq.s32.totalorder %s35, 0
      %p329 = por %p327, %p328
      %s331 = sadd.s32 %s330, 1
      %p334 = scmp.eq.s32.totalorder %s29, 1
      %p335 = scmp.ne.s32.totalorder %s330, %s332
      %p336 = scmp.eq.s32.totalorder %s29, 0
      %p337 = por %p335, %p336
      %p338 = scmp.ne.s32.totalorder %s330, %s332
      %p339 = scmp.eq.s32.totalorder %s34, 1
      %p340 = por %p338, %p339
      %p341 = scmp.ne.s32.totalorder %s332, %s333
      %p342 = scmp.eq.s32.totalorder %s34, 0
      %p343 = por %p341, %p342
      %p344 = scmp.ne.s32.totalorder %s332, %s333
      %p345 = scmp.eq.s32.totalorder %s35, 1
      %p346 = por %p344, %p345
      %p348 = scmp.ne.s32.totalorder %s333, %s347
      %p349 = scmp.eq.s32.totalorder %s35, 0
      %p350 = por %p348, %p349
      %s352 = sadd.s32 %s351, 1
      %p355 = scmp.eq.s32.totalorder %s29, 1
      %p356 = scmp.ne.s32.totalorder %s351, %s353
      %p357 = scmp.eq.s32.totalorder %s29, 0
      %p358 = por %p356, %p357
      %p359 = scmp.ne.s32.totalorder %s351, %s353
      %p360 = scmp.eq.s32.totalorder %s34, 1
      %p361 = por %p359, %p360
      %p362 = scmp.ne.s32.totalorder %s353, %s354
      %p363 = scmp.eq.s32.totalorder %s34, 0
      %p364 = por %p362, %p363
      %p365 = scmp.ne.s32.totalorder %s353, %s354
      %p366 = scmp.eq.s32.totalorder %s35, 1
      %p367 = por %p365, %p366
      %p369 = scmp.ne.s32.totalorder %s354, %s368
      %p370 = scmp.eq.s32.totalorder %s35, 0
      %p371 = por %p369, %p370
      %s373 = sadd.s32 %s372, 1
      %p376 = scmp.eq.s32.totalorder %s29, 1
      %p377 = scmp.ne.s32.totalorder %s372, %s374
      %p378 = scmp.eq.s32.totalorder %s29, 0
      %p379 = por %p377, %p378
      %p380 = scmp.ne.s32.totalorder %s372, %s374
      %p381 = scmp.eq.s32.totalorder %s34, 1
      %p382 = por %p380, %p381
      %p383 = scmp.ne.s32.totalorder %s374, %s375
      %p384 = scmp.eq.s32.totalorder %s34, 0
      %p385 = por %p383, %p384
      %p386 = scmp.ne.s32.totalorder %s374, %s375
      %p387 = scmp.eq.s32.totalorder %s35, 1
      %p388 = por %p386, %p387
      %p390 = scmp.ne.s32.totalorder %s375, %s389
      %p391 = scmp.eq.s32.totalorder %s35, 0
      %p392 = por %p390, %p391
      %s394 = sadd.s32 %s393, 1
      %p397 = scmp.eq.s32.totalorder %s29, 1
      %p398 = scmp.ne.s32.totalorder %s393, %s395
      %p399 = scmp.eq.s32.totalorder %s29, 0
      %p400 = por %p398, %p399
      %p401 = scmp.ne.s32.totalorder %s393, %s395
      %p402 = scmp.eq.s32.totalorder %s34, 1
      %p403 = por %p401, %p402
      %p404 = scmp.ne.s32.totalorder %s395, %s396
      %p405 = scmp.eq.s32.totalorder %s34, 0
      %p406 = por %p404, %p405
      %p407 = scmp.ne.s32.totalorder %s395, %s396
      %p408 = scmp.eq.s32.totalorder %s35, 1
      %p409 = por %p407, %p408
      %p411 = scmp.ne.s32.totalorder %s396, %s410
      %p412 = scmp.eq.s32.totalorder %s35, 0
      %p413 = por %p411, %p412
      %s414 = ssub.s32 %s29, %s36
      %p415 = scmp.eq.s32.totalorder %s414, 0
      %s417 = sadd.s32 %s416, 1
      %s418 = scalar_select %p415, %s416, %s417
      %p421 = pneg %p415
      %p422 = scmp.eq.s32.totalorder %s29, 1
      %p423 = por %p421, %p422
      %p424 = scmp.ne.s32.totalorder %s416, %s419
      %p425 = scmp.eq.s32.totalorder %s29, 0
      %p426 = por %p424, %p425
      %p427 = scmp.ne.s32.totalorder %s416, %s419
      %p428 = scmp.eq.s32.totalorder %s34, 1
      %p429 = por %p427, %p428
      %p430 = scmp.ne.s32.totalorder %s419, %s420
      %p431 = scmp.eq.s32.totalorder %s34, 0
      %p432 = por %p430, %p431
      %p433 = scmp.ne.s32.totalorder %s419, %s420
      %p434 = scmp.eq.s32.totalorder %s35, 1
      %p435 = por %p433, %p434
      %p437 = scmp.ne.s32.totalorder %s420, %s436
      %p438 = scmp.eq.s32.totalorder %s35, 0
      %p439 = por %p437, %p438
      %s440 = ssub.s32 %s29, %s36
      %p441 = scmp.eq.s32.totalorder %s440, 0
      %s443 = sadd.s32 %s442, 1
      %s444 = scalar_select %p441, %s442, %s443
      %p447 = pneg %p441
      %p448 = scmp.eq.s32.totalorder %s29, 1
      %p449 = por %p447, %p448
      %p450 = scmp.ne.s32.totalorder %s442, %s445
      %p451 = scmp.eq.s32.totalorder %s29, 0
      %p452 = por %p450, %p451
      %p453 = scmp.ne.s32.totalorder %s442, %s445
      %p454 = scmp.eq.s32.totalorder %s34, 1
      %p455 = por %p453, %p454
      %p456 = scmp.ne.s32.totalorder %s445, %s446
      %p457 = scmp.eq.s32.totalorder %s34, 0
      %p458 = por %p456, %p457
      %p459 = scmp.ne.s32.totalorder %s445, %s446
      %p460 = scmp.eq.s32.totalorder %s35, 1
      %p461 = por %p459, %p460
      %p463 = scmp.ne.s32.totalorder %s446, %s462
      %p464 = scmp.eq.s32.totalorder %s35, 0
      %p465 = por %p463, %p464
      %s466 = ssub.s32 %s29, %s36
      %p467 = scmp.eq.s32.totalorder %s466, 0
      %s469 = sadd.s32 %s468, 1
      %s470 = scalar_select %p467, %s468, %s469
      %p473 = pneg %p467
      %p474 = scmp.eq.s32.totalorder %s29, 1
      %p475 = por %p473, %p474
      %p476 = scmp.ne.s32.totalorder %s468, %s471
      %p477 = scmp.eq.s32.totalorder %s29, 0
      %p478 = por %p476, %p477
      %p479 = scmp.ne.s32.totalorder %s468, %s471
      %p480 = scmp.eq.s32.totalorder %s34, 1
      %p481 = por %p479, %p480
      %p482 = scmp.ne.s32.totalorder %s471, %s472
      %p483 = scmp.eq.s32.totalorder %s34, 0
      %p484 = por %p482, %p483
      %p485 = scmp.ne.s32.totalorder %s471, %s472
      %p486 = scmp.eq.s32.totalorder %s35, 1
      %p487 = por %p485, %p486
      %p489 = scmp.ne.s32.totalorder %s472, %s488
      %p490 = scmp.eq.s32.totalorder %s35, 0
      %p491 = por %p489, %p490
      %p492 = scmp.le.s32.totalorder 1, %s29
      %p493 = scmp.lt.s32.totalorder %s29, 3
      %p494 = pnand %p492, %p493
      %p495 = pneg %p494
      // Predicated region
      $region9: #{rlfn_forward.1} parent=5 // pred_check
        _
      $region10: #{rlfn_forward.1} parent=5 // pred_check_branch
        %497 = sbr.rel (%p494) target = $region12
      $region11: #{rlfn_forward.1} parent=5 // pred_region
        %s498 = ssub.s32 %s29, 1
        // Predicated region
        $region13: #{rlfn_forward.1} parent=11 // pred_check
          %p499 = pneg %p154
        $region14: #{rlfn_forward.1} parent=11 // pred_check_branch
          %501 = sbr.rel (%p499) target = $region16
        $region15: #{rlfn_forward.1} parent=11 // pred_region
          _
        $region16: #{rlfn_forward.1} parent=11 // pred_fallthru
          _
        // Predicated region
        $region17: #{rlfn_forward.1} parent=11 // pred_check
          %p502 = pneg %p175
        $region18: #{rlfn_forward.1} parent=11 // pred_check_branch
          %504 = sbr.rel (%p502) target = $region20
        $region19: #{rlfn_forward.1} parent=11 // pred_region
          _
        $region20: #{rlfn_forward.1} parent=11 // pred_fallthru
          _
        // Predicated region
        $region21: #{rlfn_forward.1} parent=11 // pred_check
          %p505 = pneg %p196
        $region22: #{rlfn_forward.1} parent=11 // pred_check_branch
          %507 = sbr.rel (%p505) target = $region24
        $region23: #{rlfn_forward.1} parent=11 // pred_region
          _
        $region24: #{rlfn_forward.1} parent=11 // pred_fallthru
          _
        // Predicated region
        $region25: #{rlfn_forward.1} parent=11 // pred_check
          %p508 = pneg %p217
        $region26: #{rlfn_forward.1} parent=11 // pred_check_branch
          %510 = sbr.rel (%p508) target = $region28
        $region27: #{rlfn_forward.1} parent=11 // pred_region
          _
        $region28: #{rlfn_forward.1} parent=11 // pred_fallthru
          _
        // Predicated region
        $region29: #{rlfn_forward.1} parent=11 // pred_check
          %p511 = pneg %p238
        $region30: #{rlfn_forward.1} parent=11 // pred_check_branch
          %513 = sbr.rel (%p511) target = $region32
        $region31: #{rlfn_forward.1} parent=11 // pred_region
          _
        $region32: #{rlfn_forward.1} parent=11 // pred_fallthru
          _
        // Predicated region
        $region33: #{rlfn_forward.1} parent=11 // pred_check
          %p514 = pneg %p259
        $region34: #{rlfn_forward.1} parent=11 // pred_check_branch
          %516 = sbr.rel (%p514) target = $region36
        $region35: #{rlfn_forward.1} parent=11 // pred_region
          _
        $region36: #{rlfn_forward.1} parent=11 // pred_fallthru
          _
        // Predicated region
        $region37: #{rlfn_forward.1} parent=11 // pred_check
          %p517 = pneg %p280
        $region38: #{rlfn_forward.1} parent=11 // pred_check_branch
          %519 = sbr.rel (%p517) target = $region40
        $region39: #{rlfn_forward.1} parent=11 // pred_region
          _
        $region40: #{rlfn_forward.1} parent=11 // pred_fallthru
          _
        // Predicated region
        $region41: #{rlfn_forward.1} parent=11 // pred_check
          %p520 = pneg %p301
        $region42: #{rlfn_forward.1} parent=11 // pred_check_branch
          %522 = sbr.rel (%p520) target = $region44
        $region43: #{rlfn_forward.1} parent=11 // pred_region
          _
        $region44: #{rlfn_forward.1} parent=11 // pred_fallthru
          _
        // Predicated region
        $region45: #{rlfn_forward.1} parent=11 // pred_check
          %p523 = pneg %p322
        $region46: #{rlfn_forward.1} parent=11 // pred_check_branch
          %525 = sbr.rel (%p523) target = $region48
        $region47: #{rlfn_forward.1} parent=11 // pred_region
          _
        $region48: #{rlfn_forward.1} parent=11 // pred_fallthru
          _
        // Predicated region
        $region49: #{rlfn_forward.1} parent=11 // pred_check
          %p526 = pneg %p343
        $region50: #{rlfn_forward.1} parent=11 // pred_check_branch
          %528 = sbr.rel (%p526) target = $region52
        $region51: #{rlfn_forward.1} parent=11 // pred_region
          _
        $region52: #{rlfn_forward.1} parent=11 // pred_fallthru
          _
        // Predicated region
        $region53: #{rlfn_forward.1} parent=11 // pred_check
          %p529 = pneg %p364
        $region54: #{rlfn_forward.1} parent=11 // pred_check_branch
          %531 = sbr.rel (%p529) target = $region56
        $region55: #{rlfn_forward.1} parent=11 // pred_region
          _
        $region56: #{rlfn_forward.1} parent=11 // pred_fallthru
          _
        // Predicated region
        $region57: #{rlfn_forward.1} parent=11 // pred_check
          %p532 = pneg %p385
        $region58: #{rlfn_forward.1} parent=11 // pred_check_branch
          %534 = sbr.rel (%p532) target = $region60
        $region59: #{rlfn_forward.1} parent=11 // pred_region
          _
        $region60: #{rlfn_forward.1} parent=11 // pred_fallthru
          _
        // Predicated region
        $region61: #{rlfn_forward.1} parent=11 // pred_check
          %p535 = pneg %p406
        $region62: #{rlfn_forward.1} parent=11 // pred_check_branch
          %537 = sbr.rel (%p535) target = $region64
        $region63: #{rlfn_forward.1} parent=11 // pred_region
          _
        $region64: #{rlfn_forward.1} parent=11 // pred_fallthru
          _
      $region12: #{rlfn_forward.1} parent=5 // pred_fallthru
        _
      %p538 = scmp.lt.s32.totalorder %s29, 2
      // Predicated region
      $region65: #{rlfn_forward.1} parent=5 // pred_check
        %p539 = pneg %p538
      $region66: #{rlfn_forward.1} parent=5 // pred_check_branch
        %541 = sbr.rel (%p539) target = $region68
      $region67: #{rlfn_forward.1} parent=5 // pred_region
        // Predicated region
        $region69: #{rlfn_forward.1} parent=67 // pred_check
          %p542 = pneg %p49
        $region70: #{rlfn_forward.1} parent=67 // pred_check_branch
          %544 = sbr.rel (%p542) target = $region72
        $region71: #{rlfn_forward.1} parent=67 // pred_region
          %p545 = scmp.lt.s32.totalorder %s29, 1
          %s546 = scalar_select %p545, %s29, 1
          %s547 = smul.addr %s546, 41
          %s548 = smul.addr %s547, 8
          %s549 = scalar_lea.vmem %s0, %s548
        $region72: #{rlfn_forward.1} parent=67 // pred_fallthru
          _
        // Predicated region
        $region73: #{rlfn_forward.1} parent=67 // pred_check
          %p550 = pneg %p75
        $region74: #{rlfn_forward.1} parent=67 // pred_check_branch
          %552 = sbr.rel (%p550) target = $region76
        $region75: #{rlfn_forward.1} parent=67 // pred_region
          %p553 = scmp.lt.s32.totalorder %s29, 1
          %s554 = scalar_select %p553, %s29, 1
          %s555 = smul.addr %s554, 36
          %s556 = smul.addr %s555, 8
          %s557 = scalar_lea.vmem %s1, %s556
        $region76: #{rlfn_forward.1} parent=67 // pred_fallthru
          _
        // Predicated region
        $region77: #{rlfn_forward.1} parent=67 // pred_check
          %p558 = pneg %p101
        $region78: #{rlfn_forward.1} parent=67 // pred_check_branch
          %560 = sbr.rel (%p558) target = $region80
        $region79: #{rlfn_forward.1} parent=67 // pred_region
          %p561 = scmp.lt.s32.totalorder %s29, 1
          %s562 = scalar_select %p561, %s29, 1
          %s563 = smul.addr %s562, 8
          %s564 = scalar_lea.vmem %s2, %s563
        $region80: #{rlfn_forward.1} parent=67 // pred_fallthru
          _
        // Predicated region
        $region81: #{rlfn_forward.1} parent=67 // pred_check
          %p565 = pneg %p127
        $region82: #{rlfn_forward.1} parent=67 // pred_check_branch
          %567 = sbr.rel (%p565) target = $region84
        $region83: #{rlfn_forward.1} parent=67 // pred_region
          %p568 = scmp.lt.s32.totalorder %s29, 1
          %s569 = scalar_select %p568, %s29, 1
          %s570 = smul.addr %s569, 8
          %s571 = scalar_lea.vmem %s3, %s570
        $region84: #{rlfn_forward.1} parent=67 // pred_fallthru
          _
      $region68: #{rlfn_forward.1} parent=5 // pred_fallthru
        _
      %p572 = scmp.le.s32.totalorder 1, %s29
      %p573 = scmp.lt.s32.totalorder %s29, 3
      %p574 = pnand %p572, %p573
      %p575 = pneg %p574
      // Predicated region
      $region85: #{rlfn_forward.1} parent=5 // pred_check
        _
      $region86: #{rlfn_forward.1} parent=5 // pred_check_branch
        %577 = sbr.rel (%p574) target = $region88
      $region87: #{rlfn_forward.1} parent=5 // pred_region
        %s578 = ssub.s32 %s29, 1
        %p579 = scmp.lt.s32.totalorder %s34, 1
        %s580 = scalar_select %p579, %s34, 1
        %s581 = smul.addr %s580, 41
        %s582 = smul.addr %s581, 8
        %s583 = scalar_lea.vmem %s0, %s582
        %p584 = pneg %p55
        %p585 = pneg %p52
        %p586 = scmp.lt.s32.totalorder %s34, 1
        %s587 = scalar_select %p586, %s34, 1
        %s588 = smul.addr %s587, 36
        %s589 = smul.addr %s588, 8
        %s590 = scalar_lea.vmem %s1, %s589
        %p591 = pneg %p81
        %p592 = pneg %p78
        %p593 = scmp.lt.s32.totalorder %s34, 1
        %s594 = scalar_select %p593, %s34, 1
        %s595 = smul.addr %s594, 8
        %s596 = scalar_lea.vmem %s2, %s595
        %p597 = pneg %p107
        %p598 = pneg %p104
        %p599 = scmp.lt.s32.totalorder %s34, 1
        %s600 = scalar_select %p599, %s34, 1
        %s601 = smul.addr %s600, 8
        %s602 = scalar_lea.vmem %s3, %s601
        %p603 = pneg %p133
        %p604 = pneg %p130
        %p605 = pneg %p154
        %p606 = pneg %p151
        %p607 = pneg %p175
        %p608 = pneg %p172
        %p609 = pneg %p196
        %p610 = pneg %p193
        %p611 = pneg %p217
        %p612 = pneg %p214
        %p613 = pneg %p238
        %p614 = pneg %p235
        %p615 = pneg %p259
        %p616 = pneg %p256
        %p617 = pneg %p280
        %p618 = pneg %p277
        %p619 = pneg %p301
        %p620 = pneg %p298
        %p621 = pneg %p322
        %p622 = pneg %p319
        %p623 = pneg %p343
        %p624 = pneg %p340
        %p625 = pneg %p364
        %p626 = pneg %p361
        %p627 = pneg %p385
        %p628 = pneg %p382
        %p629 = pneg %p406
        %p630 = pneg %p403
        %p631 = pneg %p432
        %p632 = pneg %p429
        %s633 = sand.u32 %s419, 1
        %s634 = scalar_lea.sflag [#allocation4], %s633
        %s635 = sand.u32 %s419, 1
        %s636 = smul.addr %s635, 8
        %s637 = scalar_lea.vmem [#allocation3], %s636
        %p638 = pneg %p458
        %p639 = pneg %p455
        %p640 = scmp.lt.s32.totalorder %s34, 1
        %s641 = scalar_select %p640, %s34, 1
        %s642 = smul.addr %s641, 8
        %s643 = scalar_lea.vmem %s18, %s642
        %p644 = pneg %p484
        %p645 = pneg %p481
        %p646 = scmp.lt.s32.totalorder %s34, 1
        %s647 = scalar_select %p646, %s34, 1
        %s648 = scalar_lea.vmem %s19, %s647
        %p649 = scmp.lt.s32.totalorder %s34, 1
        %s650 = scalar_select %p649, %s34, 1
        %s651 = smul.addr %s650, 41
        %s652 = smul.addr %s651, 8
        %s653 = scalar_lea.vmem %s0, %s652
        %p654 = scmp.lt.s32.totalorder %s34, 1
        %s655 = scalar_select %p654, %s34, 1
        %s656 = smul.addr %s655, 36
        %s657 = smul.addr %s656, 8
        %s658 = scalar_lea.vmem %s1, %s657
        %p659 = scmp.lt.s32.totalorder %s34, 1
        %s660 = scalar_select %p659, %s34, 1
        %s661 = smul.addr %s660, 8
        %s662 = scalar_lea.vmem %s2, %s661
        %p663 = scmp.lt.s32.totalorder %s34, 1
        %s664 = scalar_select %p663, %s34, 1
        %s665 = smul.addr %s664, 8
        %s666 = scalar_lea.vmem %s3, %s665
        %p667 = scmp.lt.s32.totalorder %s34, 1
        %s668 = scalar_select %p667, %s34, 1
        %s669 = smul.addr %s668, 8
        %s670 = scalar_lea.vmem %s18, %s669
        %p671 = scmp.lt.s32.totalorder %s34, 1
        %s672 = scalar_select %p671, %s34, 1
        %s673 = scalar_lea.vmem %s19, %s672
        %v675 = vld [vmem:[%s653] sm:$0xff]
        %v676 = vld [vmem:[%s653 + $0x8] sm:$0xff]
        %v677 = vld [vmem:[%s653 + $0x10] sm:$0xff]
        %v678 = vld [vmem:[%s653 + $0x18] sm:$0xff]
        %v679 = vld [vmem:[%s653 + $0x20] sm:$0xff]
        %v680 = vld [vmem:[%s653 + $0x28] sm:$0xff]
        %v681 = vld [vmem:[%s653 + $0x30] sm:$0xff]
        %v682 = vld [vmem:[%s653 + $0x38] sm:$0xff]
        %v683 = vld [vmem:[%s653 + $0x40] sm:$0xff]
        %v684 = vld [vmem:[%s653 + $0x48] sm:$0xff]
        %v685 = vld [vmem:[%s653 + $0x50] sm:$0xff]
        %v686 = vld [vmem:[%s653 + $0x58] sm:$0xff]
        %v687 = vld [vmem:[%s653 + $0x60] sm:$0xff]
        %v688 = vld [vmem:[%s653 + $0x68] sm:$0xff]
        %v689 = vld [vmem:[%s653 + $0x70] sm:$0xff]
        %v690 = vld [vmem:[%s653 + $0x78] sm:$0xff]
        %v691 = vld [vmem:[%s653 + $0x80] sm:$0xff]
        %v692 = vld [vmem:[%s653 + $0x88] sm:$0xff]
        %v693 = vld [vmem:[%s653 + $0x90] sm:$0xff]
        %v694 = vld [vmem:[%s653 + $0x98] sm:$0xff]
        %v695 = vld [vmem:[%s653 + $0xa0] sm:$0xff]
        %v696 = vld [vmem:[%s653 + $0xa8] sm:$0xff]
        %v697 = vld [vmem:[%s653 + $0xb0] sm:$0xff]
        %v698 = vld [vmem:[%s653 + $0xb8] sm:$0xff]
        %v699 = vld [vmem:[%s653 + $0xc0] sm:$0xff]
        %v700 = vld [vmem:[%s653 + $0xc8] sm:$0xff]
        %v701 = vld [vmem:[%s653 + $0xd0] sm:$0xff]
        %v702 = vld [vmem:[%s653 + $0xd8] sm:$0xff]
        %v703 = vld [vmem:[%s653 + $0xe0] sm:$0xff]
        %v704 = vld [vmem:[%s653 + $0xe8] sm:$0xff]
        %v705 = vld [vmem:[%s653 + $0xf0] sm:$0xff]
        %v706 = vld [vmem:[%s653 + $0xf8] sm:$0xff]
        %v707 = vld [vmem:[%s653 + $0x100] sm:$0xff]
        %v708 = vld [vmem:[%s653 + $0x108] sm:$0xff]
        %v709 = vld [vmem:[%s653 + $0x110] sm:$0xff]
        %v710 = vld [vmem:[%s653 + $0x118] sm:$0xff]
        %v711 = vld [vmem:[%s653 + $0x120] sm:$0xff]
        %v712 = vld [vmem:[%s653 + $0x128] sm:$0xff]
        %v713 = vld [vmem:[%s653 + $0x130] sm:$0xff]
        %v714 = vld [vmem:[%s653 + $0x138] sm:$0xff]
        %v715 = vld [vmem:[%s653 + $0x140] sm:$0xff]
        %vm716 = vcmask 31744
        %717 = vst.msk [vmem:[#allocation2] sm:$0xff] %vm716, %v675
        %718 = vst.msk [vmem:[#allocation2 + $0x8] sm:$0xff] %vm716, %v676
        %719 = vst.msk [vmem:[#allocation2 + $0x10] sm:$0xff] %vm716, %v677
        %720 = vst.msk [vmem:[#allocation2 + $0x18] sm:$0xff] %vm716, %v678
        %721 = vst.msk [vmem:[#allocation2 + $0x20] sm:$0xff] %vm716, %v679
        %722 = vst.msk [vmem:[#allocation2 + $0x28] sm:$0xff] %vm716, %v680
        %723 = vst.msk [vmem:[#allocation2 + $0x30] sm:$0xff] %vm716, %v681
        %724 = vst.msk [vmem:[#allocation2 + $0x38] sm:$0xff] %vm716, %v682
        %725 = vst.msk [vmem:[#allocation2 + $0x40] sm:$0xff] %vm716, %v683
        %726 = vst.msk [vmem:[#allocation2 + $0x48] sm:$0xff] %vm716, %v684
        %727 = vst.msk [vmem:[#allocation2 + $0x50] sm:$0xff] %vm716, %v685
        %728 = vst.msk [vmem:[#allocation2 + $0x58] sm:$0xff] %vm716, %v686
        %729 = vst.msk [vmem:[#allocation2 + $0x60] sm:$0xff] %vm716, %v687
        %730 = vst.msk [vmem:[#allocation2 + $0x68] sm:$0xff] %vm716, %v688
        %731 = vst.msk [vmem:[#allocation2 + $0x70] sm:$0xff] %vm716, %v689
        %732 = vst.msk [vmem:[#allocation2 + $0x78] sm:$0xff] %vm716, %v690
        %733 = vst.msk [vmem:[#allocation2 + $0x80] sm:$0xff] %vm716, %v691
        %734 = vst.msk [vmem:[#allocation2 + $0x88] sm:$0xff] %vm716, %v692
        %735 = vst.msk [vmem:[#allocation2 + $0x90] sm:$0xff] %vm716, %v693
        %736 = vst.msk [vmem:[#allocation2 + $0x98] sm:$0xff] %vm716, %v694
        %737 = vst.msk [vmem:[#allocation2 + $0xa0] sm:$0xff] %vm716, %v695
        %738 = vst.msk [vmem:[#allocation2 + $0xa8] sm:$0xff] %vm716, %v696
        %739 = vst.msk [vmem:[#allocation2 + $0xb0] sm:$0xff] %vm716, %v697
        %740 = vst.msk [vmem:[#allocation2 + $0xb8] sm:$0xff] %vm716, %v698
        %741 = vst.msk [vmem:[#allocation2 + $0xc0] sm:$0xff] %vm716, %v699
        %742 = vst.msk [vmem:[#allocation2 + $0xc8] sm:$0xff] %vm716, %v700
        %743 = vst.msk [vmem:[#allocation2 + $0xd0] sm:$0xff] %vm716, %v701
        %744 = vst.msk [vmem:[#allocation2 + $0xd8] sm:$0xff] %vm716, %v702
        %745 = vst.msk [vmem:[#allocation2 + $0xe0] sm:$0xff] %vm716, %v703
        %746 = vst.msk [vmem:[#allocation2 + $0xe8] sm:$0xff] %vm716, %v704
        %747 = vst.msk [vmem:[#allocation2 + $0xf0] sm:$0xff] %vm716, %v705
        %748 = vst.msk [vmem:[#allocation2 + $0xf8] sm:$0xff] %vm716, %v706
        %749 = vst.msk [vmem:[#allocation2 + $0x100] sm:$0xff] %vm716, %v707
        %750 = vst.msk [vmem:[#allocation2 + $0x108] sm:$0xff] %vm716, %v708
        %751 = vst.msk [vmem:[#allocation2 + $0x110] sm:$0xff] %vm716, %v709
        %752 = vst.msk [vmem:[#allocation2 + $0x118] sm:$0xff] %vm716, %v710
        %790 = vrot.lane.b32.xlu0 %v675, 4
        %v791 = vpop.permute.xlu0 %790
        %792 = vrot.lane.b32.xlu0 %v676, 4
        %v793 = vpop.permute.xlu0 %792
        %794 = vrot.lane.b32.xlu0 %v677, 4
        %v795 = vpop.permute.xlu0 %794
        %796 = vrot.lane.b32.xlu0 %v678, 4
        %v797 = vpop.permute.xlu0 %796
        %798 = vrot.lane.b32.xlu0 %v679, 4
        %v799 = vpop.permute.xlu0 %798
        %800 = vrot.lane.b32.xlu0 %v680, 4
        %v801 = vpop.permute.xlu0 %800
        %802 = vrot.lane.b32.xlu0 %v681, 4
        %v803 = vpop.permute.xlu0 %802
        %804 = vrot.lane.b32.xlu0 %v682, 4
        %v805 = vpop.permute.xlu0 %804
        %806 = vrot.lane.b32.xlu0 %v683, 4
        %v807 = vpop.permute.xlu0 %806
        %808 = vrot.lane.b32.xlu0 %v684, 4
        %v809 = vpop.permute.xlu0 %808
        %810 = vrot.lane.b32.xlu0 %v685, 4
        %v811 = vpop.permute.xlu0 %810
        %812 = vrot.lane.b32.xlu0 %v686, 4
        %v813 = vpop.permute.xlu0 %812
        %814 = vrot.lane.b32.xlu0 %v687, 4
        %v815 = vpop.permute.xlu0 %814
        %816 = vrot.lane.b32.xlu0 %v688, 4
        %v817 = vpop.permute.xlu0 %816
        %818 = vrot.lane.b32.xlu0 %v689, 4
        %v819 = vpop.permute.xlu0 %818
        %820 = vrot.lane.b32.xlu0 %v690, 4
        %v821 = vpop.permute.xlu0 %820
        %822 = vrot.lane.b32.xlu0 %v691, 4
        %v823 = vpop.permute.xlu0 %822
        %824 = vrot.lane.b32.xlu0 %v692, 4
        %v825 = vpop.permute.xlu0 %824
        %826 = vrot.lane.b32.xlu0 %v693, 4
        %v827 = vpop.permute.xlu0 %826
        %828 = vrot.lane.b32.xlu0 %v694, 4
        %v829 = vpop.permute.xlu0 %828
        %830 = vrot.lane.b32.xlu0 %v695, 4
        %v831 = vpop.permute.xlu0 %830
        %832 = vrot.lane.b32.xlu0 %v696, 4
        %v833 = vpop.permute.xlu0 %832
        %834 = vrot.lane.b32.xlu0 %v697, 4
        %v835 = vpop.permute.xlu0 %834
        %836 = vrot.lane.b32.xlu0 %v698, 4
        %v837 = vpop.permute.xlu0 %836
        %838 = vrot.lane.b32.xlu0 %v699, 4
        %v839 = vpop.permute.xlu0 %838
        %840 = vrot.lane.b32.xlu0 %v700, 4
        %v841 = vpop.permute.xlu0 %840
        %842 = vrot.lane.b32.xlu0 %v701, 4
        %v843 = vpop.permute.xlu0 %842
        %844 = vrot.lane.b32.xlu0 %v702, 4
        %v845 = vpop.permute.xlu0 %844
        %846 = vrot.lane.b32.xlu0 %v703, 4
        %v847 = vpop.permute.xlu0 %846
        %848 = vrot.lane.b32.xlu0 %v704, 4
        %v849 = vpop.permute.xlu0 %848
        %850 = vrot.lane.b32.xlu0 %v705, 4
        %v851 = vpop.permute.xlu0 %850
        %852 = vrot.lane.b32.xlu0 %v706, 4
        %v853 = vpop.permute.xlu0 %852
        %854 = vrot.lane.b32.xlu0 %v707, 4
        %v855 = vpop.permute.xlu0 %854
        %856 = vrot.lane.b32.xlu0 %v708, 4
        %v857 = vpop.permute.xlu0 %856
        %858 = vrot.lane.b32.xlu0 %v709, 4
        %v859 = vpop.permute.xlu0 %858
        %860 = vrot.lane.b32.xlu0 %v710, 4
        %v861 = vpop.permute.xlu0 %860
        %862 = vrot.lane.b32.xlu0 %v711, 4
        %v863 = vpop.permute.xlu0 %862
        %vm901 = vcmask 64545
        %902 = vst.msk [vmem:[#allocation2 - $0x1] sm:$0xfe] %vm901, %v791
        %vm903 = vcmask 64544
        %904 = vst.msk [vmem:[#allocation2 + $0x7] sm:$0xff] %vm903, %v793
        %905 = vst.msk [vmem:[#allocation2 + $0xf] sm:$0xff] %vm903, %v795
        %906 = vst.msk [vmem:[#allocation2 + $0x17] sm:$0xff] %vm903, %v797
        %907 = vst.msk [vmem:[#allocation2 + $0x1f] sm:$0xff] %vm903, %v799
        %908 = vst.msk [vmem:[#allocation2 + $0x27] sm:$0xff] %vm903, %v801
        %909 = vst.msk [vmem:[#allocation2 + $0x2f] sm:$0xff] %vm903, %v803
        %910 = vst.msk [vmem:[#allocation2 + $0x37] sm:$0xff] %vm903, %v805
        %911 = vst.msk [vmem:[#allocation2 + $0x3f] sm:$0xff] %vm903, %v807
        %912 = vst.msk [vmem:[#allocation2 + $0x47] sm:$0xff] %vm903, %v809
        %913 = vst.msk [vmem:[#allocation2 + $0x4f] sm:$0xff] %vm903, %v811
        %914 = vst.msk [vmem:[#allocation2 + $0x57] sm:$0xff] %vm903, %v813
        %915 = vst.msk [vmem:[#allocation2 + $0x5f] sm:$0xff] %vm903, %v815
        %916 = vst.msk [vmem:[#allocation2 + $0x67] sm:$0xff] %vm903, %v817
        %917 = vst.msk [vmem:[#allocation2 + $0x6f] sm:$0xff] %vm903, %v819
        %918 = vst.msk [vmem:[#allocation2 + $0x77] sm:$0xff] %vm903, %v821
        %919 = vst.msk [vmem:[#allocation2 + $0x7f] sm:$0xff] %vm903, %v823
        %920 = vst.msk [vmem:[#allocation2 + $0x87] sm:$0xff] %vm903, %v825
        %921 = vst.msk [vmem:[#allocation2 + $0x8f] sm:$0xff] %vm903, %v827
        %922 = vst.msk [vmem:[#allocation2 + $0x97] sm:$0xff] %vm903, %v829
        %923 = vst.msk [vmem:[#allocation2 + $0x9f] sm:$0xff] %vm903, %v831
        %924 = vst.msk [vmem:[#allocation2 + $0xa7] sm:$0xff] %vm903, %v833
        %925 = vst.msk [vmem:[#allocation2 + $0xaf] sm:$0xff] %vm903, %v835
        %926 = vst.msk [vmem:[#allocation2 + $0xb7] sm:$0xff] %vm903, %v837
        %927 = vst.msk [vmem:[#allocation2 + $0xbf] sm:$0xff] %vm903, %v839
        %928 = vst.msk [vmem:[#allocation2 + $0xc7] sm:$0xff] %vm903, %v841
        %929 = vst.msk [vmem:[#allocation2 + $0xcf] sm:$0xff] %vm903, %v843
        %930 = vst.msk [vmem:[#allocation2 + $0xd7] sm:$0xff] %vm903, %v845
        %931 = vst.msk [vmem:[#allocation2 + $0xdf] sm:$0xff] %vm903, %v847
        %932 = vst.msk [vmem:[#allocation2 + $0xe7] sm:$0xff] %vm903, %v849
        %933 = vst.msk [vmem:[#allocation2 + $0xef] sm:$0xff] %vm903, %v851
        %934 = vst.msk [vmem:[#allocation2 + $0xf7] sm:$0xff] %vm903, %v853
        %935 = vst.msk [vmem:[#allocation2 + $0xff] sm:$0xff] %vm903, %v855
        %936 = vst.msk [vmem:[#allocation2 + $0x107] sm:$0xff] %vm903, %v857
        %937 = vst.msk [vmem:[#allocation2 + $0x10f] sm:$0xff] %vm903, %v859
        %938 = vst.msk [vmem:[#allocation2 + $0x117] sm:$0xff] %vm903, %v861
        %vm939 = vcmask 57376
        %940 = vst.msk [vmem:[#allocation2 + $0x11f] sm:$0x1] %vm939, %v863
        %941 = vrot.lane.b32.xlu0 %v675, 8
        %v942 = vpop.permute.xlu0 %941
        %943 = vrot.lane.b32.xlu0 %v676, 8
        %v944 = vpop.permute.xlu0 %943
        %945 = vrot.lane.b32.xlu0 %v677, 8
        %v946 = vpop.permute.xlu0 %945
        %947 = vrot.lane.b32.xlu0 %v678, 8
        %v948 = vpop.permute.xlu0 %947
        %949 = vrot.lane.b32.xlu0 %v679, 8
        %v950 = vpop.permute.xlu0 %949
        %951 = vrot.lane.b32.xlu0 %v680, 8
        %v952 = vpop.permute.xlu0 %951
        %953 = vrot.lane.b32.xlu0 %v681, 8
        %v954 = vpop.permute.xlu0 %953
        %955 = vrot.lane.b32.xlu0 %v682, 8
        %v956 = vpop.permute.xlu0 %955
        %957 = vrot.lane.b32.xlu0 %v683, 8
        %v958 = vpop.permute.xlu0 %957
        %959 = vrot.lane.b32.xlu0 %v684, 8
        %v960 = vpop.permute.xlu0 %959
        %961 = vrot.lane.b32.xlu0 %v685, 8
        %v962 = vpop.permute.xlu0 %961
        %963 = vrot.lane.b32.xlu0 %v686, 8
        %v964 = vpop.permute.xlu0 %963
        %965 = vrot.lane.b32.xlu0 %v687, 8
        %v966 = vpop.permute.xlu0 %965
        %967 = vrot.lane.b32.xlu0 %v688, 8
        %v968 = vpop.permute.xlu0 %967
        %969 = vrot.lane.b32.xlu0 %v689, 8
        %v970 = vpop.permute.xlu0 %969
        %971 = vrot.lane.b32.xlu0 %v690, 8
        %v972 = vpop.permute.xlu0 %971
        %973 = vrot.lane.b32.xlu0 %v691, 8
        %v974 = vpop.permute.xlu0 %973
        %975 = vrot.lane.b32.xlu0 %v692, 8
        %v976 = vpop.permute.xlu0 %975
        %977 = vrot.lane.b32.xlu0 %v693, 8
        %v978 = vpop.permute.xlu0 %977
        %979 = vrot.lane.b32.xlu0 %v694, 8
        %v980 = vpop.permute.xlu0 %979
        %981 = vrot.lane.b32.xlu0 %v695, 8
        %v982 = vpop.permute.xlu0 %981
        %983 = vrot.lane.b32.xlu0 %v696, 8
        %v984 = vpop.permute.xlu0 %983
        %985 = vrot.lane.b32.xlu0 %v697, 8
        %v986 = vpop.permute.xlu0 %985
        %987 = vrot.lane.b32.xlu0 %v698, 8
        %v988 = vpop.permute.xlu0 %987
        %989 = vrot.lane.b32.xlu0 %v699, 8
        %v990 = vpop.permute.xlu0 %989
        %991 = vrot.lane.b32.xlu0 %v700, 8
        %v992 = vpop.permute.xlu0 %991
        %993 = vrot.lane.b32.xlu0 %v701, 8
        %v994 = vpop.permute.xlu0 %993
        %995 = vrot.lane.b32.xlu0 %v702, 8
        %v996 = vpop.permute.xlu0 %995
        %997 = vrot.lane.b32.xlu0 %v703, 8
        %v998 = vpop.permute.xlu0 %997
        %999 = vrot.lane.b32.xlu0 %v704, 8
        %v1000 = vpop.permute.xlu0 %999
        %1001 = vrot.lane.b32.xlu0 %v705, 8
        %v1002 = vpop.permute.xlu0 %1001
        %1003 = vrot.lane.b32.xlu0 %v706, 8
        %v1004 = vpop.permute.xlu0 %1003
        %1005 = vrot.lane.b32.xlu0 %v707, 8
        %v1006 = vpop.permute.xlu0 %1005
        %1007 = vrot.lane.b32.xlu0 %v708, 8
        %v1008 = vpop.permute.xlu0 %1007
        %1009 = vrot.lane.b32.xlu0 %v709, 8
        %v1010 = vpop.permute.xlu0 %1009
        %1011 = vrot.lane.b32.xlu0 %v710, 8
        %v1012 = vpop.permute.xlu0 %1011
        %1013 = vrot.lane.b32.xlu0 %v711, 8
        %v1014 = vpop.permute.xlu0 %1013
        %vm1052 = vcmask 97346
        %1053 = vst.msk [vmem:[#allocation2 - $0x2] sm:$0xfc] %vm1052, %v942
        %vm1054 = vcmask 97344
        %1055 = vst.msk [vmem:[#allocation2 + $0x6] sm:$0xff] %vm1054, %v944
        %1056 = vst.msk [vmem:[#allocation2 + $0xe] sm:$0xff] %vm1054, %v946
        %1057 = vst.msk [vmem:[#allocation2 + $0x16] sm:$0xff] %vm1054, %v948
        %1058 = vst.msk [vmem:[#allocation2 + $0x1e] sm:$0xff] %vm1054, %v950
        %1059 = vst.msk [vmem:[#allocation2 + $0x26] sm:$0xff] %vm1054, %v952
        %1060 = vst.msk [vmem:[#allocation2 + $0x2e] sm:$0xff] %vm1054, %v954
        %1061 = vst.msk [vmem:[#allocation2 + $0x36] sm:$0xff] %vm1054, %v956
        %1062 = vst.msk [vmem:[#allocation2 + $0x3e] sm:$0xff] %vm1054, %v958
        %1063 = vst.msk [vmem:[#allocation2 + $0x46] sm:$0xff] %vm1054, %v960
        %1064 = vst.msk [vmem:[#allocation2 + $0x4e] sm:$0xff] %vm1054, %v962
        %1065 = vst.msk [vmem:[#allocation2 + $0x56] sm:$0xff] %vm1054, %v964
        %1066 = vst.msk [vmem:[#allocation2 + $0x5e] sm:$0xff] %vm1054, %v966
        %1067 = vst.msk [vmem:[#allocation2 + $0x66] sm:$0xff] %vm1054, %v968
        %1068 = vst.msk [vmem:[#allocation2 + $0x6e] sm:$0xff] %vm1054, %v970
        %1069 = vst.msk [vmem:[#allocation2 + $0x76] sm:$0xff] %vm1054, %v972
        %1070 = vst.msk [vmem:[#allocation2 + $0x7e] sm:$0xff] %vm1054, %v974
        %1071 = vst.msk [vmem:[#allocation2 + $0x86] sm:$0xff] %vm1054, %v976
        %1072 = vst.msk [vmem:[#allocation2 + $0x8e] sm:$0xff] %vm1054, %v978
        %1073 = vst.msk [vmem:[#allocation2 + $0x96] sm:$0xff] %vm1054, %v980
        %1074 = vst.msk [vmem:[#allocation2 + $0x9e] sm:$0xff] %vm1054, %v982
        %1075 = vst.msk [vmem:[#allocation2 + $0xa6] sm:$0xff] %vm1054, %v984
        %1076 = vst.msk [vmem:[#allocation2 + $0xae] sm:$0xff] %vm1054, %v986
        %1077 = vst.msk [vmem:[#allocation2 + $0xb6] sm:$0xff] %vm1054, %v988
        %1078 = vst.msk [vmem:[#allocation2 + $0xbe] sm:$0xff] %vm1054, %v990
        %1079 = vst.msk [vmem:[#allocation2 + $0xc6] sm:$0xff] %vm1054, %v992
        %1080 = vst.msk [vmem:[#allocation2 + $0xce] sm:$0xff] %vm1054, %v994
        %1081 = vst.msk [vmem:[#allocation2 + $0xd6] sm:$0xff] %vm1054, %v996
        %1082 = vst.msk [vmem:[#allocation2 + $0xde] sm:$0xff] %vm1054, %v998
        %1083 = vst.msk [vmem:[#allocation2 + $0xe6] sm:$0xff] %vm1054, %v1000
        %1084 = vst.msk [vmem:[#allocation2 + $0xee] sm:$0xff] %vm1054, %v1002
        %1085 = vst.msk [vmem:[#allocation2 + $0xf6] sm:$0xff] %vm1054, %v1004
        %1086 = vst.msk [vmem:[#allocation2 + $0xfe] sm:$0xff] %vm1054, %v1006
        %1087 = vst.msk [vmem:[#allocation2 + $0x106] sm:$0xff] %vm1054, %v1008
        %1088 = vst.msk [vmem:[#allocation2 + $0x10e] sm:$0xff] %vm1054, %v1010
        %1089 = vst.msk [vmem:[#allocation2 + $0x116] sm:$0xff] %vm1054, %v1012
        %vm1090 = vcmask 91200
        %1091 = vst.msk [vmem:[#allocation2 + $0x11e] sm:$0x3] %vm1090, %v1014
        %1094 = vrot.lane.b32.xlu0 %v677, 12
        %v1095 = vpop.permute.xlu0 %1094
        %1096 = vrot.lane.b32.xlu0 %v678, 12
        %v1097 = vpop.permute.xlu0 %1096
        %1098 = vrot.lane.b32.xlu0 %v679, 12
        %v1099 = vpop.permute.xlu0 %1098
        %1100 = vrot.lane.b32.xlu0 %v680, 12
        %v1101 = vpop.permute.xlu0 %1100
        %1102 = vrot.lane.b32.xlu0 %v681, 12
        %v1103 = vpop.permute.xlu0 %1102
        %1104 = vrot.lane.b32.xlu0 %v682, 12
        %v1105 = vpop.permute.xlu0 %1104
        %1106 = vrot.lane.b32.xlu0 %v683, 12
        %v1107 = vpop.permute.xlu0 %1106
        %1108 = vrot.lane.b32.xlu0 %v684, 12
        %v1109 = vpop.permute.xlu0 %1108
        %1110 = vrot.lane.b32.xlu0 %v685, 12
        %v1111 = vpop.permute.xlu0 %1110
        %1112 = vrot.lane.b32.xlu0 %v686, 12
        %v1113 = vpop.permute.xlu0 %1112
        %1114 = vrot.lane.b32.xlu0 %v687, 12
        %v1115 = vpop.permute.xlu0 %1114
        %1116 = vrot.lane.b32.xlu0 %v688, 12
        %v1117 = vpop.permute.xlu0 %1116
        %1118 = vrot.lane.b32.xlu0 %v689, 12
        %v1119 = vpop.permute.xlu0 %1118
        %1120 = vrot.lane.b32.xlu0 %v690, 12
        %v1121 = vpop.permute.xlu0 %1120
        %1122 = vrot.lane.b32.xlu0 %v691, 12
        %v1123 = vpop.permute.xlu0 %1122
        %1124 = vrot.lane.b32.xlu0 %v692, 12
        %v1125 = vpop.permute.xlu0 %1124
        %1126 = vrot.lane.b32.xlu0 %v693, 12
        %v1127 = vpop.permute.xlu0 %1126
        %1128 = vrot.lane.b32.xlu0 %v694, 12
        %v1129 = vpop.permute.xlu0 %1128
        %1130 = vrot.lane.b32.xlu0 %v695, 12
        %v1131 = vpop.permute.xlu0 %1130
        %1132 = vrot.lane.b32.xlu0 %v696, 12
        %v1133 = vpop.permute.xlu0 %1132
        %1134 = vrot.lane.b32.xlu0 %v697, 12
        %v1135 = vpop.permute.xlu0 %1134
        %1136 = vrot.lane.b32.xlu0 %v698, 12
        %v1137 = vpop.permute.xlu0 %1136
        %1138 = vrot.lane.b32.xlu0 %v699, 12
        %v1139 = vpop.permute.xlu0 %1138
        %1140 = vrot.lane.b32.xlu0 %v700, 12
        %v1141 = vpop.permute.xlu0 %1140
        %1142 = vrot.lane.b32.xlu0 %v701, 12
        %v1143 = vpop.permute.xlu0 %1142
        %1144 = vrot.lane.b32.xlu0 %v702, 12
        %v1145 = vpop.permute.xlu0 %1144
        %1146 = vrot.lane.b32.xlu0 %v703, 12
        %v1147 = vpop.permute.xlu0 %1146
        %1148 = vrot.lane.b32.xlu0 %v704, 12
        %v1149 = vpop.permute.xlu0 %1148
        %1150 = vrot.lane.b32.xlu0 %v705, 12
        %v1151 = vpop.permute.xlu0 %1150
        %1152 = vrot.lane.b32.xlu0 %v706, 12
        %v1153 = vpop.permute.xlu0 %1152
        %1154 = vrot.lane.b32.xlu0 %v707, 12
        %v1155 = vpop.permute.xlu0 %1154
        %1156 = vrot.lane.b32.xlu0 %v708, 12
        %v1157 = vpop.permute.xlu0 %1156
        %1158 = vrot.lane.b32.xlu0 %v709, 12
        %v1159 = vpop.permute.xlu0 %1158
        %1160 = vrot.lane.b32.xlu0 %v710, 12
        %v1161 = vpop.permute.xlu0 %1160
        %1162 = vrot.lane.b32.xlu0 %v711, 12
        %v1163 = vpop.permute.xlu0 %1162
        %1164 = vrot.lane.b32.xlu0 %v712, 12
        %v1165 = vpop.permute.xlu0 %1164
        %1166 = vrot.lane.b32.xlu0 %v713, 12
        %v1167 = vpop.permute.xlu0 %1166
        %vm1205 = vcmask 130146
        %1206 = vst.msk [vmem:[#allocation2 - $0x2] sm:$0xfc] %vm1205, %v1095
        %vm1207 = vcmask 130144
        %1208 = vst.msk [vmem:[#allocation2 + $0x6] sm:$0xff] %vm1207, %v1097
        %1209 = vst.msk [vmem:[#allocation2 + $0xe] sm:$0xff] %vm1207, %v1099
        %1210 = vst.msk [vmem:[#allocation2 + $0x16] sm:$0xff] %vm1207, %v1101
        %1211 = vst.msk [vmem:[#allocation2 + $0x1e] sm:$0xff] %vm1207, %v1103
        %1212 = vst.msk [vmem:[#allocation2 + $0x26] sm:$0xff] %vm1207, %v1105
        %1213 = vst.msk [vmem:[#allocation2 + $0x2e] sm:$0xff] %vm1207, %v1107
        %1214 = vst.msk [vmem:[#allocation2 + $0x36] sm:$0xff] %vm1207, %v1109
        %1215 = vst.msk [vmem:[#allocation2 + $0x3e] sm:$0xff] %vm1207, %v1111
        %1216 = vst.msk [vmem:[#allocation2 + $0x46] sm:$0xff] %vm1207, %v1113
        %1217 = vst.msk [vmem:[#allocation2 + $0x4e] sm:$0xff] %vm1207, %v1115
        %1218 = vst.msk [vmem:[#allocation2 + $0x56] sm:$0xff] %vm1207, %v1117
        %1219 = vst.msk [vmem:[#allocation2 + $0x5e] sm:$0xff] %vm1207, %v1119
        %1220 = vst.msk [vmem:[#allocation2 + $0x66] sm:$0xff] %vm1207, %v1121
        %1221 = vst.msk [vmem:[#allocation2 + $0x6e] sm:$0xff] %vm1207, %v1123
        %1222 = vst.msk [vmem:[#allocation2 + $0x76] sm:$0xff] %vm1207, %v1125
        %1223 = vst.msk [vmem:[#allocation2 + $0x7e] sm:$0xff] %vm1207, %v1127
        %1224 = vst.msk [vmem:[#allocation2 + $0x86] sm:$0xff] %vm1207, %v1129
        %1225 = vst.msk [vmem:[#allocation2 + $0x8e] sm:$0xff] %vm1207, %v1131
        %1226 = vst.msk [vmem:[#allocation2 + $0x96] sm:$0xff] %vm1207, %v1133
        %1227 = vst.msk [vmem:[#allocation2 + $0x9e] sm:$0xff] %vm1207, %v1135
        %1228 = vst.msk [vmem:[#allocation2 + $0xa6] sm:$0xff] %vm1207, %v1137
        %1229 = vst.msk [vmem:[#allocation2 + $0xae] sm:$0xff] %vm1207, %v1139
        %1230 = vst.msk [vmem:[#allocation2 + $0xb6] sm:$0xff] %vm1207, %v1141
        %1231 = vst.msk [vmem:[#allocation2 + $0xbe] sm:$0xff] %vm1207, %v1143
        %1232 = vst.msk [vmem:[#allocation2 + $0xc6] sm:$0xff] %vm1207, %v1145
        %1233 = vst.msk [vmem:[#allocation2 + $0xce] sm:$0xff] %vm1207, %v1147
        %1234 = vst.msk [vmem:[#allocation2 + $0xd6] sm:$0xff] %vm1207, %v1149
        %1235 = vst.msk [vmem:[#allocation2 + $0xde] sm:$0xff] %vm1207, %v1151
        %1236 = vst.msk [vmem:[#allocation2 + $0xe6] sm:$0xff] %vm1207, %v1153
        %1237 = vst.msk [vmem:[#allocation2 + $0xee] sm:$0xff] %vm1207, %v1155
        %1238 = vst.msk [vmem:[#allocation2 + $0xf6] sm:$0xff] %vm1207, %v1157
        %1239 = vst.msk [vmem:[#allocation2 + $0xfe] sm:$0xff] %vm1207, %v1159
        %1240 = vst.msk [vmem:[#allocation2 + $0x106] sm:$0xff] %vm1207, %v1161
        %1241 = vst.msk [vmem:[#allocation2 + $0x10e] sm:$0xff] %vm1207, %v1163
        %1242 = vst.msk [vmem:[#allocation2 + $0x116] sm:$0xff] %vm1207, %v1165
        %vm1243 = vcmask 124000
        %1244 = vst.msk [vmem:[#allocation2 + $0x11e] sm:$0x3] %vm1243, %v1167
        %1245 = vrot.lane.b32.xlu0 %v677, 16
        %v1246 = vpop.permute.xlu0 %1245
        %1247 = vrot.lane.b32.xlu0 %v678, 16
        %v1248 = vpop.permute.xlu0 %1247
        %1249 = vrot.lane.b32.xlu0 %v679, 16
        %v1250 = vpop.permute.xlu0 %1249
        %1251 = vrot.lane.b32.xlu0 %v680, 16
        %v1252 = vpop.permute.xlu0 %1251
        %1253 = vrot.lane.b32.xlu0 %v681, 16
        %v1254 = vpop.permute.xlu0 %1253
        %1255 = vrot.lane.b32.xlu0 %v682, 16
        %v1256 = vpop.permute.xlu0 %1255
        %1257 = vrot.lane.b32.xlu0 %v683, 16
        %v1258 = vpop.permute.xlu0 %1257
        %1259 = vrot.lane.b32.xlu0 %v684, 16
        %v1260 = vpop.permute.xlu0 %1259
        %1261 = vrot.lane.b32.xlu0 %v685, 16
        %v1262 = vpop.permute.xlu0 %1261
        %1263 = vrot.lane.b32.xlu0 %v686, 16
        %v1264 = vpop.permute.xlu0 %1263
        %1265 = vrot.lane.b32.xlu0 %v687, 16
        %v1266 = vpop.permute.xlu0 %1265
        %1267 = vrot.lane.b32.xlu0 %v688, 16
        %v1268 = vpop.permute.xlu0 %1267
        %1269 = vrot.lane.b32.xlu0 %v689, 16
        %v1270 = vpop.permute.xlu0 %1269
        %1271 = vrot.lane.b32.xlu0 %v690, 16
        %v1272 = vpop.permute.xlu0 %1271
        %1273 = vrot.lane.b32.xlu0 %v691, 16
        %v1274 = vpop.permute.xlu0 %1273
        %1275 = vrot.lane.b32.xlu0 %v692, 16
        %v1276 = vpop.permute.xlu0 %1275
        %1277 = vrot.lane.b32.xlu0 %v693, 16
        %v1278 = vpop.permute.xlu0 %1277
        %1279 = vrot.lane.b32.xlu0 %v694, 16
        %v1280 = vpop.permute.xlu0 %1279
        %1281 = vrot.lane.b32.xlu0 %v695, 16
        %v1282 = vpop.permute.xlu0 %1281
        %1283 = vrot.lane.b32.xlu0 %v696, 16
        %v1284 = vpop.permute.xlu0 %1283
        %1285 = vrot.lane.b32.xlu0 %v697, 16
        %v1286 = vpop.permute.xlu0 %1285
        %1287 = vrot.lane.b32.xlu0 %v698, 16
        %v1288 = vpop.permute.xlu0 %1287
        %1289 = vrot.lane.b32.xlu0 %v699, 16
        %v1290 = vpop.permute.xlu0 %1289
        %1291 = vrot.lane.b32.xlu0 %v700, 16
        %v1292 = vpop.permute.xlu0 %1291
        %1293 = vrot.lane.b32.xlu0 %v701, 16
        %v1294 = vpop.permute.xlu0 %1293
        %1295 = vrot.lane.b32.xlu0 %v702, 16
        %v1296 = vpop.permute.xlu0 %1295
        %1297 = vrot.lane.b32.xlu0 %v703, 16
        %v1298 = vpop.permute.xlu0 %1297
        %1299 = vrot.lane.b32.xlu0 %v704, 16
        %v1300 = vpop.permute.xlu0 %1299
        %1301 = vrot.lane.b32.xlu0 %v705, 16
        %v1302 = vpop.permute.xlu0 %1301
        %1303 = vrot.lane.b32.xlu0 %v706, 16
        %v1304 = vpop.permute.xlu0 %1303
        %1305 = vrot.lane.b32.xlu0 %v707, 16
        %v1306 = vpop.permute.xlu0 %1305
        %1307 = vrot.lane.b32.xlu0 %v708, 16
        %v1308 = vpop.permute.xlu0 %1307
        %1309 = vrot.lane.b32.xlu0 %v709, 16
        %v1310 = vpop.permute.xlu0 %1309
        %1311 = vrot.lane.b32.xlu0 %v710, 16
        %v1312 = vpop.permute.xlu0 %1311
        %1313 = vrot.lane.b32.xlu0 %v711, 16
        %v1314 = vpop.permute.xlu0 %1313
        %1315 = vrot.lane.b32.xlu0 %v712, 16
        %v1316 = vpop.permute.xlu0 %1315
        %1317 = vrot.lane.b32.xlu0 %v713, 16
        %v1318 = vpop.permute.xlu0 %1317
        %vm1356 = vcmask 162947
        %1357 = vst.msk [vmem:[#allocation2 - $0x3] sm:$0xf8] %vm1356, %v1246
        %vm1358 = vcmask 162944
        %1359 = vst.msk [vmem:[#allocation2 + $0x5] sm:$0xff] %vm1358, %v1248
        %1360 = vst.msk [vmem:[#allocation2 + $0xd] sm:$0xff] %vm1358, %v1250
        %1361 = vst.msk [vmem:[#allocation2 + $0x15] sm:$0xff] %vm1358, %v1252
        %1362 = vst.msk [vmem:[#allocation2 + $0x1d] sm:$0xff] %vm1358, %v1254
        %1363 = vst.msk [vmem:[#allocation2 + $0x25] sm:$0xff] %vm1358, %v1256
        %1364 = vst.msk [vmem:[#allocation2 + $0x2d] sm:$0xff] %vm1358, %v1258
        %1365 = vst.msk [vmem:[#allocation2 + $0x35] sm:$0xff] %vm1358, %v1260
        %1366 = vst.msk [vmem:[#allocation2 + $0x3d] sm:$0xff] %vm1358, %v1262
        %1367 = vst.msk [vmem:[#allocation2 + $0x45] sm:$0xff] %vm1358, %v1264
        %1368 = vst.msk [vmem:[#allocation2 + $0x4d] sm:$0xff] %vm1358, %v1266
        %1369 = vst.msk [vmem:[#allocation2 + $0x55] sm:$0xff] %vm1358, %v1268
        %1370 = vst.msk [vmem:[#allocation2 + $0x5d] sm:$0xff] %vm1358, %v1270
        %1371 = vst.msk [vmem:[#allocation2 + $0x65] sm:$0xff] %vm1358, %v1272
        %1372 = vst.msk [vmem:[#allocation2 + $0x6d] sm:$0xff] %vm1358, %v1274
        %1373 = vst.msk [vmem:[#allocation2 + $0x75] sm:$0xff] %vm1358, %v1276
        %1374 = vst.msk [vmem:[#allocation2 + $0x7d] sm:$0xff] %vm1358, %v1278
        %1375 = vst.msk [vmem:[#allocation2 + $0x85] sm:$0xff] %vm1358, %v1280
        %1376 = vst.msk [vmem:[#allocation2 + $0x8d] sm:$0xff] %vm1358, %v1282
        %1377 = vst.msk [vmem:[#allocation2 + $0x95] sm:$0xff] %vm1358, %v1284
        %1378 = vst.msk [vmem:[#allocation2 + $0x9d] sm:$0xff] %vm1358, %v1286
        %1379 = vst.msk [vmem:[#allocation2 + $0xa5] sm:$0xff] %vm1358, %v1288
        %1380 = vst.msk [vmem:[#allocation2 + $0xad] sm:$0xff] %vm1358, %v1290
        %1381 = vst.msk [vmem:[#allocation2 + $0xb5] sm:$0xff] %vm1358, %v1292
        %1382 = vst.msk [vmem:[#allocation2 + $0xbd] sm:$0xff] %vm1358, %v1294
        %1383 = vst.msk [vmem:[#allocation2 + $0xc5] sm:$0xff] %vm1358, %v1296
        %1384 = vst.msk [vmem:[#allocation2 + $0xcd] sm:$0xff] %vm1358, %v1298
        %1385 = vst.msk [vmem:[#allocation2 + $0xd5] sm:$0xff] %vm1358, %v1300
        %1386 = vst.msk [vmem:[#allocation2 + $0xdd] sm:$0xff] %vm1358, %v1302
        %1387 = vst.msk [vmem:[#allocation2 + $0xe5] sm:$0xff] %vm1358, %v1304
        %1388 = vst.msk [vmem:[#allocation2 + $0xed] sm:$0xff] %vm1358, %v1306
        %1389 = vst.msk [vmem:[#allocation2 + $0xf5] sm:$0xff] %vm1358, %v1308
        %1390 = vst.msk [vmem:[#allocation2 + $0xfd] sm:$0xff] %vm1358, %v1310
        %1391 = vst.msk [vmem:[#allocation2 + $0x105] sm:$0xff] %vm1358, %v1312
        %1392 = vst.msk [vmem:[#allocation2 + $0x10d] sm:$0xff] %vm1358, %v1314
        %1393 = vst.msk [vmem:[#allocation2 + $0x115] sm:$0xff] %vm1358, %v1316
        %vm1394 = vcmask 157824
        %1395 = vst.msk [vmem:[#allocation2 + $0x11d] sm:$0x7] %vm1394, %v1318
        %1396 = vrot.lane.b32.xlu0 %v677, 20
        %v1397 = vpop.permute.xlu0 %1396
        %1398 = vrot.lane.b32.xlu0 %v678, 20
        %v1399 = vpop.permute.xlu0 %1398
        %1400 = vrot.lane.b32.xlu0 %v679, 20
        %v1401 = vpop.permute.xlu0 %1400
        %1402 = vrot.lane.b32.xlu0 %v680, 20
        %v1403 = vpop.permute.xlu0 %1402
        %1404 = vrot.lane.b32.xlu0 %v681, 20
        %v1405 = vpop.permute.xlu0 %1404
        %1406 = vrot.lane.b32.xlu0 %v682, 20
        %v1407 = vpop.permute.xlu0 %1406
        %1408 = vrot.lane.b32.xlu0 %v683, 20
        %v1409 = vpop.permute.xlu0 %1408
        %1410 = vrot.lane.b32.xlu0 %v684, 20
        %v1411 = vpop.permute.xlu0 %1410
        %1412 = vrot.lane.b32.xlu0 %v685, 20
        %v1413 = vpop.permute.xlu0 %1412
        %1414 = vrot.lane.b32.xlu0 %v686, 20
        %v1415 = vpop.permute.xlu0 %1414
        %1416 = vrot.lane.b32.xlu0 %v687, 20
        %v1417 = vpop.permute.xlu0 %1416
        %1418 = vrot.lane.b32.xlu0 %v688, 20
        %v1419 = vpop.permute.xlu0 %1418
        %1420 = vrot.lane.b32.xlu0 %v689, 20
        %v1421 = vpop.permute.xlu0 %1420
        %1422 = vrot.lane.b32.xlu0 %v690, 20
        %v1423 = vpop.permute.xlu0 %1422
        %1424 = vrot.lane.b32.xlu0 %v691, 20
        %v1425 = vpop.permute.xlu0 %1424
        %1426 = vrot.lane.b32.xlu0 %v692, 20
        %v1427 = vpop.permute.xlu0 %1426
        %1428 = vrot.lane.b32.xlu0 %v693, 20
        %v1429 = vpop.permute.xlu0 %1428
        %1430 = vrot.lane.b32.xlu0 %v694, 20
        %v1431 = vpop.permute.xlu0 %1430
        %1432 = vrot.lane.b32.xlu0 %v695, 20
        %v1433 = vpop.permute.xlu0 %1432
        %1434 = vrot.lane.b32.xlu0 %v696, 20
        %v1435 = vpop.permute.xlu0 %1434
        %1436 = vrot.lane.b32.xlu0 %v697, 20
        %v1437 = vpop.permute.xlu0 %1436
        %1438 = vrot.lane.b32.xlu0 %v698, 20
        %v1439 = vpop.permute.xlu0 %1438
        %1440 = vrot.lane.b32.xlu0 %v699, 20
        %v1441 = vpop.permute.xlu0 %1440
        %1442 = vrot.lane.b32.xlu0 %v700, 20
        %v1443 = vpop.permute.xlu0 %1442
        %1444 = vrot.lane.b32.xlu0 %v701, 20
        %v1445 = vpop.permute.xlu0 %1444
        %1446 = vrot.lane.b32.xlu0 %v702, 20
        %v1447 = vpop.permute.xlu0 %1446
        %1448 = vrot.lane.b32.xlu0 %v703, 20
        %v1449 = vpop.permute.xlu0 %1448
        %1450 = vrot.lane.b32.xlu0 %v704, 20
        %v1451 = vpop.permute.xlu0 %1450
        %1452 = vrot.lane.b32.xlu0 %v705, 20
        %v1453 = vpop.permute.xlu0 %1452
        %1454 = vrot.lane.b32.xlu0 %v706, 20
        %v1455 = vpop.permute.xlu0 %1454
        %1456 = vrot.lane.b32.xlu0 %v707, 20
        %v1457 = vpop.permute.xlu0 %1456
        %1458 = vrot.lane.b32.xlu0 %v708, 20
        %v1459 = vpop.permute.xlu0 %1458
        %1460 = vrot.lane.b32.xlu0 %v709, 20
        %v1461 = vpop.permute.xlu0 %1460
        %1462 = vrot.lane.b32.xlu0 %v710, 20
        %v1463 = vpop.permute.xlu0 %1462
        %1464 = vrot.lane.b32.xlu0 %v711, 20
        %v1465 = vpop.permute.xlu0 %1464
        %1466 = vrot.lane.b32.xlu0 %v712, 20
        %v1467 = vpop.permute.xlu0 %1466
        %1468 = vrot.lane.b32.xlu0 %v713, 20
        %v1469 = vpop.permute.xlu0 %1468
        %vm1507 = vcmask 195748
        %1508 = vst.msk [vmem:[#allocation2 - $0x4] sm:$0xf0] %vm1507, %v1397
        %vm1509 = vcmask 195744
        %1510 = vst.msk [vmem:[#allocation2 + $0x4] sm:$0xff] %vm1509, %v1399
        %1511 = vst.msk [vmem:[#allocation2 + $0xc] sm:$0xff] %vm1509, %v1401
        %1512 = vst.msk [vmem:[#allocation2 + $0x14] sm:$0xff] %vm1509, %v1403
        %1513 = vst.msk [vmem:[#allocation2 + $0x1c] sm:$0xff] %vm1509, %v1405
        %1514 = vst.msk [vmem:[#allocation2 + $0x24] sm:$0xff] %vm1509, %v1407
        %1515 = vst.msk [vmem:[#allocation2 + $0x2c] sm:$0xff] %vm1509, %v1409
        %1516 = vst.msk [vmem:[#allocation2 + $0x34] sm:$0xff] %vm1509, %v1411
        %1517 = vst.msk [vmem:[#allocation2 + $0x3c] sm:$0xff] %vm1509, %v1413
        %1518 = vst.msk [vmem:[#allocation2 + $0x44] sm:$0xff] %vm1509, %v1415
        %1519 = vst.msk [vmem:[#allocation2 + $0x4c] sm:$0xff] %vm1509, %v1417
        %1520 = vst.msk [vmem:[#allocation2 + $0x54] sm:$0xff] %vm1509, %v1419
        %1521 = vst.msk [vmem:[#allocation2 + $0x5c] sm:$0xff] %vm1509, %v1421
        %1522 = vst.msk [vmem:[#allocation2 + $0x64] sm:$0xff] %vm1509, %v1423
        %1523 = vst.msk [vmem:[#allocation2 + $0x6c] sm:$0xff] %vm1509, %v1425
        %1524 = vst.msk [vmem:[#allocation2 + $0x74] sm:$0xff] %vm1509, %v1427
        %1525 = vst.msk [vmem:[#allocation2 + $0x7c] sm:$0xff] %vm1509, %v1429
        %1526 = vst.msk [vmem:[#allocation2 + $0x84] sm:$0xff] %vm1509, %v1431
        %1527 = vst.msk [vmem:[#allocation2 + $0x8c] sm:$0xff] %vm1509, %v1433
        %1528 = vst.msk [vmem:[#allocation2 + $0x94] sm:$0xff] %vm1509, %v1435
        %1529 = vst.msk [vmem:[#allocation2 + $0x9c] sm:$0xff] %vm1509, %v1437
        %1530 = vst.msk [vmem:[#allocation2 + $0xa4] sm:$0xff] %vm1509, %v1439
        %1531 = vst.msk [vmem:[#allocation2 + $0xac] sm:$0xff] %vm1509, %v1441
        %1532 = vst.msk [vmem:[#allocation2 + $0xb4] sm:$0xff] %vm1509, %v1443
        %1533 = vst.msk [vmem:[#allocation2 + $0xbc] sm:$0xff] %vm1509, %v1445
        %1534 = vst.msk [vmem:[#allocation2 + $0xc4] sm:$0xff] %vm1509, %v1447
        %1535 = vst.msk [vmem:[#allocation2 + $0xcc] sm:$0xff] %vm1509, %v1449
        %1536 = vst.msk [vmem:[#allocation2 + $0xd4] sm:$0xff] %vm1509, %v1451
        %1537 = vst.msk [vmem:[#allocation2 + $0xdc] sm:$0xff] %vm1509, %v1453
        %1538 = vst.msk [vmem:[#allocation2 + $0xe4] sm:$0xff] %vm1509, %v1455
        %1539 = vst.msk [vmem:[#allocation2 + $0xec] sm:$0xff] %vm1509, %v1457
        %1540 = vst.msk [vmem:[#allocation2 + $0xf4] sm:$0xff] %vm1509, %v1459
        %1541 = vst.msk [vmem:[#allocation2 + $0xfc] sm:$0xff] %vm1509, %v1461
        %1542 = vst.msk [vmem:[#allocation2 + $0x104] sm:$0xff] %vm1509, %v1463
        %1543 = vst.msk [vmem:[#allocation2 + $0x10c] sm:$0xff] %vm1509, %v1465
        %1544 = vst.msk [vmem:[#allocation2 + $0x114] sm:$0xff] %vm1509, %v1467
        %vm1545 = vcmask 191648
        %1546 = vst.msk [vmem:[#allocation2 + $0x11c] sm:$0xf] %vm1545, %v1469
        %1549 = vrot.lane.b32.xlu0 %v679, 24
        %v1550 = vpop.permute.xlu0 %1549
        %1551 = vrot.lane.b32.xlu0 %v680, 24
        %v1552 = vpop.permute.xlu0 %1551
        %1553 = vrot.lane.b32.xlu0 %v681, 24
        %v1554 = vpop.permute.xlu0 %1553
        %1555 = vrot.lane.b32.xlu0 %v682, 24
        %v1556 = vpop.permute.xlu0 %1555
        %1557 = vrot.lane.b32.xlu0 %v683, 24
        %v1558 = vpop.permute.xlu0 %1557
        %1559 = vrot.lane.b32.xlu0 %v684, 24
        %v1560 = vpop.permute.xlu0 %1559
        %1561 = vrot.lane.b32.xlu0 %v685, 24
        %v1562 = vpop.permute.xlu0 %1561
        %1563 = vrot.lane.b32.xlu0 %v686, 24
        %v1564 = vpop.permute.xlu0 %1563
        %1565 = vrot.lane.b32.xlu0 %v687, 24
        %v1566 = vpop.permute.xlu0 %1565
        %1567 = vrot.lane.b32.xlu0 %v688, 24
        %v1568 = vpop.permute.xlu0 %1567
        %1569 = vrot.lane.b32.xlu0 %v689, 24
        %v1570 = vpop.permute.xlu0 %1569
        %1571 = vrot.lane.b32.xlu0 %v690, 24
        %v1572 = vpop.permute.xlu0 %1571
        %1573 = vrot.lane.b32.xlu0 %v691, 24
        %v1574 = vpop.permute.xlu0 %1573
        %1575 = vrot.lane.b32.xlu0 %v692, 24
        %v1576 = vpop.permute.xlu0 %1575
        %1577 = vrot.lane.b32.xlu0 %v693, 24
        %v1578 = vpop.permute.xlu0 %1577
        %1579 = vrot.lane.b32.xlu0 %v694, 24
        %v1580 = vpop.permute.xlu0 %1579
        %1581 = vrot.lane.b32.xlu0 %v695, 24
        %v1582 = vpop.permute.xlu0 %1581
        %1583 = vrot.lane.b32.xlu0 %v696, 24
        %v1584 = vpop.permute.xlu0 %1583
        %1585 = vrot.lane.b32.xlu0 %v697, 24
        %v1586 = vpop.permute.xlu0 %1585
        %1587 = vrot.lane.b32.xlu0 %v698, 24
        %v1588 = vpop.permute.xlu0 %1587
        %1589 = vrot.lane.b32.xlu0 %v699, 24
        %v1590 = vpop.permute.xlu0 %1589
        %1591 = vrot.lane.b32.xlu0 %v700, 24
        %v1592 = vpop.permute.xlu0 %1591
        %1593 = vrot.lane.b32.xlu0 %v701, 24
        %v1594 = vpop.permute.xlu0 %1593
        %1595 = vrot.lane.b32.xlu0 %v702, 24
        %v1596 = vpop.permute.xlu0 %1595
        %1597 = vrot.lane.b32.xlu0 %v703, 24
        %v1598 = vpop.permute.xlu0 %1597
        %1599 = vrot.lane.b32.xlu0 %v704, 24
        %v1600 = vpop.permute.xlu0 %1599
        %1601 = vrot.lane.b32.xlu0 %v705, 24
        %v1602 = vpop.permute.xlu0 %1601
        %1603 = vrot.lane.b32.xlu0 %v706, 24
        %v1604 = vpop.permute.xlu0 %1603
        %1605 = vrot.lane.b32.xlu0 %v707, 24
        %v1606 = vpop.permute.xlu0 %1605
        %1607 = vrot.lane.b32.xlu0 %v708, 24
        %v1608 = vpop.permute.xlu0 %1607
        %1609 = vrot.lane.b32.xlu0 %v709, 24
        %v1610 = vpop.permute.xlu0 %1609
        %1611 = vrot.lane.b32.xlu0 %v710, 24
        %v1612 = vpop.permute.xlu0 %1611
        %1613 = vrot.lane.b32.xlu0 %v711, 24
        %v1614 = vpop.permute.xlu0 %1613
        %1615 = vrot.lane.b32.xlu0 %v712, 24
        %v1616 = vpop.permute.xlu0 %1615
        %1617 = vrot.lane.b32.xlu0 %v713, 24
        %v1618 = vpop.permute.xlu0 %1617
        %1619 = vrot.lane.b32.xlu0 %v714, 24
        %v1620 = vpop.permute.xlu0 %1619
        %1621 = vrot.lane.b32.xlu0 %v715, 24
        %v1622 = vpop.permute.xlu0 %1621
        %vm1660 = vcmask 228548
        %1661 = vst.msk [vmem:[#allocation2 - $0x4] sm:$0xf0] %vm1660, %v1550
        %vm1662 = vcmask 228544
        %1663 = vst.msk [vmem:[#allocation2 + $0x4] sm:$0xff] %vm1662, %v1552
        %1664 = vst.msk [vmem:[#allocation2 + $0xc] sm:$0xff] %vm1662, %v1554
        %1665 = vst.msk [vmem:[#allocation2 + $0x14] sm:$0xff] %vm1662, %v1556
        %1666 = vst.msk [vmem:[#allocation2 + $0x1c] sm:$0xff] %vm1662, %v1558
        %1667 = vst.msk [vmem:[#allocation2 + $0x24] sm:$0xff] %vm1662, %v1560
        %1668 = vst.msk [vmem:[#allocation2 + $0x2c] sm:$0xff] %vm1662, %v1562
        %1669 = vst.msk [vmem:[#allocation2 + $0x34] sm:$0xff] %vm1662, %v1564
        %1670 = vst.msk [vmem:[#allocation2 + $0x3c] sm:$0xff] %vm1662, %v1566
        %1671 = vst.msk [vmem:[#allocation2 + $0x44] sm:$0xff] %vm1662, %v1568
        %1672 = vst.msk [vmem:[#allocation2 + $0x4c] sm:$0xff] %vm1662, %v1570
        %1673 = vst.msk [vmem:[#allocation2 + $0x54] sm:$0xff] %vm1662, %v1572
        %1674 = vst.msk [vmem:[#allocation2 + $0x5c] sm:$0xff] %vm1662, %v1574
        %1675 = vst.msk [vmem:[#allocation2 + $0x64] sm:$0xff] %vm1662, %v1576
        %1676 = vst.msk [vmem:[#allocation2 + $0x6c] sm:$0xff] %vm1662, %v1578
        %1677 = vst.msk [vmem:[#allocation2 + $0x74] sm:$0xff] %vm1662, %v1580
        %1678 = vst.msk [vmem:[#allocation2 + $0x7c] sm:$0xff] %vm1662, %v1582
        %1679 = vst.msk [vmem:[#allocation2 + $0x84] sm:$0xff] %vm1662, %v1584
        %1680 = vst.msk [vmem:[#allocation2 + $0x8c] sm:$0xff] %vm1662, %v1586
        %1681 = vst.msk [vmem:[#allocation2 + $0x94] sm:$0xff] %vm1662, %v1588
        %1682 = vst.msk [vmem:[#allocation2 + $0x9c] sm:$0xff] %vm1662, %v1590
        %1683 = vst.msk [vmem:[#allocation2 + $0xa4] sm:$0xff] %vm1662, %v1592
        %1684 = vst.msk [vmem:[#allocation2 + $0xac] sm:$0xff] %vm1662, %v1594
        %1685 = vst.msk [vmem:[#allocation2 + $0xb4] sm:$0xff] %vm1662, %v1596
        %1686 = vst.msk [vmem:[#allocation2 + $0xbc] sm:$0xff] %vm1662, %v1598
        %1687 = vst.msk [vmem:[#allocation2 + $0xc4] sm:$0xff] %vm1662, %v1600
        %1688 = vst.msk [vmem:[#allocation2 + $0xcc] sm:$0xff] %vm1662, %v1602
        %1689 = vst.msk [vmem:[#allocation2 + $0xd4] sm:$0xff] %vm1662, %v1604
        %1690 = vst.msk [vmem:[#allocation2 + $0xdc] sm:$0xff] %vm1662, %v1606
        %1691 = vst.msk [vmem:[#allocation2 + $0xe4] sm:$0xff] %vm1662, %v1608
        %1692 = vst.msk [vmem:[#allocation2 + $0xec] sm:$0xff] %vm1662, %v1610
        %1693 = vst.msk [vmem:[#allocation2 + $0xf4] sm:$0xff] %vm1662, %v1612
        %1694 = vst.msk [vmem:[#allocation2 + $0xfc] sm:$0xff] %vm1662, %v1614
        %1695 = vst.msk [vmem:[#allocation2 + $0x104] sm:$0xff] %vm1662, %v1616
        %1696 = vst.msk [vmem:[#allocation2 + $0x10c] sm:$0xff] %vm1662, %v1618
        %1697 = vst.msk [vmem:[#allocation2 + $0x114] sm:$0xff] %vm1662, %v1620
        %vm1698 = vcmask 224448
        %1699 = vst.msk [vmem:[#allocation2 + $0x11c] sm:$0xf] %vm1698, %v1622
        %1700 = vrot.lane.b32.xlu0 %v679, 28
        %v1701 = vpop.permute.xlu0 %1700
        %1702 = vrot.lane.b32.xlu0 %v680, 28
        %v1703 = vpop.permute.xlu0 %1702
        %1704 = vrot.lane.b32.xlu0 %v681, 28
        %v1705 = vpop.permute.xlu0 %1704
        %1706 = vrot.lane.b32.xlu0 %v682, 28
        %v1707 = vpop.permute.xlu0 %1706
        %1708 = vrot.lane.b32.xlu0 %v683, 28
        %v1709 = vpop.permute.xlu0 %1708
        %1710 = vrot.lane.b32.xlu0 %v684, 28
        %v1711 = vpop.permute.xlu0 %1710
        %1712 = vrot.lane.b32.xlu0 %v685, 28
        %v1713 = vpop.permute.xlu0 %1712
        %1714 = vrot.lane.b32.xlu0 %v686, 28
        %v1715 = vpop.permute.xlu0 %1714
        %1716 = vrot.lane.b32.xlu0 %v687, 28
        %v1717 = vpop.permute.xlu0 %1716
        %1718 = vrot.lane.b32.xlu0 %v688, 28
        %v1719 = vpop.permute.xlu0 %1718
        %1720 = vrot.lane.b32.xlu0 %v689, 28
        %v1721 = vpop.permute.xlu0 %1720
        %1722 = vrot.lane.b32.xlu0 %v690, 28
        %v1723 = vpop.permute.xlu0 %1722
        %1724 = vrot.lane.b32.xlu0 %v691, 28
        %v1725 = vpop.permute.xlu0 %1724
        %1726 = vrot.lane.b32.xlu0 %v692, 28
        %v1727 = vpop.permute.xlu0 %1726
        %1728 = vrot.lane.b32.xlu0 %v693, 28
        %v1729 = vpop.permute.xlu0 %1728
        %1730 = vrot.lane.b32.xlu0 %v694, 28
        %v1731 = vpop.permute.xlu0 %1730
        %1732 = vrot.lane.b32.xlu0 %v695, 28
        %v1733 = vpop.permute.xlu0 %1732
        %1734 = vrot.lane.b32.xlu0 %v696, 28
        %v1735 = vpop.permute.xlu0 %1734
        %1736 = vrot.lane.b32.xlu0 %v697, 28
        %v1737 = vpop.permute.xlu0 %1736
        %1738 = vrot.lane.b32.xlu0 %v698, 28
        %v1739 = vpop.permute.xlu0 %1738
        %1740 = vrot.lane.b32.xlu0 %v699, 28
        %v1741 = vpop.permute.xlu0 %1740
        %1742 = vrot.lane.b32.xlu0 %v700, 28
        %v1743 = vpop.permute.xlu0 %1742
        %1744 = vrot.lane.b32.xlu0 %v701, 28
        %v1745 = vpop.permute.xlu0 %1744
        %1746 = vrot.lane.b32.xlu0 %v702, 28
        %v1747 = vpop.permute.xlu0 %1746
        %1748 = vrot.lane.b32.xlu0 %v703, 28
        %v1749 = vpop.permute.xlu0 %1748
        %1750 = vrot.lane.b32.xlu0 %v704, 28
        %v1751 = vpop.permute.xlu0 %1750
        %1752 = vrot.lane.b32.xlu0 %v705, 28
        %v1753 = vpop.permute.xlu0 %1752
        %1754 = vrot.lane.b32.xlu0 %v706, 28
        %v1755 = vpop.permute.xlu0 %1754
        %1756 = vrot.lane.b32.xlu0 %v707, 28
        %v1757 = vpop.permute.xlu0 %1756
        %1758 = vrot.lane.b32.xlu0 %v708, 28
        %v1759 = vpop.permute.xlu0 %1758
        %1760 = vrot.lane.b32.xlu0 %v709, 28
        %v1761 = vpop.permute.xlu0 %1760
        %1762 = vrot.lane.b32.xlu0 %v710, 28
        %v1763 = vpop.permute.xlu0 %1762
        %1764 = vrot.lane.b32.xlu0 %v711, 28
        %v1765 = vpop.permute.xlu0 %1764
        %1766 = vrot.lane.b32.xlu0 %v712, 28
        %v1767 = vpop.permute.xlu0 %1766
        %1768 = vrot.lane.b32.xlu0 %v713, 28
        %v1769 = vpop.permute.xlu0 %1768
        %1770 = vrot.lane.b32.xlu0 %v714, 28
        %v1771 = vpop.permute.xlu0 %1770
        %1772 = vrot.lane.b32.xlu0 %v715, 28
        %v1773 = vpop.permute.xlu0 %1772
        %vm1811 = vcmask 261349
        %1812 = vst.msk [vmem:[#allocation2 - $0x5] sm:$0xe0] %vm1811, %v1701
        %vm1813 = vcmask 261344
        %1814 = vst.msk [vmem:[#allocation2 + $0x3] sm:$0xff] %vm1813, %v1703
        %1815 = vst.msk [vmem:[#allocation2 + $0xb] sm:$0xff] %vm1813, %v1705
        %1816 = vst.msk [vmem:[#allocation2 + $0x13] sm:$0xff] %vm1813, %v1707
        %1817 = vst.msk [vmem:[#allocation2 + $0x1b] sm:$0xff] %vm1813, %v1709
        %1818 = vst.msk [vmem:[#allocation2 + $0x23] sm:$0xff] %vm1813, %v1711
        %1819 = vst.msk [vmem:[#allocation2 + $0x2b] sm:$0xff] %vm1813, %v1713
        %1820 = vst.msk [vmem:[#allocation2 + $0x33] sm:$0xff] %vm1813, %v1715
        %1821 = vst.msk [vmem:[#allocation2 + $0x3b] sm:$0xff] %vm1813, %v1717
        %1822 = vst.msk [vmem:[#allocation2 + $0x43] sm:$0xff] %vm1813, %v1719
        %1823 = vst.msk [vmem:[#allocation2 + $0x4b] sm:$0xff] %vm1813, %v1721
        %1824 = vst.msk [vmem:[#allocation2 + $0x53] sm:$0xff] %vm1813, %v1723
        %1825 = vst.msk [vmem:[#allocation2 + $0x5b] sm:$0xff] %vm1813, %v1725
        %1826 = vst.msk [vmem:[#allocation2 + $0x63] sm:$0xff] %vm1813, %v1727
        %1827 = vst.msk [vmem:[#allocation2 + $0x6b] sm:$0xff] %vm1813, %v1729
        %1828 = vst.msk [vmem:[#allocation2 + $0x73] sm:$0xff] %vm1813, %v1731
        %1829 = vst.msk [vmem:[#allocation2 + $0x7b] sm:$0xff] %vm1813, %v1733
        %1830 = vst.msk [vmem:[#allocation2 + $0x83] sm:$0xff] %vm1813, %v1735
        %1831 = vst.msk [vmem:[#allocation2 + $0x8b] sm:$0xff] %vm1813, %v1737
        %1832 = vst.msk [vmem:[#allocation2 + $0x93] sm:$0xff] %vm1813, %v1739
        %1833 = vst.msk [vmem:[#allocation2 + $0x9b] sm:$0xff] %vm1813, %v1741
        %1834 = vst.msk [vmem:[#allocation2 + $0xa3] sm:$0xff] %vm1813, %v1743
        %1835 = vst.msk [vmem:[#allocation2 + $0xab] sm:$0xff] %vm1813, %v1745
        %1836 = vst.msk [vmem:[#allocation2 + $0xb3] sm:$0xff] %vm1813, %v1747
        %1837 = vst.msk [vmem:[#allocation2 + $0xbb] sm:$0xff] %vm1813, %v1749
        %1838 = vst.msk [vmem:[#allocation2 + $0xc3] sm:$0xff] %vm1813, %v1751
        %1839 = vst.msk [vmem:[#allocation2 + $0xcb] sm:$0xff] %vm1813, %v1753
        %1840 = vst.msk [vmem:[#allocation2 + $0xd3] sm:$0xff] %vm1813, %v1755
        %1841 = vst.msk [vmem:[#allocation2 + $0xdb] sm:$0xff] %vm1813, %v1757
        %1842 = vst.msk [vmem:[#allocation2 + $0xe3] sm:$0xff] %vm1813, %v1759
        %1843 = vst.msk [vmem:[#allocation2 + $0xeb] sm:$0xff] %vm1813, %v1761
        %1844 = vst.msk [vmem:[#allocation2 + $0xf3] sm:$0xff] %vm1813, %v1763
        %1845 = vst.msk [vmem:[#allocation2 + $0xfb] sm:$0xff] %vm1813, %v1765
        %1846 = vst.msk [vmem:[#allocation2 + $0x103] sm:$0xff] %vm1813, %v1767
        %1847 = vst.msk [vmem:[#allocation2 + $0x10b] sm:$0xff] %vm1813, %v1769
        %1848 = vst.msk [vmem:[#allocation2 + $0x113] sm:$0xff] %vm1813, %v1771
        %vm1849 = vcmask 258272
        %1850 = vst.msk [vmem:[#allocation2 + $0x11b] sm:$0x1f] %vm1849, %v1773
        %1851 = vrot.lane.b32.xlu0 %v679, 32
        %v1852 = vpop.permute.xlu0 %1851
        %1853 = vrot.lane.b32.xlu0 %v680, 32
        %v1854 = vpop.permute.xlu0 %1853
        %1855 = vrot.lane.b32.xlu0 %v681, 32
        %v1856 = vpop.permute.xlu0 %1855
        %1857 = vrot.lane.b32.xlu0 %v682, 32
        %v1858 = vpop.permute.xlu0 %1857
        %1859 = vrot.lane.b32.xlu0 %v683, 32
        %v1860 = vpop.permute.xlu0 %1859
        %1861 = vrot.lane.b32.xlu0 %v684, 32
        %v1862 = vpop.permute.xlu0 %1861
        %1863 = vrot.lane.b32.xlu0 %v685, 32
        %v1864 = vpop.permute.xlu0 %1863
        %1865 = vrot.lane.b32.xlu0 %v686, 32
        %v1866 = vpop.permute.xlu0 %1865
        %1867 = vrot.lane.b32.xlu0 %v687, 32
        %v1868 = vpop.permute.xlu0 %1867
        %1869 = vrot.lane.b32.xlu0 %v688, 32
        %v1870 = vpop.permute.xlu0 %1869
        %1871 = vrot.lane.b32.xlu0 %v689, 32
        %v1872 = vpop.permute.xlu0 %1871
        %1873 = vrot.lane.b32.xlu0 %v690, 32
        %v1874 = vpop.permute.xlu0 %1873
        %1875 = vrot.lane.b32.xlu0 %v691, 32
        %v1876 = vpop.permute.xlu0 %1875
        %1877 = vrot.lane.b32.xlu0 %v692, 32
        %v1878 = vpop.permute.xlu0 %1877
        %1879 = vrot.lane.b32.xlu0 %v693, 32
        %v1880 = vpop.permute.xlu0 %1879
        %1881 = vrot.lane.b32.xlu0 %v694, 32
        %v1882 = vpop.permute.xlu0 %1881
        %1883 = vrot.lane.b32.xlu0 %v695, 32
        %v1884 = vpop.permute.xlu0 %1883
        %1885 = vrot.lane.b32.xlu0 %v696, 32
        %v1886 = vpop.permute.xlu0 %1885
        %1887 = vrot.lane.b32.xlu0 %v697, 32
        %v1888 = vpop.permute.xlu0 %1887
        %1889 = vrot.lane.b32.xlu0 %v698, 32
        %v1890 = vpop.permute.xlu0 %1889
        %1891 = vrot.lane.b32.xlu0 %v699, 32
        %v1892 = vpop.permute.xlu0 %1891
        %1893 = vrot.lane.b32.xlu0 %v700, 32
        %v1894 = vpop.permute.xlu0 %1893
        %1895 = vrot.lane.b32.xlu0 %v701, 32
        %v1896 = vpop.permute.xlu0 %1895
        %1897 = vrot.lane.b32.xlu0 %v702, 32
        %v1898 = vpop.permute.xlu0 %1897
        %1899 = vrot.lane.b32.xlu0 %v703, 32
        %v1900 = vpop.permute.xlu0 %1899
        %1901 = vrot.lane.b32.xlu0 %v704, 32
        %v1902 = vpop.permute.xlu0 %1901
        %1903 = vrot.lane.b32.xlu0 %v705, 32
        %v1904 = vpop.permute.xlu0 %1903
        %1905 = vrot.lane.b32.xlu0 %v706, 32
        %v1906 = vpop.permute.xlu0 %1905
        %1907 = vrot.lane.b32.xlu0 %v707, 32
        %v1908 = vpop.permute.xlu0 %1907
        %1909 = vrot.lane.b32.xlu0 %v708, 32
        %v1910 = vpop.permute.xlu0 %1909
        %1911 = vrot.lane.b32.xlu0 %v709, 32
        %v1912 = vpop.permute.xlu0 %1911
        %1913 = vrot.lane.b32.xlu0 %v710, 32
        %v1914 = vpop.permute.xlu0 %1913
        %1915 = vrot.lane.b32.xlu0 %v711, 32
        %v1916 = vpop.permute.xlu0 %1915
        %1917 = vrot.lane.b32.xlu0 %v712, 32
        %v1918 = vpop.permute.xlu0 %1917
        %1919 = vrot.lane.b32.xlu0 %v713, 32
        %v1920 = vpop.permute.xlu0 %1919
        %1921 = vrot.lane.b32.xlu0 %v714, 32
        %v1922 = vpop.permute.xlu0 %1921
        %1923 = vrot.lane.b32.xlu0 %v715, 32
        %v1924 = vpop.permute.xlu0 %1923
        %vm1962 = vcmask 294150
        %1963 = vst.msk [vmem:[#allocation2 - $0x6] sm:$0xc0] %vm1962, %v1852
        %vm1964 = vcmask 294144
        %1965 = vst.msk [vmem:[#allocation2 + $0x2] sm:$0xff] %vm1964, %v1854
        %1966 = vst.msk [vmem:[#allocation2 + $0xa] sm:$0xff] %vm1964, %v1856
        %1967 = vst.msk [vmem:[#allocation2 + $0x12] sm:$0xff] %vm1964, %v1858
        %1968 = vst.msk [vmem:[#allocation2 + $0x1a] sm:$0xff] %vm1964, %v1860
        %1969 = vst.msk [vmem:[#allocation2 + $0x22] sm:$0xff] %vm1964, %v1862
        %1970 = vst.msk [vmem:[#allocation2 + $0x2a] sm:$0xff] %vm1964, %v1864
        %1971 = vst.msk [vmem:[#allocation2 + $0x32] sm:$0xff] %vm1964, %v1866
        %1972 = vst.msk [vmem:[#allocation2 + $0x3a] sm:$0xff] %vm1964, %v1868
        %1973 = vst.msk [vmem:[#allocation2 + $0x42] sm:$0xff] %vm1964, %v1870
        %1974 = vst.msk [vmem:[#allocation2 + $0x4a] sm:$0xff] %vm1964, %v1872
        %1975 = vst.msk [vmem:[#allocation2 + $0x52] sm:$0xff] %vm1964, %v1874
        %1976 = vst.msk [vmem:[#allocation2 + $0x5a] sm:$0xff] %vm1964, %v1876
        %1977 = vst.msk [vmem:[#allocation2 + $0x62] sm:$0xff] %vm1964, %v1878
        %1978 = vst.msk [vmem:[#allocation2 + $0x6a] sm:$0xff] %vm1964, %v1880
        %1979 = vst.msk [vmem:[#allocation2 + $0x72] sm:$0xff] %vm1964, %v1882
        %1980 = vst.msk [vmem:[#allocation2 + $0x7a] sm:$0xff] %vm1964, %v1884
        %1981 = vst.msk [vmem:[#allocation2 + $0x82] sm:$0xff] %vm1964, %v1886
        %1982 = vst.msk [vmem:[#allocation2 + $0x8a] sm:$0xff] %vm1964, %v1888
        %1983 = vst.msk [vmem:[#allocation2 + $0x92] sm:$0xff] %vm1964, %v1890
        %1984 = vst.msk [vmem:[#allocation2 + $0x9a] sm:$0xff] %vm1964, %v1892
        %1985 = vst.msk [vmem:[#allocation2 + $0xa2] sm:$0xff] %vm1964, %v1894
        %1986 = vst.msk [vmem:[#allocation2 + $0xaa] sm:$0xff] %vm1964, %v1896
        %1987 = vst.msk [vmem:[#allocation2 + $0xb2] sm:$0xff] %vm1964, %v1898
        %1988 = vst.msk [vmem:[#allocation2 + $0xba] sm:$0xff] %vm1964, %v1900
        %1989 = vst.msk [vmem:[#allocation2 + $0xc2] sm:$0xff] %vm1964, %v1902
        %1990 = vst.msk [vmem:[#allocation2 + $0xca] sm:$0xff] %vm1964, %v1904
        %1991 = vst.msk [vmem:[#allocation2 + $0xd2] sm:$0xff] %vm1964, %v1906
        %1992 = vst.msk [vmem:[#allocation2 + $0xda] sm:$0xff] %vm1964, %v1908
        %1993 = vst.msk [vmem:[#allocation2 + $0xe2] sm:$0xff] %vm1964, %v1910
        %1994 = vst.msk [vmem:[#allocation2 + $0xea] sm:$0xff] %vm1964, %v1912
        %1995 = vst.msk [vmem:[#allocation2 + $0xf2] sm:$0xff] %vm1964, %v1914
        %1996 = vst.msk [vmem:[#allocation2 + $0xfa] sm:$0xff] %vm1964, %v1916
        %1997 = vst.msk [vmem:[#allocation2 + $0x102] sm:$0xff] %vm1964, %v1918
        %1998 = vst.msk [vmem:[#allocation2 + $0x10a] sm:$0xff] %vm1964, %v1920
        %1999 = vst.msk [vmem:[#allocation2 + $0x112] sm:$0xff] %vm1964, %v1922
        %vm2000 = vcmask 292096
        %2001 = vst.msk [vmem:[#allocation2 + $0x11a] sm:$0x3f] %vm2000, %v1924
        %v2002 = vld [vmem:[#allocation2] sm:$0xff]
        %v2003 = vld [vmem:[#allocation2 + $0x8] sm:$0xff]
        %v2004 = vld [vmem:[#allocation2 + $0x10] sm:$0xff]
        %v2005 = vld [vmem:[#allocation2 + $0x18] sm:$0xff]
        %v2006 = vld [vmem:[#allocation2 + $0x20] sm:$0xff]
        %v2007 = vld [vmem:[#allocation2 + $0x28] sm:$0xff]
        %v2008 = vld [vmem:[#allocation2 + $0x30] sm:$0xff]
        %v2009 = vld [vmem:[#allocation2 + $0x38] sm:$0xff]
        %v2010 = vld [vmem:[#allocation2 + $0x40] sm:$0xff]
        %v2011 = vld [vmem:[#allocation2 + $0x48] sm:$0xff]
        %v2012 = vld [vmem:[#allocation2 + $0x50] sm:$0xff]
        %v2013 = vld [vmem:[#allocation2 + $0x58] sm:$0xff]
        %v2014 = vld [vmem:[#allocation2 + $0x60] sm:$0xff]
        %v2015 = vld [vmem:[#allocation2 + $0x68] sm:$0xff]
        %v2016 = vld [vmem:[#allocation2 + $0x70] sm:$0xff]
        %v2017 = vld [vmem:[#allocation2 + $0x78] sm:$0xff]
        %v2018 = vld [vmem:[#allocation2 + $0x80] sm:$0xff]
        %v2019 = vld [vmem:[#allocation2 + $0x88] sm:$0xff]
        %v2020 = vld [vmem:[#allocation2 + $0x90] sm:$0xff]
        %v2021 = vld [vmem:[#allocation2 + $0x98] sm:$0xff]
        %v2022 = vld [vmem:[#allocation2 + $0xa0] sm:$0xff]
        %v2023 = vld [vmem:[#allocation2 + $0xa8] sm:$0xff]
        %v2024 = vld [vmem:[#allocation2 + $0xb0] sm:$0xff]
        %v2025 = vld [vmem:[#allocation2 + $0xb8] sm:$0xff]
        %v2026 = vld [vmem:[#allocation2 + $0xc0] sm:$0xff]
        %v2027 = vld [vmem:[#allocation2 + $0xc8] sm:$0xff]
        %v2028 = vld [vmem:[#allocation2 + $0xd0] sm:$0xff]
        %v2029 = vld [vmem:[#allocation2 + $0xd8] sm:$0xff]
        %v2030 = vld [vmem:[#allocation2 + $0xe0] sm:$0xff]
        %v2031 = vld [vmem:[#allocation2 + $0xe8] sm:$0xff]
        %v2032 = vld [vmem:[#allocation2 + $0xf0] sm:$0xff]
        %v2033 = vld [vmem:[#allocation2 + $0xf8] sm:$0xff]
        %v2034 = vld [vmem:[#allocation2 + $0x100] sm:$0xff]
        %v2035 = vld [vmem:[#allocation2 + $0x108] sm:$0xff]
        %v2036 = vld [vmem:[#allocation2 + $0x110] sm:$0xff]
        %v2037 = vld [vmem:[#allocation2 + $0x118] sm:$0xff]
        %v2038 = vpack.c.bf16 %v2003, %v2002
        %v2039 = vpack.c.bf16 %v2005, %v2004
        %v2040 = vpack.c.bf16 %v2007, %v2006
        %v2041 = vpack.c.bf16 %v2009, %v2008
        %v2042 = vpack.c.bf16 %v2011, %v2010
        %v2043 = vpack.c.bf16 %v2013, %v2012
        %v2044 = vpack.c.bf16 %v2015, %v2014
        %v2045 = vpack.c.bf16 %v2017, %v2016
        %v2046 = vpack.c.bf16 %v2019, %v2018
        %v2047 = vpack.c.bf16 %v2021, %v2020
        %v2048 = vpack.c.bf16 %v2023, %v2022
        %v2049 = vpack.c.bf16 %v2025, %v2024
        %v2050 = vpack.c.bf16 %v2027, %v2026
        %v2051 = vpack.c.bf16 %v2029, %v2028
        %v2052 = vpack.c.bf16 %v2031, %v2030
        %v2053 = vpack.c.bf16 %v2033, %v2032
        %v2054 = vpack.c.bf16 %v2035, %v2034
        %v2055 = vpack.c.bf16 %v2037, %v2036
        %v2056 = vld [vmem:[%s4] sm:$0xf]
        %v2057 = vld [vmem:[%s4 + $0x4] sm:$0xf]
        %v2058 = vld [vmem:[%s4 + $0x8] sm:$0xf]
        %v2059 = vld [vmem:[%s4 + $0xc] sm:$0xf]
        %v2060 = vld [vmem:[%s4 + $0x10] sm:$0x3]
        %v2061 = vld [vmem:[%s5] sm:$0x1]
        %v2063 = vlaneseq
        %v2064 = vshrl.u32 %v2063, 7
        %v2065 = vsub.s32 0, %v2064
        %v2066 = vrot.slane %v2061, %v2065
        %v2073 = vunpack.c.l.b16 %v2056
        %v2074 = vunpack.c.l.b16 %v2057
        %v2075 = vunpack.c.l.b16 %v2058
        %v2076 = vunpack.c.l.b16 %v2059
        %v2077 = vunpack.c.l.b16 %v2060
        %v2078 = vpack.c.b16 %v2074, %v2073
        %v2079 = vpack.c.b16 %v2076, %v2075
        %v2080 = vpack.c.b16 %v2077, %v2077
        %vm2083 = vcmask 293888
        %v2085 = vsel %vm2083, %v2038, 0
        %v2088 = vsel %vm2083, %v2039, 0
        %v2091 = vsel %vm2083, %v2040, 0
        %v2094 = vsel %vm2083, %v2041, 0
        %v2097 = vsel %vm2083, %v2042, 0
        %v2100 = vsel %vm2083, %v2043, 0
        %v2103 = vsel %vm2083, %v2044, 0
        %v2106 = vsel %vm2083, %v2045, 0
        %v2109 = vsel %vm2083, %v2046, 0
        %v2112 = vsel %vm2083, %v2047, 0
        %v2115 = vsel %vm2083, %v2048, 0
        %v2118 = vsel %vm2083, %v2049, 0
        %v2121 = vsel %vm2083, %v2050, 0
        %v2124 = vsel %vm2083, %v2051, 0
        %v2127 = vsel %vm2083, %v2052, 0
        %v2130 = vsel %vm2083, %v2053, 0
        %v2133 = vsel %vm2083, %v2054, 0
        %v2136 = vsel %vm2083, %v2055, 0
        %vm2138 = vcmask 1041408
        %v2140 = vsel %vm2138, %v2080, 0
        %2142 = vmatprep.subr.bf16.mxu0 0
        %2143 = vmatpush1.bf16.msra.mxu0 0
        %2144 = vmatprep.subr.bf16.mxu0 0
        %2145 = vmatpush1.bf16.msra.mxu0 0
        %2146 = vmatprep.subr.bf16.mxu0 0
        %2147 = vmatpush1.bf16.msra.mxu0 0
        %2148 = vmatprep.subr.bf16.mxu0 0
        %2149 = vmatpush1.bf16.msra.mxu0 0
        %2150 = vmatprep.subr.bf16.mxu0 0
        %2151 = vmatpush1.bf16.msra.mxu0 0
        %2152 = vmatprep.subr.bf16.mxu0 0
        %2153 = vmatpush1.bf16.msra.mxu0 %v2140
        %2154 = vmatprep.subr.bf16.mxu0 0
        %2155 = vmatpush1.bf16.msra.mxu0 %v2079
        %2156 = vmatprep.subr.bf16.mxu0 0
        %2157 = vmatpush1.bf16.msra.mxu0 %v2078
        %2158 = vmatprep.subr.bf16.mxu0 0
        %2159 = vmatpush2.bf16.msra.mxu0 0
        %2160 = vmatprep.subr.bf16.mxu0 0
        %2161 = vmatpush2.bf16.msra.mxu0 0
        %2162 = vmatprep.subr.bf16.mxu0 0
        %2163 = vmatpush2.bf16.msra.mxu0 0
        %2164 = vmatprep.subr.bf16.mxu0 0
        %2165 = vmatpush2.bf16.msra.mxu0 0
        %2166 = vmatprep.subr.bf16.mxu0 0
        %2167 = vmatpush2.bf16.msra.mxu0 0
        %2168 = vmatprep.subr.bf16.mxu0 0
        %2169 = vmatpush2.bf16.msra.mxu0 0
        %2170 = vmatprep.subr.bf16.mxu0 0
        %2171 = vmatpush2.bf16.msra.mxu0 0
        %2172 = vmatprep.subr.bf16.mxu0 0
        %2173 = vmatpush2.bf16.msra.mxu0 0
        %2174 = vmatprep.mubr.bf16.mxu0 0
        %2175 = vmatmul.mubr.bf16.gmra.mxu0 %v2085
        %v2176 = vpop.f32.mrf.mxu0
        %v2177 = vadd.f32 %v2066, %v2176
        %v2178 = vpop.f32.mrf.mxu0
        %v2179 = vpop.f32.mrf.mxu0
        %v2180 = vadd.f32 %v2066, %v2179
        %v2181 = vpop.f32.mrf.mxu0
        %2182 = vmatprep.mubr.bf16.mxu0 0
        %2183 = vmatmul.mubr.bf16.gmra.mxu0 %v2088
        %v2184 = vpop.f32.mrf.mxu0
        %v2185 = vadd.f32 %v2066, %v2184
        %v2186 = vpop.f32.mrf.mxu0
        %v2187 = vpop.f32.mrf.mxu0
        %v2188 = vadd.f32 %v2066, %v2187
        %v2189 = vpop.f32.mrf.mxu0
        %2190 = vmatprep.mubr.bf16.mxu0 0
        %2191 = vmatmul.mubr.bf16.gmra.mxu0 %v2091
        %v2192 = vpop.f32.mrf.mxu0
        %v2193 = vadd.f32 %v2066, %v2192
        %v2194 = vpop.f32.mrf.mxu0
        %v2195 = vpop.f32.mrf.mxu0
        %v2196 = vadd.f32 %v2066, %v2195
        %v2197 = vpop.f32.mrf.mxu0
        %2198 = vmatprep.mubr.bf16.mxu0 0
        %2199 = vmatmul.mubr.bf16.gmra.mxu0 %v2094
        %v2200 = vpop.f32.mrf.mxu0
        %v2201 = vadd.f32 %v2066, %v2200
        %v2202 = vpop.f32.mrf.mxu0
        %v2203 = vpop.f32.mrf.mxu0
        %v2204 = vadd.f32 %v2066, %v2203
        %v2205 = vpop.f32.mrf.mxu0
        %2206 = vmatprep.mubr.bf16.mxu0 0
        %2207 = vmatmul.mubr.bf16.gmra.mxu0 %v2097
        %v2208 = vpop.f32.mrf.mxu0
        %v2209 = vadd.f32 %v2066, %v2208
        %v2210 = vpop.f32.mrf.mxu0
        %v2211 = vpop.f32.mrf.mxu0
        %v2212 = vadd.f32 %v2066, %v2211
        %v2213 = vpop.f32.mrf.mxu0
        %2214 = vmatprep.mubr.bf16.mxu0 0
        %2215 = vmatmul.mubr.bf16.gmra.mxu0 %v2100
        %v2216 = vpop.f32.mrf.mxu0
        %v2217 = vadd.f32 %v2066, %v2216
        %v2218 = vpop.f32.mrf.mxu0
        %v2219 = vpop.f32.mrf.mxu0
        %v2220 = vadd.f32 %v2066, %v2219
        %v2221 = vpop.f32.mrf.mxu0
        %2222 = vmatprep.mubr.bf16.mxu0 0
        %2223 = vmatmul.mubr.bf16.gmra.mxu0 %v2103
        %v2224 = vpop.f32.mrf.mxu0
        %v2225 = vadd.f32 %v2066, %v2224
        %v2226 = vpop.f32.mrf.mxu0
        %v2227 = vpop.f32.mrf.mxu0
        %v2228 = vadd.f32 %v2066, %v2227
        %v2229 = vpop.f32.mrf.mxu0
        %2230 = vmatprep.mubr.bf16.mxu0 0
        %2231 = vmatmul.mubr.bf16.gmra.mxu0 %v2106
        %v2232 = vpop.f32.mrf.mxu0
        %v2233 = vadd.f32 %v2066, %v2232
        %v2234 = vpop.f32.mrf.mxu0
        %v2235 = vpop.f32.mrf.mxu0
        %v2236 = vadd.f32 %v2066, %v2235
        %v2237 = vpop.f32.mrf.mxu0
        %2238 = vmatprep.mubr.bf16.mxu0 0
        %2239 = vmatmul.mubr.bf16.gmra.mxu0 %v2109
        %v2240 = vpop.f32.mrf.mxu0
        %v2241 = vadd.f32 %v2066, %v2240
        %v2242 = vpop.f32.mrf.mxu0
        %v2243 = vpop.f32.mrf.mxu0
        %v2244 = vadd.f32 %v2066, %v2243
        %v2245 = vpop.f32.mrf.mxu0
        %2246 = vmatprep.mubr.bf16.mxu0 0
        %2247 = vmatmul.mubr.bf16.gmra.mxu0 %v2112
        %v2248 = vpop.f32.mrf.mxu0
        %v2249 = vadd.f32 %v2066, %v2248
        %v2250 = vpop.f32.mrf.mxu0
        %v2251 = vpop.f32.mrf.mxu0
        %v2252 = vadd.f32 %v2066, %v2251
        %v2253 = vpop.f32.mrf.mxu0
        %2254 = vmatprep.mubr.bf16.mxu0 0
        %2255 = vmatmul.mubr.bf16.gmra.mxu0 %v2115
        %v2256 = vpop.f32.mrf.mxu0
        %v2257 = vadd.f32 %v2066, %v2256
        %v2258 = vpop.f32.mrf.mxu0
        %v2259 = vpop.f32.mrf.mxu0
        %v2260 = vadd.f32 %v2066, %v2259
        %v2261 = vpop.f32.mrf.mxu0
        %2262 = vmatprep.mubr.bf16.mxu0 0
        %2263 = vmatmul.mubr.bf16.gmra.mxu0 %v2118
        %v2264 = vpop.f32.mrf.mxu0
        %v2265 = vadd.f32 %v2066, %v2264
        %v2266 = vpop.f32.mrf.mxu0
        %v2267 = vpop.f32.mrf.mxu0
        %v2268 = vadd.f32 %v2066, %v2267
        %v2269 = vpop.f32.mrf.mxu0
        %2270 = vmatprep.mubr.bf16.mxu0 0
        %2271 = vmatmul.mubr.bf16.gmra.mxu0 %v2121
        %v2272 = vpop.f32.mrf.mxu0
        %v2273 = vadd.f32 %v2066, %v2272
        %v2274 = vpop.f32.mrf.mxu0
        %v2275 = vpop.f32.mrf.mxu0
        %v2276 = vadd.f32 %v2066, %v2275
        %v2277 = vpop.f32.mrf.mxu0
        %2278 = vmatprep.mubr.bf16.mxu0 0
        %2279 = vmatmul.mubr.bf16.gmra.mxu0 %v2124
        %v2280 = vpop.f32.mrf.mxu0
        %v2281 = vadd.f32 %v2066, %v2280
        %v2282 = vpop.f32.mrf.mxu0
        %v2283 = vpop.f32.mrf.mxu0
        %v2284 = vadd.f32 %v2066, %v2283
        %v2285 = vpop.f32.mrf.mxu0
        %2286 = vmatprep.mubr.bf16.mxu0 0
        %2287 = vmatmul.mubr.bf16.gmra.mxu0 %v2127
        %v2288 = vpop.f32.mrf.mxu0
        %v2289 = vadd.f32 %v2066, %v2288
        %v2290 = vpop.f32.mrf.mxu0
        %v2291 = vpop.f32.mrf.mxu0
        %v2292 = vadd.f32 %v2066, %v2291
        %v2293 = vpop.f32.mrf.mxu0
        %2294 = vmatprep.mubr.bf16.mxu0 0
        %2295 = vmatmul.mubr.bf16.gmra.mxu0 %v2130
        %v2296 = vpop.f32.mrf.mxu0
        %v2297 = vadd.f32 %v2066, %v2296
        %v2298 = vpop.f32.mrf.mxu0
        %v2299 = vpop.f32.mrf.mxu0
        %v2300 = vadd.f32 %v2066, %v2299
        %v2301 = vpop.f32.mrf.mxu0
        %2302 = vmatprep.mubr.bf16.mxu0 0
        %2303 = vmatmul.mubr.bf16.gmra.mxu0 %v2133
        %v2304 = vpop.f32.mrf.mxu0
        %v2305 = vadd.f32 %v2066, %v2304
        %v2306 = vpop.f32.mrf.mxu0
        %v2307 = vpop.f32.mrf.mxu0
        %v2308 = vadd.f32 %v2066, %v2307
        %v2309 = vpop.f32.mrf.mxu0
        %2310 = vmatprep.mubr.bf16.mxu0 0
        %2311 = vmatmul.mubr.bf16.gmra.mxu0 %v2136
        %v2312 = vpop.f32.mrf.mxu0
        %v2313 = vadd.f32 %v2066, %v2312
        %v2314 = vpop.f32.mrf.mxu0
        %v2315 = vpop.f32.mrf.mxu0
        %v2316 = vadd.f32 %v2066, %v2315
        %v2317 = vpop.f32.mrf.mxu0
        %2318 = vdwg.mxu0
        %v2319 = vmax.f32 %v2177, 0.0
        %v2320 = vmax.f32 %v2180, 0.0
        %v2321 = vmax.f32 %v2185, 0.0
        %v2322 = vmax.f32 %v2188, 0.0
        %v2323 = vmax.f32 %v2193, 0.0
        %v2324 = vmax.f32 %v2196, 0.0
        %v2325 = vmax.f32 %v2201, 0.0
        %v2326 = vmax.f32 %v2204, 0.0
        %v2327 = vmax.f32 %v2209, 0.0
        %v2328 = vmax.f32 %v2212, 0.0
        %v2329 = vmax.f32 %v2217, 0.0
        %v2330 = vmax.f32 %v2220, 0.0
        %v2331 = vmax.f32 %v2225, 0.0
        %v2332 = vmax.f32 %v2228, 0.0
        %v2333 = vmax.f32 %v2233, 0.0
        %v2334 = vmax.f32 %v2236, 0.0
        %v2335 = vmax.f32 %v2241, 0.0
        %v2336 = vmax.f32 %v2244, 0.0
        %v2337 = vmax.f32 %v2249, 0.0
        %v2338 = vmax.f32 %v2252, 0.0
        %v2339 = vmax.f32 %v2257, 0.0
        %v2340 = vmax.f32 %v2260, 0.0
        %v2341 = vmax.f32 %v2265, 0.0
        %v2342 = vmax.f32 %v2268, 0.0
        %v2343 = vmax.f32 %v2273, 0.0
        %v2344 = vmax.f32 %v2276, 0.0
        %v2345 = vmax.f32 %v2281, 0.0
        %v2346 = vmax.f32 %v2284, 0.0
        %v2347 = vmax.f32 %v2289, 0.0
        %v2348 = vmax.f32 %v2292, 0.0
        %v2349 = vmax.f32 %v2297, 0.0
        %v2350 = vmax.f32 %v2300, 0.0
        %v2351 = vmax.f32 %v2305, 0.0
        %v2352 = vmax.f32 %v2308, 0.0
        %v2353 = vmax.f32 %v2313, 0.0
        %v2354 = vmax.f32 %v2316, 0.0
        %v2355 = vld [vmem:[%s658] sm:$0xff]
        %v2356 = vld [vmem:[%s658 + $0x8] sm:$0xff]
        %v2357 = vld [vmem:[%s658 + $0x10] sm:$0xff]
        %v2358 = vld [vmem:[%s658 + $0x18] sm:$0xff]
        %v2359 = vld [vmem:[%s658 + $0x20] sm:$0xff]
        %v2360 = vld [vmem:[%s658 + $0x28] sm:$0xff]
        %v2361 = vld [vmem:[%s658 + $0x30] sm:$0xff]
        %v2362 = vld [vmem:[%s658 + $0x38] sm:$0xff]
        %v2363 = vld [vmem:[%s658 + $0x40] sm:$0xff]
        %v2364 = vld [vmem:[%s658 + $0x48] sm:$0xff]
        %v2365 = vld [vmem:[%s658 + $0x50] sm:$0xff]
        %v2366 = vld [vmem:[%s658 + $0x58] sm:$0xff]
        %v2367 = vld [vmem:[%s658 + $0x60] sm:$0xff]
        %v2368 = vld [vmem:[%s658 + $0x68] sm:$0xff]
        %v2369 = vld [vmem:[%s658 + $0x70] sm:$0xff]
        %v2370 = vld [vmem:[%s658 + $0x78] sm:$0xff]
        %v2371 = vld [vmem:[%s658 + $0x80] sm:$0xff]
        %v2372 = vld [vmem:[%s658 + $0x88] sm:$0xff]
        %v2373 = vld [vmem:[%s658 + $0x90] sm:$0xff]
        %v2374 = vld [vmem:[%s658 + $0x98] sm:$0xff]
        %v2375 = vld [vmem:[%s658 + $0xa0] sm:$0xff]
        %v2376 = vld [vmem:[%s658 + $0xa8] sm:$0xff]
        %v2377 = vld [vmem:[%s658 + $0xb0] sm:$0xff]
        %v2378 = vld [vmem:[%s658 + $0xb8] sm:$0xff]
        %v2379 = vld [vmem:[%s658 + $0xc0] sm:$0xff]
        %v2380 = vld [vmem:[%s658 + $0xc8] sm:$0xff]
        %v2381 = vld [vmem:[%s658 + $0xd0] sm:$0xff]
        %v2382 = vld [vmem:[%s658 + $0xd8] sm:$0xff]
        %v2383 = vld [vmem:[%s658 + $0xe0] sm:$0xff]
        %v2384 = vld [vmem:[%s658 + $0xe8] sm:$0xff]
        %v2385 = vld [vmem:[%s658 + $0xf0] sm:$0xff]
        %v2386 = vld [vmem:[%s658 + $0xf8] sm:$0xff]
        %v2387 = vld [vmem:[%s658 + $0x100] sm:$0xff]
        %v2388 = vld [vmem:[%s658 + $0x108] sm:$0xff]
        %v2389 = vld [vmem:[%s658 + $0x110] sm:$0xff]
        %v2390 = vld [vmem:[%s658 + $0x118] sm:$0xff]
        %vm2391 = vcmask 7168
        %v2392 = vsel %vm2391, %v2355, 0.0
        %v2393 = vsel %vm2391, %v2356, 0.0
        %v2394 = vadd.f32 %v2392, %v2393
        %v2395 = vsel %vm2391, %v2357, 0.0
        %v2396 = vadd.f32 %v2394, %v2395
        %v2397 = vsel %vm2391, %v2358, 0.0
        %v2398 = vadd.f32 %v2396, %v2397
        %v2399 = vsel %vm2391, %v2359, 0.0
        %v2400 = vadd.f32 %v2398, %v2399
        %v2401 = vsel %vm2391, %v2360, 0.0
        %v2402 = vadd.f32 %v2400, %v2401
        %v2403 = vsel %vm2391, %v2361, 0.0
        %v2404 = vadd.f32 %v2402, %v2403
        %v2405 = vsel %vm2391, %v2362, 0.0
        %v2406 = vadd.f32 %v2404, %v2405
        %v2407 = vsel %vm2391, %v2363, 0.0
        %v2408 = vadd.f32 %v2406, %v2407
        %v2409 = vsel %vm2391, %v2364, 0.0
        %v2410 = vadd.f32 %v2408, %v2409
        %v2411 = vsel %vm2391, %v2365, 0.0
        %v2412 = vadd.f32 %v2410, %v2411
        %v2413 = vsel %vm2391, %v2366, 0.0
        %v2414 = vadd.f32 %v2412, %v2413
        %v2415 = vsel %vm2391, %v2367, 0.0
        %v2416 = vadd.f32 %v2414, %v2415
        %v2417 = vsel %vm2391, %v2368, 0.0
        %v2418 = vadd.f32 %v2416, %v2417
        %v2419 = vsel %vm2391, %v2369, 0.0
        %v2420 = vadd.f32 %v2418, %v2419
        %v2421 = vsel %vm2391, %v2370, 0.0
        %v2422 = vadd.f32 %v2420, %v2421
        %v2423 = vsel %vm2391, %v2371, 0.0
        %v2424 = vadd.f32 %v2422, %v2423
        %v2425 = vsel %vm2391, %v2372, 0.0
        %v2426 = vadd.f32 %v2424, %v2425
        %v2427 = vsel %vm2391, %v2373, 0.0
        %v2428 = vadd.f32 %v2426, %v2427
        %v2429 = vsel %vm2391, %v2374, 0.0
        %v2430 = vadd.f32 %v2428, %v2429
        %v2431 = vsel %vm2391, %v2375, 0.0
        %v2432 = vadd.f32 %v2430, %v2431
        %v2433 = vsel %vm2391, %v2376, 0.0
        %v2434 = vadd.f32 %v2432, %v2433
        %v2435 = vsel %vm2391, %v2377, 0.0
        %v2436 = vadd.f32 %v2434, %v2435
        %v2437 = vsel %vm2391, %v2378, 0.0
        %v2438 = vadd.f32 %v2436, %v2437
        %v2439 = vsel %vm2391, %v2379, 0.0
        %v2440 = vadd.f32 %v2438, %v2439
        %v2441 = vsel %vm2391, %v2380, 0.0
        %v2442 = vadd.f32 %v2440, %v2441
        %v2443 = vsel %vm2391, %v2381, 0.0
        %v2444 = vadd.f32 %v2442, %v2443
        %v2445 = vsel %vm2391, %v2382, 0.0
        %v2446 = vadd.f32 %v2444, %v2445
        %v2447 = vsel %vm2391, %v2383, 0.0
        %v2448 = vadd.f32 %v2446, %v2447
        %v2449 = vsel %vm2391, %v2384, 0.0
        %v2450 = vadd.f32 %v2448, %v2449
        %v2451 = vsel %vm2391, %v2385, 0.0
        %v2452 = vadd.f32 %v2450, %v2451
        %v2453 = vsel %vm2391, %v2386, 0.0
        %v2454 = vadd.f32 %v2452, %v2453
        %v2455 = vsel %vm2391, %v2387, 0.0
        %v2456 = vadd.f32 %v2454, %v2455
        %v2457 = vsel %vm2391, %v2388, 0.0
        %v2458 = vadd.f32 %v2456, %v2457
        %v2459 = vsel %vm2391, %v2389, 0.0
        %v2460 = vadd.f32 %v2458, %v2459
        %v2461 = vsel %vm2391, %v2390, 0.0
        %v2462 = vadd.f32 %v2460, %v2461
        %v2463 = vrot.slane %v2462, 4
        %v2464 = vadd.f32 %v2462, %v2463
        %v2465 = vrot.slane %v2464, 2
        %v2466 = vadd.f32 %v2464, %v2465
        %v2467 = vrot.slane %v2466, 1
        %v2468 = vadd.f32 %v2466, %v2467
        %2470 = vset.pattern.permute.xlu0 0
        %2471 = vperm.xlu0 %2470, %v2355
        %v2472 = vpop.permute.xlu0 %2471
        %2475 = vset.pattern.permute.xlu0 0
        %2476 = vperm.xlu0 %2475, %v2356
        %v2477 = vpop.permute.xlu0 %2476
        %2480 = vset.pattern.permute.xlu0 0
        %2481 = vperm.xlu0 %2480, %v2357
        %v2482 = vpop.permute.xlu0 %2481
        %2485 = vset.pattern.permute.xlu0 0
        %2486 = vperm.xlu0 %2485, %v2358
        %v2487 = vpop.permute.xlu0 %2486
        %2490 = vset.pattern.permute.xlu0 0
        %2491 = vperm.xlu0 %2490, %v2359
        %v2492 = vpop.permute.xlu0 %2491
        %2495 = vset.pattern.permute.xlu0 0
        %2496 = vperm.xlu0 %2495, %v2360
        %v2497 = vpop.permute.xlu0 %2496
        %2500 = vset.pattern.permute.xlu0 0
        %2501 = vperm.xlu0 %2500, %v2361
        %v2502 = vpop.permute.xlu0 %2501
        %2505 = vset.pattern.permute.xlu0 0
        %2506 = vperm.xlu0 %2505, %v2362
        %v2507 = vpop.permute.xlu0 %2506
        %2510 = vset.pattern.permute.xlu0 0
        %2511 = vperm.xlu0 %2510, %v2363
        %v2512 = vpop.permute.xlu0 %2511
        %2515 = vset.pattern.permute.xlu0 0
        %2516 = vperm.xlu0 %2515, %v2364
        %v2517 = vpop.permute.xlu0 %2516
        %2520 = vset.pattern.permute.xlu0 0
        %2521 = vperm.xlu0 %2520, %v2365
        %v2522 = vpop.permute.xlu0 %2521
        %2525 = vset.pattern.permute.xlu0 0
        %2526 = vperm.xlu0 %2525, %v2366
        %v2527 = vpop.permute.xlu0 %2526
        %2530 = vset.pattern.permute.xlu0 0
        %2531 = vperm.xlu0 %2530, %v2367
        %v2532 = vpop.permute.xlu0 %2531
        %2535 = vset.pattern.permute.xlu0 0
        %2536 = vperm.xlu0 %2535, %v2368
        %v2537 = vpop.permute.xlu0 %2536
        %2540 = vset.pattern.permute.xlu0 0
        %2541 = vperm.xlu0 %2540, %v2369
        %v2542 = vpop.permute.xlu0 %2541
        %2545 = vset.pattern.permute.xlu0 0
        %2546 = vperm.xlu0 %2545, %v2370
        %v2547 = vpop.permute.xlu0 %2546
        %2550 = vset.pattern.permute.xlu0 0
        %2551 = vperm.xlu0 %2550, %v2371
        %v2552 = vpop.permute.xlu0 %2551
        %2555 = vset.pattern.permute.xlu0 0
        %2556 = vperm.xlu0 %2555, %v2372
        %v2557 = vpop.permute.xlu0 %2556
        %2560 = vset.pattern.permute.xlu0 0
        %2561 = vperm.xlu0 %2560, %v2373
        %v2562 = vpop.permute.xlu0 %2561
        %2565 = vset.pattern.permute.xlu0 0
        %2566 = vperm.xlu0 %2565, %v2374
        %v2567 = vpop.permute.xlu0 %2566
        %2570 = vset.pattern.permute.xlu0 0
        %2571 = vperm.xlu0 %2570, %v2375
        %v2572 = vpop.permute.xlu0 %2571
        %2575 = vset.pattern.permute.xlu0 0
        %2576 = vperm.xlu0 %2575, %v2376
        %v2577 = vpop.permute.xlu0 %2576
        %2580 = vset.pattern.permute.xlu0 0
        %2581 = vperm.xlu0 %2580, %v2377
        %v2582 = vpop.permute.xlu0 %2581
        %2585 = vset.pattern.permute.xlu0 0
        %2586 = vperm.xlu0 %2585, %v2378
        %v2587 = vpop.permute.xlu0 %2586
        %2590 = vset.pattern.permute.xlu0 0
        %2591 = vperm.xlu0 %2590, %v2379
        %v2592 = vpop.permute.xlu0 %2591
        %2595 = vset.pattern.permute.xlu0 0
        %2596 = vperm.xlu0 %2595, %v2380
        %v2597 = vpop.permute.xlu0 %2596
        %2600 = vset.pattern.permute.xlu0 0
        %2601 = vperm.xlu0 %2600, %v2381
        %v2602 = vpop.permute.xlu0 %2601
        %2605 = vset.pattern.permute.xlu0 0
        %2606 = vperm.xlu0 %2605, %v2382
        %v2607 = vpop.permute.xlu0 %2606
        %2610 = vset.pattern.permute.xlu0 0
        %2611 = vperm.xlu0 %2610, %v2383
        %v2612 = vpop.permute.xlu0 %2611
        %2615 = vset.pattern.permute.xlu0 0
        %2616 = vperm.xlu0 %2615, %v2384
        %v2617 = vpop.permute.xlu0 %2616
        %2620 = vset.pattern.permute.xlu0 0
        %2621 = vperm.xlu0 %2620, %v2385
        %v2622 = vpop.permute.xlu0 %2621
        %2625 = vset.pattern.permute.xlu0 0
        %2626 = vperm.xlu0 %2625, %v2386
        %v2627 = vpop.permute.xlu0 %2626
        %2630 = vset.pattern.permute.xlu0 0
        %2631 = vperm.xlu0 %2630, %v2387
        %v2632 = vpop.permute.xlu0 %2631
        %2635 = vset.pattern.permute.xlu0 0
        %2636 = vperm.xlu0 %2635, %v2388
        %v2637 = vpop.permute.xlu0 %2636
        %2640 = vset.pattern.permute.xlu0 0
        %2641 = vperm.xlu0 %2640, %v2389
        %v2642 = vpop.permute.xlu0 %2641
        %2645 = vset.pattern.permute.xlu0 0
        %2646 = vperm.xlu0 %2645, %v2390
        %v2647 = vpop.permute.xlu0 %2646
        %v2649 = vmul.f32 %v2319, %v2472
        %v2650 = vmul.f32 %v2320, %v2477
        %v2651 = vmul.f32 %v2321, %v2482
        %v2652 = vmul.f32 %v2322, %v2487
        %v2653 = vmul.f32 %v2323, %v2492
        %v2654 = vmul.f32 %v2324, %v2497
        %v2655 = vmul.f32 %v2325, %v2502
        %v2656 = vmul.f32 %v2326, %v2507
        %v2657 = vmul.f32 %v2327, %v2512
        %v2658 = vmul.f32 %v2328, %v2517
        %v2659 = vmul.f32 %v2329, %v2522
        %v2660 = vmul.f32 %v2330, %v2527
        %v2661 = vmul.f32 %v2331, %v2532
        %v2662 = vmul.f32 %v2332, %v2537
        %v2663 = vmul.f32 %v2333, %v2542
        %v2664 = vmul.f32 %v2334, %v2547
        %v2665 = vmul.f32 %v2335, %v2552
        %v2666 = vmul.f32 %v2336, %v2557
        %v2667 = vmul.f32 %v2337, %v2562
        %v2668 = vmul.f32 %v2338, %v2567
        %v2669 = vmul.f32 %v2339, %v2572
        %v2670 = vmul.f32 %v2340, %v2577
        %v2671 = vmul.f32 %v2341, %v2582
        %v2672 = vmul.f32 %v2342, %v2587
        %v2673 = vmul.f32 %v2343, %v2592
        %v2674 = vmul.f32 %v2344, %v2597
        %v2675 = vmul.f32 %v2345, %v2602
        %v2676 = vmul.f32 %v2346, %v2607
        %v2677 = vmul.f32 %v2347, %v2612
        %v2678 = vmul.f32 %v2348, %v2617
        %v2679 = vmul.f32 %v2349, %v2622
        %v2680 = vmul.f32 %v2350, %v2627
        %v2681 = vmul.f32 %v2351, %v2632
        %v2682 = vmul.f32 %v2352, %v2637
        %v2683 = vmul.f32 %v2353, %v2642
        %v2684 = vmul.f32 %v2354, %v2647
        %vm2685 = vcmask 261120
        %v2686 = vsel %vm2685, %v2649, 0.0
        %v2687 = vsel %vm2685, %v2650, 0.0
        %v2688 = vadd.f32 %v2686, %v2687
        %v2689 = vsel %vm2685, %v2651, 0.0
        %v2690 = vadd.f32 %v2688, %v2689
        %v2691 = vsel %vm2685, %v2652, 0.0
        %v2692 = vadd.f32 %v2690, %v2691
        %v2693 = vsel %vm2685, %v2653, 0.0
        %v2694 = vadd.f32 %v2692, %v2693
        %v2695 = vsel %vm2685, %v2654, 0.0
        %v2696 = vadd.f32 %v2694, %v2695
        %v2697 = vsel %vm2685, %v2655, 0.0
        %v2698 = vadd.f32 %v2696, %v2697
        %v2699 = vsel %vm2685, %v2656, 0.0
        %v2700 = vadd.f32 %v2698, %v2699
        %v2701 = vsel %vm2685, %v2657, 0.0
        %v2702 = vadd.f32 %v2700, %v2701
        %v2703 = vsel %vm2685, %v2658, 0.0
        %v2704 = vadd.f32 %v2702, %v2703
        %v2705 = vsel %vm2685, %v2659, 0.0
        %v2706 = vadd.f32 %v2704, %v2705
        %v2707 = vsel %vm2685, %v2660, 0.0
        %v2708 = vadd.f32 %v2706, %v2707
        %v2709 = vsel %vm2685, %v2661, 0.0
        %v2710 = vadd.f32 %v2708, %v2709
        %v2711 = vsel %vm2685, %v2662, 0.0
        %v2712 = vadd.f32 %v2710, %v2711
        %v2713 = vsel %vm2685, %v2663, 0.0
        %v2714 = vadd.f32 %v2712, %v2713
        %v2715 = vsel %vm2685, %v2664, 0.0
        %v2716 = vadd.f32 %v2714, %v2715
        %v2717 = vsel %vm2685, %v2665, 0.0
        %v2718 = vadd.f32 %v2716, %v2717
        %v2719 = vsel %vm2685, %v2666, 0.0
        %v2720 = vadd.f32 %v2718, %v2719
        %v2721 = vsel %vm2685, %v2667, 0.0
        %v2722 = vadd.f32 %v2720, %v2721
        %v2723 = vsel %vm2685, %v2668, 0.0
        %v2724 = vadd.f32 %v2722, %v2723
        %v2725 = vsel %vm2685, %v2669, 0.0
        %v2726 = vadd.f32 %v2724, %v2725
        %v2727 = vsel %vm2685, %v2670, 0.0
        %v2728 = vadd.f32 %v2726, %v2727
        %v2729 = vsel %vm2685, %v2671, 0.0
        %v2730 = vadd.f32 %v2728, %v2729
        %v2731 = vsel %vm2685, %v2672, 0.0
        %v2732 = vadd.f32 %v2730, %v2731
        %v2733 = vsel %vm2685, %v2673, 0.0
        %v2734 = vadd.f32 %v2732, %v2733
        %v2735 = vsel %vm2685, %v2674, 0.0
        %v2736 = vadd.f32 %v2734, %v2735
        %v2737 = vsel %vm2685, %v2675, 0.0
        %v2738 = vadd.f32 %v2736, %v2737
        %v2739 = vsel %vm2685, %v2676, 0.0
        %v2740 = vadd.f32 %v2738, %v2739
        %v2741 = vsel %vm2685, %v2677, 0.0
        %v2742 = vadd.f32 %v2740, %v2741
        %v2743 = vsel %vm2685, %v2678, 0.0
        %v2744 = vadd.f32 %v2742, %v2743
        %v2745 = vsel %vm2685, %v2679, 0.0
        %v2746 = vadd.f32 %v2744, %v2745
        %v2747 = vsel %vm2685, %v2680, 0.0
        %v2748 = vadd.f32 %v2746, %v2747
        %v2749 = vsel %vm2685, %v2681, 0.0
        %v2750 = vadd.f32 %v2748, %v2749
        %v2751 = vsel %vm2685, %v2682, 0.0
        %v2752 = vadd.f32 %v2750, %v2751
        %v2753 = vsel %vm2685, %v2683, 0.0
        %v2754 = vadd.f32 %v2752, %v2753
        %v2755 = vsel %vm2685, %v2684, 0.0
        %v2756 = vadd.f32 %v2754, %v2755
        %v2757 = vrot.slane %v2756, 4
        %v2758 = vadd.f32 %v2756, %v2757
        %v2759 = vrot.slane %v2758, 2
        %v2760 = vadd.f32 %v2758, %v2759
        %v2761 = vrot.slane %v2760, 1
        %v2762 = vadd.f32 %v2760, %v2761
        %v2763 = vadd.f32 %v2468, 1e-10
        %2765 = vset.pattern.permute.xlu0 0
        %2766 = vperm.xlu0 %2765, %v2763
        %v2767 = vpop.permute.xlu0 %2766
        %v2769 = vrcp.pop %v2767
        %v2770 = vmul.f32 %v2762, %v2769
        %v2771 = vld [vmem:[%s662] sm:$0xff]
        %v2772 = vlaneseq
        %v2773 = vand.u32 %v2772, 127
        %2774 = vset.pattern.permute.xlu0 0
        %2775 = vperm.xlu0 %2774, %v2771
        %v2776 = vpop.permute.xlu0 %2775
        %vm2777 = vcmp.eq.s32.totalorder %v2773, %v2776
        %v2778 = vsel %vm2777, 1, 0
        %v2779 = vcvt.s32.f32 %v2778
        %v2780 = vpack.c.bf16 %v2779, %v2779
        %v2781 = vld [vmem:[%s6] sm:$0xf]
        %v2782 = vld [vmem:[%s6 + $0x4] sm:$0xf]
        %v2783 = vld [vmem:[%s6 + $0x8] sm:$0xf]
        %v2784 = vld [vmem:[%s6 + $0xc] sm:$0xf]
        %v2789 = vunpack.c.l.b16 %v2781
        %v2790 = vunpack.c.l.b16 %v2782
        %v2791 = vunpack.c.l.b16 %v2783
        %v2792 = vunpack.c.l.b16 %v2784
        %v2793 = vpack.c.b16 %v2790, %v2789
        %v2794 = vpack.c.b16 %v2792, %v2791
        %v2798 = vsel %vm2685, %v2780, 0
        %2800 = vmatprep.subr.bf16.mxu0 0
        %2801 = vmatpush1.bf16.msra.mxu0 0
        %2802 = vmatprep.subr.bf16.mxu0 0
        %2803 = vmatpush1.bf16.msra.mxu0 0
        %2804 = vmatprep.subr.bf16.mxu0 0
        %2805 = vmatpush1.bf16.msra.mxu0 0
        %2806 = vmatprep.subr.bf16.mxu0 0
        %2807 = vmatpush1.bf16.msra.mxu0 0
        %2808 = vmatprep.subr.bf16.mxu0 0
        %2809 = vmatpush1.bf16.msra.mxu0 0
        %2810 = vmatprep.subr.bf16.mxu0 0
        %2811 = vmatpush1.bf16.msra.mxu0 0
        %2812 = vmatprep.subr.bf16.mxu0 0
        %2813 = vmatpush1.bf16.msra.mxu0 %v2794
        %2814 = vmatprep.subr.bf16.mxu0 0
        %2815 = vmatpush1.bf16.msra.mxu0 %v2793
        %2816 = vmatprep.subr.bf16.mxu0 0
        %2817 = vmatpush2.bf16.msra.mxu0 0
        %2818 = vmatprep.subr.bf16.mxu0 0
        %2819 = vmatpush2.bf16.msra.mxu0 0
        %2820 = vmatprep.subr.bf16.mxu0 0
        %2821 = vmatpush2.bf16.msra.mxu0 0
        %2822 = vmatprep.subr.bf16.mxu0 0
        %2823 = vmatpush2.bf16.msra.mxu0 0
        %2824 = vmatprep.subr.bf16.mxu0 0
        %2825 = vmatpush2.bf16.msra.mxu0 0
        %2826 = vmatprep.subr.bf16.mxu0 0
        %2827 = vmatpush2.bf16.msra.mxu0 0
        %2828 = vmatprep.subr.bf16.mxu0 0
        %2829 = vmatpush2.bf16.msra.mxu0 0
        %2830 = vmatprep.subr.bf16.mxu0 0
        %2831 = vmatpush2.bf16.msra.mxu0 0
        %2832 = vmatprep.mubr.bf16.mxu0 0
        %2833 = vmatmul.mubr.bf16.gmra.mxu0 %v2798
        %v2834 = vpop.f32.mrf.mxu0
        %v2835 = vadd.f32 0.0, %v2834
        %v2836 = vpop.f32.mrf.mxu0
        %v2837 = vpop.f32.mrf.mxu0
        %v2838 = vpop.f32.mrf.mxu0
        %2839 = vdwg.mxu0
        %v2840 = vpack.c.bf16 %v2770, %v2770
        %v2841 = vld [vmem:[%s8] sm:$0xf]
        %v2842 = vld [vmem:[%s8 + $0x4] sm:$0xf]
        %v2843 = vld [vmem:[%s8 + $0x8] sm:$0xf]
        %v2844 = vld [vmem:[%s8 + $0xc] sm:$0xf]
        %v2849 = vunpack.c.l.b16 %v2841
        %v2850 = vunpack.c.l.b16 %v2842
        %v2851 = vunpack.c.l.b16 %v2843
        %v2852 = vunpack.c.l.b16 %v2844
        %v2853 = vpack.c.b16 %v2850, %v2849
        %v2854 = vpack.c.b16 %v2852, %v2851
        %v2858 = vsel %vm2685, %v2840, 0
        %2860 = vmatprep.subr.bf16.mxu0 0
        %2861 = vmatpush1.bf16.msra.mxu0 0
        %2862 = vmatprep.subr.bf16.mxu0 0
        %2863 = vmatpush1.bf16.msra.mxu0 0
        %2864 = vmatprep.subr.bf16.mxu0 0
        %2865 = vmatpush1.bf16.msra.mxu0 0
        %2866 = vmatprep.subr.bf16.mxu0 0
        %2867 = vmatpush1.bf16.msra.mxu0 0
        %2868 = vmatprep.subr.bf16.mxu0 0
        %2869 = vmatpush1.bf16.msra.mxu0 0
        %2870 = vmatprep.subr.bf16.mxu0 0
        %2871 = vmatpush1.bf16.msra.mxu0 0
        %2872 = vmatprep.subr.bf16.mxu0 0
        %2873 = vmatpush1.bf16.msra.mxu0 %v2854
        %2874 = vmatprep.subr.bf16.mxu0 0
        %2875 = vmatpush1.bf16.msra.mxu0 %v2853
        %2876 = vmatprep.subr.bf16.mxu0 0
        %2877 = vmatpush2.bf16.msra.mxu0 0
        %2878 = vmatprep.subr.bf16.mxu0 0
        %2879 = vmatpush2.bf16.msra.mxu0 0
        %2880 = vmatprep.subr.bf16.mxu0 0
        %2881 = vmatpush2.bf16.msra.mxu0 0
        %2882 = vmatprep.subr.bf16.mxu0 0
        %2883 = vmatpush2.bf16.msra.mxu0 0
        %2884 = vmatprep.subr.bf16.mxu0 0
        %2885 = vmatpush2.bf16.msra.mxu0 0
        %2886 = vmatprep.subr.bf16.mxu0 0
        %2887 = vmatpush2.bf16.msra.mxu0 0
        %2888 = vmatprep.subr.bf16.mxu0 0
        %2889 = vmatpush2.bf16.msra.mxu0 0
        %2890 = vmatprep.subr.bf16.mxu0 0
        %2891 = vmatpush2.bf16.msra.mxu0 0
        %2892 = vmatprep.mubr.bf16.mxu0 0
        %2893 = vmatmul.mubr.bf16.gmra.mxu0 %v2858
        %v2894 = vpop.f32.mrf.mxu0
        %v2895 = vadd.f32 0.0, %v2894
        %v2896 = vpop.f32.mrf.mxu0
        %v2897 = vpop.f32.mrf.mxu0
        %v2898 = vpop.f32.mrf.mxu0
        %2899 = vdwg.mxu0
        %v2900 = vpack.c.bf16 %v2835, %v2835
        %v2901 = vld [vmem:[%s7] sm:$0xf]
        %v2902 = vld [vmem:[%s7 + $0x4] sm:$0xf]
        %v2903 = vlaneseq
        %v2904 = vshrl.u32 %v2903, 7
        %v2905 = vsub.s32 0, %v2904
        %v2906 = vrot.slane %v2895, %v2905
        %v2909 = vunpack.c.l.b16 %v2901
        %v2910 = vunpack.c.l.b16 %v2902
        %v2911 = vpack.c.b16 %v2910, %v2909
        %vm2913 = vcmask 130048
        %v2915 = vsel %vm2913, %v2900, 0
        %2917 = vmatprep.subr.bf16.mxu0 0
        %2918 = vmatpush1.bf16.msra.mxu0 0
        %2919 = vmatprep.subr.bf16.mxu0 0
        %2920 = vmatpush1.bf16.msra.mxu0 0
        %2921 = vmatprep.subr.bf16.mxu0 0
        %2922 = vmatpush1.bf16.msra.mxu0 0
        %2923 = vmatprep.subr.bf16.mxu0 0
        %2924 = vmatpush1.bf16.msra.mxu0 0
        %2925 = vmatprep.subr.bf16.mxu0 0
        %2926 = vmatpush1.bf16.msra.mxu0 0
        %2927 = vmatprep.subr.bf16.mxu0 0
        %2928 = vmatpush1.bf16.msra.mxu0 0
        %2929 = vmatprep.subr.bf16.mxu0 0
        %2930 = vmatpush1.bf16.msra.mxu0 0
        %2931 = vmatprep.subr.bf16.mxu0 0
        %2932 = vmatpush1.bf16.msra.mxu0 %v2911
        %2933 = vmatprep.subr.bf16.mxu0 0
        %2934 = vmatpush2.bf16.msra.mxu0 0
        %2935 = vmatprep.subr.bf16.mxu0 0
        %2936 = vmatpush2.bf16.msra.mxu0 0
        %2937 = vmatprep.subr.bf16.mxu0 0
        %2938 = vmatpush2.bf16.msra.mxu0 0
        %2939 = vmatprep.subr.bf16.mxu0 0
        %2940 = vmatpush2.bf16.msra.mxu0 0
        %2941 = vmatprep.subr.bf16.mxu0 0
        %2942 = vmatpush2.bf16.msra.mxu0 0
        %2943 = vmatprep.subr.bf16.mxu0 0
        %2944 = vmatpush2.bf16.msra.mxu0 0
        %2945 = vmatprep.subr.bf16.mxu0 0
        %2946 = vmatpush2.bf16.msra.mxu0 0
        %2947 = vmatprep.subr.bf16.mxu0 0
        %2948 = vmatpush2.bf16.msra.mxu0 0
        %2949 = vmatprep.mubr.bf16.mxu0 0
        %2950 = vmatmul.mubr.bf16.gmra.mxu0 %v2915
        %v2951 = vpop.f32.mrf.mxu0
        %v2952 = vadd.f32 %v2906, %v2951
        %v2953 = vpop.f32.mrf.mxu0
        %v2954 = vpop.f32.mrf.mxu0
        %v2955 = vpop.f32.mrf.mxu0
        %2956 = vdwg.mxu0
        %v2957 = vld [vmem:[%s9] sm:$0x1]
        %v2959 = vlaneseq
        %v2960 = vshrl.u32 %v2959, 7
        %v2961 = vsub.s32 0, %v2960
        %v2962 = vrot.slane %v2957, %v2961
        %v2964 = vadd.f32 %v2952, %v2962
        %v2965 = vtanh.pop %v2964
        %v2966 = vpack.c.bf16 %v2965, %v2965
        %v2967 = vld [vmem:[%s10] sm:$0xf]
        %v2968 = vld [vmem:[%s10 + $0x4] sm:$0xf]
        %v2969 = vld [vmem:[%s10 + $0x8] sm:$0xf]
        %v2970 = vld [vmem:[%s10 + $0xc] sm:$0xf]
        %v2971 = vld [vmem:[%s11] sm:$0x1]
        %v2973 = vlaneseq
        %v2974 = vshrl.u32 %v2973, 7
        %v2975 = vsub.s32 0, %v2974
        %v2976 = vrot.slane %v2971, %v2975
        %v2982 = vunpack.c.l.b16 %v2967
        %v2983 = vunpack.c.l.b16 %v2968
        %v2984 = vunpack.c.l.b16 %v2969
        %v2985 = vunpack.c.l.b16 %v2970
        %v2986 = vpack.c.b16 %v2983, %v2982
        %v2987 = vpack.c.b16 %v2985, %v2984
        %v2991 = vsel %vm2685, %v2966, 0
        %2993 = vmatprep.subr.bf16.mxu0 0
        %2994 = vmatpush1.bf16.msra.mxu0 0
        %2995 = vmatprep.subr.bf16.mxu0 0
        %2996 = vmatpush1.bf16.msra.mxu0 0
        %2997 = vmatprep.subr.bf16.mxu0 0
        %2998 = vmatpush1.bf16.msra.mxu0 0
        %2999 = vmatprep.subr.bf16.mxu0 0
        %3000 = vmatpush1.bf16.msra.mxu0 0
        %3001 = vmatprep.subr.bf16.mxu0 0
        %3002 = vmatpush1.bf16.msra.mxu0 0
        %3003 = vmatprep.subr.bf16.mxu0 0
        %3004 = vmatpush1.bf16.msra.mxu0 0
        %3005 = vmatprep.subr.bf16.mxu0 0
        %3006 = vmatpush1.bf16.msra.mxu0 %v2987
        %3007 = vmatprep.subr.bf16.mxu0 0
        %3008 = vmatpush1.bf16.msra.mxu0 %v2986
        %3009 = vmatprep.subr.bf16.mxu0 0
        %3010 = vmatpush2.bf16.msra.mxu0 0
        %3011 = vmatprep.subr.bf16.mxu0 0
        %3012 = vmatpush2.bf16.msra.mxu0 0
        %3013 = vmatprep.subr.bf16.mxu0 0
        %3014 = vmatpush2.bf16.msra.mxu0 0
        %3015 = vmatprep.subr.bf16.mxu0 0
        %3016 = vmatpush2.bf16.msra.mxu0 0
        %3017 = vmatprep.subr.bf16.mxu0 0
        %3018 = vmatpush2.bf16.msra.mxu0 0
        %3019 = vmatprep.subr.bf16.mxu0 0
        %3020 = vmatpush2.bf16.msra.mxu0 0
        %3021 = vmatprep.subr.bf16.mxu0 0
        %3022 = vmatpush2.bf16.msra.mxu0 0
        %3023 = vmatprep.subr.bf16.mxu0 0
        %3024 = vmatpush2.bf16.msra.mxu0 0
        %3025 = vmatprep.mubr.bf16.mxu0 0
        %3026 = vmatmul.mubr.bf16.gmra.mxu0 %v2991
        %v3027 = vpop.f32.mrf.mxu0
        %v3028 = vadd.f32 %v2976, %v3027
        %v3029 = vpop.f32.mrf.mxu0
        %v3030 = vpop.f32.mrf.mxu0
        %v3031 = vpop.f32.mrf.mxu0
        %3032 = vdwg.mxu0
        %v3033 = vsel %vm2685, %v3028, -inf
        %3034 = vmax.xlane.f32.xlu0 %v3033
        %v3035 = vpop.xlane.xlu0 %3034
        %v3036 = vsub.f32 %v3028, %v3035
        %v3037 = vmul.f32 %v3036, 1.442695
        %v3038 = vpow.pop %v3037
        %v3039 = vsel %vm2685, %v3038, 0.0
        %3040 = vadd.xlane.f32.xlu0 %v3039
        %v3041 = vpop.xlane.xlu0 %3040
        %v3042 = vlog2.pop %v3041
        %v3043 = vmul.f32 %v3042, 0.6931472
        %v3044 = vadd.f32 %v3035, %v3043
        %v3045 = vmul.f32 %v3028, %v2779
        %v3046 = vsel %vm2685, %v3045, 0.0
        %3047 = vadd.xlane.f32.xlu0 %v3046
        %v3048 = vpop.xlane.xlu0 %3047
        %v3049 = vsub.f32 %v3044, %v3048
        %v3050 = vld [vmem:[%s666] sm:$0xff]
        %v3051 = vmul.f32 %v3049, %v3050
        %v3052 = vsel %vm2391, %v3051, 0.0
        %v3053 = vrot.slane %v3052, 4
        %v3054 = vadd.f32 %v3052, %v3053
        %v3055 = vrot.slane %v3054, 2
        %v3056 = vadd.f32 %v3054, %v3055
        %v3057 = vrot.slane %v3056, 1
        %v3058 = vadd.f32 %v3056, %v3057
        %v3059 = vsel %vm2391, %v3050, 0.0
        %v3060 = vrot.slane %v3059, 4
        %v3061 = vadd.f32 %v3059, %v3060
        %v3062 = vrot.slane %v3061, 2
        %v3063 = vadd.f32 %v3061, %v3062
        %v3064 = vrot.slane %v3063, 1
        %v3065 = vadd.f32 %v3063, %v3064
        %v3066 = vrot.slane %v3049, 4
        %v3067 = vadd.f32 %v3049, %v3066
        %v3068 = vrot.slane %v3067, 2
        %v3069 = vadd.f32 %v3067, %v3068
        %v3070 = vrot.slane %v3069, 1
        %v3071 = vadd.f32 %v3069, %v3070
        %vm3072 = vcmp.eq.s32.totalorder %v2773, 0
        %vm3073 = vcmp.eq.s32.totalorder %v2773, 1
        %vm3074 = vcmp.eq.s32.totalorder %v2773, 2
        %v3075 = vsel %vm3074, %v3071, 0.0
        %3077 = vset.pattern.permute.xlu0 0
        %3078 = vperm.xlu0 %3077, %v3065
        %v3079 = vpop.permute.xlu0 %3078
        %v3081 = vsel %vm3073, %v3079, %v3075
        %3083 = vset.pattern.permute.xlu0 0
        %3084 = vperm.xlu0 %3083, %v3058
        %v3085 = vpop.permute.xlu0 %3084
        %v3087 = vsel %vm3072, %v3085, %v3081
        %vm3088 = vcmask 57344
        %3089 = vst.msk [vmem:[%s673] sm:$0x1] %vm3088, %v3087
        %v3090 = vcvt.s32.f32 %v2773
        %vm3091 = vcmp.eq.f32.partialorder %v3028, %v3035
        %v3092 = vsel %vm3091, %v3090, 32.0
        %v3093 = vsel %vm2685, %v3092, inf
        %3094 = vmin.xlane.f32.xlu0 %v3093
        %v3095 = vpop.xlane.xlu0 %3094
        %vm3096 = vcmp.eq.f32.partialorder %v3090, %v3095
        %v3097 = vsel %vm3096, 1, 0
        %v3098 = vcvt.s32.f32 %v3097
        %v3099 = vpack.c.bf16 %v3098, %v3098
        %v3100 = vld [vmem:[%s12] sm:$0xf]
        %v3101 = vld [vmem:[%s12 + $0x4] sm:$0xf]
        %v3102 = vld [vmem:[%s12 + $0x8] sm:$0xf]
        %v3103 = vld [vmem:[%s12 + $0xc] sm:$0xf]
        %v3108 = vunpack.c.l.b16 %v3100
        %v3109 = vunpack.c.l.b16 %v3101
        %v3110 = vunpack.c.l.b16 %v3102
        %v3111 = vunpack.c.l.b16 %v3103
        %v3112 = vpack.c.b16 %v3109, %v3108
        %v3113 = vpack.c.b16 %v3111, %v3110
        %v3117 = vsel %vm2685, %v3099, 0
        %3119 = vmatprep.subr.bf16.mxu0 0
        %3120 = vmatpush1.bf16.msra.mxu0 0
        %3121 = vmatprep.subr.bf16.mxu0 0
        %3122 = vmatpush1.bf16.msra.mxu0 0
        %3123 = vmatprep.subr.bf16.mxu0 0
        %3124 = vmatpush1.bf16.msra.mxu0 0
        %3125 = vmatprep.subr.bf16.mxu0 0
        %3126 = vmatpush1.bf16.msra.mxu0 0
        %3127 = vmatprep.subr.bf16.mxu0 0
        %3128 = vmatpush1.bf16.msra.mxu0 0
        %3129 = vmatprep.subr.bf16.mxu0 0
        %3130 = vmatpush1.bf16.msra.mxu0 0
        %3131 = vmatprep.subr.bf16.mxu0 0
        %3132 = vmatpush1.bf16.msra.mxu0 %v3113
        %3133 = vmatprep.subr.bf16.mxu0 0
        %3134 = vmatpush1.bf16.msra.mxu0 %v3112
        %3135 = vmatprep.subr.bf16.mxu0 0
        %3136 = vmatpush2.bf16.msra.mxu0 0
        %3137 = vmatprep.subr.bf16.mxu0 0
        %3138 = vmatpush2.bf16.msra.mxu0 0
        %3139 = vmatprep.subr.bf16.mxu0 0
        %3140 = vmatpush2.bf16.msra.mxu0 0
        %3141 = vmatprep.subr.bf16.mxu0 0
        %3142 = vmatpush2.bf16.msra.mxu0 0
        %3143 = vmatprep.subr.bf16.mxu0 0
        %3144 = vmatpush2.bf16.msra.mxu0 0
        %3145 = vmatprep.subr.bf16.mxu0 0
        %3146 = vmatpush2.bf16.msra.mxu0 0
        %3147 = vmatprep.subr.bf16.mxu0 0
        %3148 = vmatpush2.bf16.msra.mxu0 0
        %3149 = vmatprep.subr.bf16.mxu0 0
        %3150 = vmatpush2.bf16.msra.mxu0 0
        %3151 = vmatprep.mubr.bf16.mxu0 0
        %3152 = vmatmul.mubr.bf16.gmra.mxu0 %v3117
        %v3153 = vpop.f32.mrf.mxu0
        %v3154 = vadd.f32 0.0, %v3153
        %v3155 = vpop.f32.mrf.mxu0
        %v3156 = vpop.f32.mrf.mxu0
        %v3157 = vpop.f32.mrf.mxu0
        %3158 = vdwg.mxu0
        %v3159 = vld [vmem:[%s13] sm:$0xf]
        %v3160 = vld [vmem:[%s13 + $0x4] sm:$0xf]
        %v3161 = vld [vmem:[%s13 + $0x8] sm:$0xf]
        %v3162 = vld [vmem:[%s13 + $0xc] sm:$0xf]
        %v3167 = vunpack.c.l.b16 %v3159
        %v3168 = vunpack.c.l.b16 %v3160
        %v3169 = vunpack.c.l.b16 %v3161
        %v3170 = vunpack.c.l.b16 %v3162
        %v3171 = vpack.c.b16 %v3168, %v3167
        %v3172 = vpack.c.b16 %v3170, %v3169
        %3175 = vmatprep.subr.bf16.mxu0 0
        %3176 = vmatpush1.bf16.msra.mxu0 0
        %3177 = vmatprep.subr.bf16.mxu0 0
        %3178 = vmatpush1.bf16.msra.mxu0 0
        %3179 = vmatprep.subr.bf16.mxu0 0
        %3180 = vmatpush1.bf16.msra.mxu0 0
        %3181 = vmatprep.subr.bf16.mxu0 0
        %3182 = vmatpush1.bf16.msra.mxu0 0
        %3183 = vmatprep.subr.bf16.mxu0 0
        %3184 = vmatpush1.bf16.msra.mxu0 0
        %3185 = vmatprep.subr.bf16.mxu0 0
        %3186 = vmatpush1.bf16.msra.mxu0 0
        %3187 = vmatprep.subr.bf16.mxu0 0
        %3188 = vmatpush1.bf16.msra.mxu0 %v3172
        %3189 = vmatprep.subr.bf16.mxu0 0
        %3190 = vmatpush1.bf16.msra.mxu0 %v3171
        %3191 = vmatprep.subr.bf16.mxu0 0
        %3192 = vmatpush2.bf16.msra.mxu0 0
        %3193 = vmatprep.subr.bf16.mxu0 0
        %3194 = vmatpush2.bf16.msra.mxu0 0
        %3195 = vmatprep.subr.bf16.mxu0 0
        %3196 = vmatpush2.bf16.msra.mxu0 0
        %3197 = vmatprep.subr.bf16.mxu0 0
        %3198 = vmatpush2.bf16.msra.mxu0 0
        %3199 = vmatprep.subr.bf16.mxu0 0
        %3200 = vmatpush2.bf16.msra.mxu0 0
        %3201 = vmatprep.subr.bf16.mxu0 0
        %3202 = vmatpush2.bf16.msra.mxu0 0
        %3203 = vmatprep.subr.bf16.mxu0 0
        %3204 = vmatpush2.bf16.msra.mxu0 0
        %3205 = vmatprep.subr.bf16.mxu0 0
        %3206 = vmatpush2.bf16.msra.mxu0 0
        %3207 = vmatprep.mubr.bf16.mxu0 0
        %3208 = vmatmul.mubr.bf16.gmra.mxu0 %v2991
        %v3209 = vpop.f32.mrf.mxu0
        %v3210 = vadd.f32 0.0, %v3209
        %v3211 = vpop.f32.mrf.mxu0
        %v3212 = vpop.f32.mrf.mxu0
        %v3213 = vpop.f32.mrf.mxu0
        %3214 = vdwg.mxu0
        %v3215 = vpack.c.bf16 %v3154, %v3154
        %v3216 = vld [vmem:[%s14] sm:$0xf]
        %v3217 = vld [vmem:[%s14 + $0x4] sm:$0xf]
        %v3218 = vld [vmem:[%s14 + $0x8] sm:$0xf]
        %v3219 = vld [vmem:[%s14 + $0xc] sm:$0xf]
        %v3224 = vunpack.c.l.b16 %v3216
        %v3225 = vunpack.c.l.b16 %v3217
        %v3226 = vunpack.c.l.b16 %v3218
        %v3227 = vunpack.c.l.b16 %v3219
        %v3228 = vpack.c.b16 %v3225, %v3224
        %v3229 = vpack.c.b16 %v3227, %v3226
        %v3233 = vsel %vm2685, %v3215, 0
        %3235 = vmatprep.subr.bf16.mxu0 0
        %3236 = vmatpush1.bf16.msra.mxu0 0
        %3237 = vmatprep.subr.bf16.mxu0 0
        %3238 = vmatpush1.bf16.msra.mxu0 0
        %3239 = vmatprep.subr.bf16.mxu0 0
        %3240 = vmatpush1.bf16.msra.mxu0 0
        %3241 = vmatprep.subr.bf16.mxu0 0
        %3242 = vmatpush1.bf16.msra.mxu0 0
        %3243 = vmatprep.subr.bf16.mxu0 0
        %3244 = vmatpush1.bf16.msra.mxu0 0
        %3245 = vmatprep.subr.bf16.mxu0 0
        %3246 = vmatpush1.bf16.msra.mxu0 0
        %3247 = vmatprep.subr.bf16.mxu0 0
        %3248 = vmatpush1.bf16.msra.mxu0 %v3229
        %3249 = vmatprep.subr.bf16.mxu0 0
        %3250 = vmatpush1.bf16.msra.mxu0 %v3228
        %3251 = vmatprep.subr.bf16.mxu0 0
        %3252 = vmatpush2.bf16.msra.mxu0 0
        %3253 = vmatprep.subr.bf16.mxu0 0
        %3254 = vmatpush2.bf16.msra.mxu0 0
        %3255 = vmatprep.subr.bf16.mxu0 0
        %3256 = vmatpush2.bf16.msra.mxu0 0
        %3257 = vmatprep.subr.bf16.mxu0 0
        %3258 = vmatpush2.bf16.msra.mxu0 0
        %3259 = vmatprep.subr.bf16.mxu0 0
        %3260 = vmatpush2.bf16.msra.mxu0 0
        %3261 = vmatprep.subr.bf16.mxu0 0
        %3262 = vmatpush2.bf16.msra.mxu0 0
        %3263 = vmatprep.subr.bf16.mxu0 0
        %3264 = vmatpush2.bf16.msra.mxu0 0
        %3265 = vmatprep.subr.bf16.mxu0 0
        %3266 = vmatpush2.bf16.msra.mxu0 0
        %3267 = vmatprep.mubr.bf16.mxu0 0
        %3268 = vmatmul.mubr.bf16.gmra.mxu0 %v3233
        %v3269 = vpop.f32.mrf.mxu0
        %v3270 = vadd.f32 0.0, %v3269
        %v3271 = vpop.f32.mrf.mxu0
        %v3272 = vpop.f32.mrf.mxu0
        %v3273 = vpop.f32.mrf.mxu0
        %3274 = vdwg.mxu0
        %v3275 = vtanh.pop %v3210
        %v3276 = vtanh.pop %v3270
        %v3277 = vadd.f32 %v3210, %v3270
        %v3278 = vxor.u32 %v3277, 2147483648
        %v3279 = vmul.f32 %v3278, 1.442695
        %v3280 = vpow.pop %v3279
        %v3281 = vadd.f32 %v3280, 1.0
        %v3282 = vrcp.pop %v3281
        %v3283 = vmul.f32 1.0, %v3282
        %3285 = vrot.lane.b32.xlu0 %v3275, 32
        %v3286 = vpop.permute.xlu0 %3285
        %v3288 = vmul.f32 %v3283, %v3286
        %v3289 = vsub.f32 1.0, %v3283
        %3291 = vrot.lane.b32.xlu0 %v3276, 32
        %v3292 = vpop.permute.xlu0 %3291
        %v3294 = vmul.f32 %v3289, %v3292
        %v3295 = vadd.f32 %v3288, %v3294
        %v3296 = vpack.c.bf16 %v3295, %v3295
        %v3297 = vld [vmem:[%s15] sm:$0xf]
        %v3298 = vld [vmem:[%s15 + $0x4] sm:$0xf]
        %v3299 = vld [vmem:[%s15 + $0x8] sm:$0xf]
        %v3300 = vld [vmem:[%s15 + $0xc] sm:$0xf]
        %v3301 = vld [vmem:[%s16] sm:$0x1]
        %v3303 = vlaneseq
        %v3304 = vshrl.u32 %v3303, 7
        %v3305 = vsub.s32 0, %v3304
        %v3306 = vrot.slane %v3301, %v3305
        %3309 = vrot.lane.b32.xlu0 %v3296, 96
        %v3310 = vpop.permute.xlu0 %3309
        %v3315 = vunpack.c.l.b16 %v3297
        %v3316 = vunpack.c.l.b16 %v3298
        %v3317 = vunpack.c.l.b16 %v3299
        %v3318 = vunpack.c.l.b16 %v3300
        %v3319 = vpack.c.b16 %v3316, %v3315
        %v3320 = vpack.c.b16 %v3318, %v3317
        %v3324 = vsel %vm2685, %v3310, 0
        %3326 = vmatprep.subr.bf16.mxu0 0
        %3327 = vmatpush1.bf16.msra.mxu0 0
        %3328 = vmatprep.subr.bf16.mxu0 0
        %3329 = vmatpush1.bf16.msra.mxu0 0
        %3330 = vmatprep.subr.bf16.mxu0 0
        %3331 = vmatpush1.bf16.msra.mxu0 0
        %3332 = vmatprep.subr.bf16.mxu0 0
        %3333 = vmatpush1.bf16.msra.mxu0 0
        %3334 = vmatprep.subr.bf16.mxu0 0
        %3335 = vmatpush1.bf16.msra.mxu0 0
        %3336 = vmatprep.subr.bf16.mxu0 0
        %3337 = vmatpush1.bf16.msra.mxu0 0
        %3338 = vmatprep.subr.bf16.mxu0 0
        %3339 = vmatpush1.bf16.msra.mxu0 %v3320
        %3340 = vmatprep.subr.bf16.mxu0 0
        %3341 = vmatpush1.bf16.msra.mxu0 %v3319
        %3342 = vmatprep.subr.bf16.mxu0 0
        %3343 = vmatpush2.bf16.msra.mxu0 0
        %3344 = vmatprep.subr.bf16.mxu0 0
        %3345 = vmatpush2.bf16.msra.mxu0 0
        %3346 = vmatprep.subr.bf16.mxu0 0
        %3347 = vmatpush2.bf16.msra.mxu0 0
        %3348 = vmatprep.subr.bf16.mxu0 0
        %3349 = vmatpush2.bf16.msra.mxu0 0
        %3350 = vmatprep.subr.bf16.mxu0 0
        %3351 = vmatpush2.bf16.msra.mxu0 0
        %3352 = vmatprep.subr.bf16.mxu0 0
        %3353 = vmatpush2.bf16.msra.mxu0 0
        %3354 = vmatprep.subr.bf16.mxu0 0
        %3355 = vmatpush2.bf16.msra.mxu0 0
        %3356 = vmatprep.subr.bf16.mxu0 0
        %3357 = vmatpush2.bf16.msra.mxu0 0
        %3358 = vmatprep.mubr.bf16.mxu0 0
        %3359 = vmatmul.mubr.bf16.gmra.mxu0 %v3324
        %v3360 = vpop.f32.mrf.mxu0
        %v3361 = vadd.f32 %v3306, %v3360
        %v3362 = vpop.f32.mrf.mxu0
        %v3363 = vpop.f32.mrf.mxu0
        %v3364 = vpop.f32.mrf.mxu0
        %3365 = vdwg.mxu0
        %3366 = vst.msk [vmem:[%s637] sm:$0xff] %vm2685, %v3361
        %v3367 = vsel %vm2685, %v3361, -inf
        %3368 = vmax.xlane.f32.xlu0 %v3367
        %v3369 = vpop.xlane.xlu0 %3368
        %v3370 = vsub.f32 %v3361, %v3369
        %v3371 = vmul.f32 %v3370, 1.442695
        %v3372 = vpow.pop %v3371
        %v3373 = vsel %vm2685, %v3372, 0.0
        %3374 = vadd.xlane.f32.xlu0 %v3373
        %v3375 = vpop.xlane.xlu0 %3374
        %v3376 = vlog2.pop %v3375
        %v3377 = vmul.f32 %v3376, 0.6931472
        %v3378 = vadd.f32 %v3369, %v3377
        %v3379 = vmul.f32 %v3361, %v2779
        %v3380 = vsel %vm2685, %v3379, 0.0
        %3381 = vadd.xlane.f32.xlu0 %v3380
        %v3382 = vpop.xlane.xlu0 %3381
        %v3383 = vsub.f32 %v3378, %v3382
        %3384 = vst.msk [vmem:[%s670] sm:$0xff] %vm2391, %v3383
        %s3385 = sand.u32 %s419, 1
        %s3386 = scalar_lea.sflag [#allocation4], %s3385
        %s3387 = sand.u32 %s419, 1
        %s3388 = smul.addr %s3387, 8
        %s3389 = scalar_lea.vmem [#allocation3], %s3388
        %p3390 = scmp.lt.s32.totalorder %s34, 1
        %s3391 = scalar_select %p3390, %s34, 1
        %s3392 = smul.addr %s3391, 8
        %s3393 = scalar_lea.vmem %s18, %s3392
        %p3394 = scmp.lt.s32.totalorder %s34, 1
        %s3395 = scalar_select %p3394, %s34, 1
        %s3396 = scalar_lea.vmem %s19, %s3395
        // Predicated region
        $region89: #{rlfn_forward.1} parent=87 // pred_check
          %p3397 = pneg %p429
        $region90: #{rlfn_forward.1} parent=87 // pred_check_branch
          %3399 = sbr.rel (%p3397) target = $region92
        $region91: #{rlfn_forward.1} parent=87 // pred_region
          %s3401 = ssub.s32 128, 128
          %3402 = vsyncadd %s3386, %s3401
          %s3403 = smul.addr %s34, 128
          %s3404 = scalar_lea.hbm %s17, %s3403
          %s3406 = sshll.u32 %s3389, 4
          %s3407 = int_to_ptr.vmem [resolvable:$true] %s3406
          %3409 = dma.vmem_to_hbm [thread:$0]  %s3407, 128, %s3404, %s3386
        $region92: #{rlfn_forward.1} parent=87 // pred_fallthru
          _
        // Predicated region
        $region93: #{rlfn_forward.1} parent=87 // pred_check
          %p3410 = pneg %p455
        $region94: #{rlfn_forward.1} parent=87 // pred_check_branch
          %3412 = sbr.rel (%p3410) target = $region96
        $region95: #{rlfn_forward.1} parent=87 // pred_region
          _
        $region96: #{rlfn_forward.1} parent=87 // pred_fallthru
          _
        // Predicated region
        $region97: #{rlfn_forward.1} parent=87 // pred_check
          %p3413 = pneg %p481
        $region98: #{rlfn_forward.1} parent=87 // pred_check_branch
          %3415 = sbr.rel (%p3413) target = $region100
        $region99: #{rlfn_forward.1} parent=87 // pred_region
          _
        $region100: #{rlfn_forward.1} parent=87 // pred_fallthru
          _
      $region88: #{rlfn_forward.1} parent=5 // pred_fallthru
        _
      %p3416 = scmp.le.s32.totalorder 2, %s29
      // Predicated region
      $region101: #{rlfn_forward.1} parent=5 // pred_check
        %p3417 = pneg %p3416
      $region102: #{rlfn_forward.1} parent=5 // pred_check_branch
        %3419 = sbr.rel (%p3417) target = $region104
      $region103: #{rlfn_forward.1} parent=5 // pred_region
        %s3420 = ssub.s32 %s29, 2
        // Predicated region
        $region105: #{rlfn_forward.1} parent=103 // pred_check
          %p3421 = pneg %p435
        $region106: #{rlfn_forward.1} parent=103 // pred_check_branch
          %3423 = sbr.rel (%p3421) target = $region108
        $region107: #{rlfn_forward.1} parent=103 // pred_region
          %s3424 = sand.u32 %s420, 1
          %s3425 = scalar_lea.sflag [#allocation4], %s3424
          %s3426 = sand.u32 %s420, 1
          %s3427 = smul.addr %s3426, 8
          %s3428 = scalar_lea.vmem [#allocation3], %s3427
          %3429 = dma.done %s3425, 128
        $region108: #{rlfn_forward.1} parent=103 // pred_fallthru
          _
        // Predicated region
        $region109: #{rlfn_forward.1} parent=103 // pred_check
          %p3430 = pneg %p461
        $region110: #{rlfn_forward.1} parent=103 // pred_check_branch
          %3432 = sbr.rel (%p3430) target = $region112
        $region111: #{rlfn_forward.1} parent=103 // pred_region
          %p3433 = scmp.lt.s32.totalorder %s35, 1
          %s3434 = scalar_select %p3433, %s35, 1
          %s3435 = smul.addr %s3434, 8
          %s3436 = scalar_lea.vmem %s18, %s3435
        $region112: #{rlfn_forward.1} parent=103 // pred_fallthru
          _
        // Predicated region
        $region113: #{rlfn_forward.1} parent=103 // pred_check
          %p3437 = pneg %p487
        $region114: #{rlfn_forward.1} parent=103 // pred_check_branch
          %3439 = sbr.rel (%p3437) target = $region116
        $region115: #{rlfn_forward.1} parent=103 // pred_region
          %p3440 = scmp.lt.s32.totalorder %s35, 1
          %s3441 = scalar_select %p3440, %s35, 1
          %s3442 = scalar_lea.vmem %s19, %s3441
        $region116: #{rlfn_forward.1} parent=103 // pred_fallthru
          _
      $region104: #{rlfn_forward.1} parent=5 // pred_fallthru
        _
    $region6: #{rlfn_forward.1} parent=1 // loop_footer
      %s33 = sadd.s32 1, %s29
    $region7: #{rlfn_forward.1} parent=1 // loop_footer_branch
      %28 = sbr.rel target = $region3
    $region8: #{rlfn_forward.1} parent=1 // loop_exit
      _
    %3443 = vsyncpa [#allocation4], 1
    %s3444 = scalar_lea.sflag [#allocation4], 1
    %3445 = vsyncpa %s3444, 1

</llo_original>
